<compile_context>
chip_gen: v5e
topology: v5e:2x2
jax: 0.10.0
libtpu: 0.0.40
codegen_flags: <defaults>
</compile_context>

<pallas_src>
import math

import jax
import jax.numpy as jnp
from jax import lax
from jax.experimental import pallas as pl
from jax.experimental.pallas import tpu as pltpu

# ---------------- config (mirrors the PyTorch `config`) ----------------
VOC_SIZE = 100
VOC_PAD = 128            # lane-dense padded logits width
EMB_DIM = 32
NUM_HEADS = 4
HEAD_DIM = EMB_DIM // NUM_HEADS
FFN_DIM = 64
NUM_LAYERS = 2
LN_EPS = 1e-5
NEG_INF = -1e9

# ---------------- packed-weight layout constants ----------------
P_ROWS_PER_ATTN = 3 * NUM_HEADS                       # q,k,v heads per attention block
P_ENC = 0                                             # encoder self-attn rows
P_DEC_SELF = P_ENC + NUM_LAYERS * P_ROWS_PER_ATTN     # decoder self-attn rows
P_DEC_CROSS = P_DEC_SELF + NUM_LAYERS * P_ROWS_PER_ATTN
N_PROJ_ROWS = P_DEC_CROSS + NUM_LAYERS * P_ROWS_PER_ATTN   # 72

WO_ENC = 0
WO_DEC_SELF = NUM_LAYERS
WO_DEC_CROSS = 2 * NUM_LAYERS
N_WO = 3 * NUM_LAYERS                                 # 6

FFN_ENC = 0
FFN_DEC = NUM_LAYERS
N_FFN = 2 * NUM_LAYERS                                # 4

VEC_ENC_STRIDE = 6        # bo, ln1_g, ln1_b, b2, ln2_g, ln2_b
VEC_DEC_BASE = VEC_ENC_STRIDE * NUM_LAYERS
VEC_DEC_STRIDE = 9        # bo, ln1_g, ln1_b, cbo, ln2_g, ln2_b, b2, ln3_g, ln3_b
N_VEC = VEC_DEC_BASE + VEC_DEC_STRIDE * NUM_LAYERS    # 30


# ---------------- in-kernel helpers (jnp values in VMEM) ----------------
def _ln(z, g, b):
    mu = jnp.mean(z, axis=-1, keepdims=True)
    var = jnp.mean(jnp.square(z - mu), axis=-1, keepdims=True)
    return (z - mu) * lax.rsqrt(var + LN_EPS) * g + b


def _proj_heads(x, w, b):
    """x:[S,D] f32, w:[N,D,HD] bf16, b:[N,1,HD] f32 -> [N,S,HD] f32 (batched over heads)."""
    n = w.shape[0]
    xb = jnp.broadcast_to(x.astype(jnp.bfloat16), (n,) + x.shape)
    y = lax.dot_general(xb, w, (((2,), (1,)), ((0,), (0,))),
                        preferred_element_type=jnp.float32)
    return y + b


def _mha(q, k, v, mask, wo, bo):
    """q:[H,Sq,HD] k,v:[H,Sk,HD] f32; mask broadcastable to [Sq,Sk];
    wo:[H,HD,D] bf16; bo:[1,D] f32 -> [Sq,D] f32."""
    s = lax.dot_general(q.astype(jnp.bfloat16), k.astype(jnp.bfloat16),
                        (((2,), (2,)), ((0,), (0,))),
                        preferred_element_type=jnp.float32)       # [H,Sq,Sk]
    s = s + mask
    s = s - jnp.max(s, axis=-1, keepdims=True)
    p = jnp.exp(s)
    p = p * pl.reciprocal(jnp.sum(p, axis=-1, keepdims=True), approx=True)
    ctx = lax.dot_general(p.astype(jnp.bfloat16), v.astype(jnp.bfloat16),
                          (((2,), (1,)), ((0,), (0,))),
                          preferred_element_type=jnp.float32)     # [H,Sq,HD]
    outh = lax.dot_general(ctx.astype(jnp.bfloat16), wo,
                           (((2,), (1,)), ((0,), (0,))),
                           preferred_element_type=jnp.float32)    # [H,Sq,D]
    return jnp.sum(outh, axis=0) + bo                             # merge heads


def _ffn(x, w1, b1, w2, b2):
    h = jnp.dot(x.astype(jnp.bfloat16), w1, preferred_element_type=jnp.float32) + b1
    h = jnp.maximum(h, 0.0)
    return jnp.dot(h.astype(jnp.bfloat16), w2, preferred_element_type=jnp.float32) + b2


# ---------------- the fused Pallas kernel (one batch element per grid step) ----------------
def _transformer_kernel(x_en_ref, x_tr_ref, en_kpad_ref, tr_kpad_ref,
                        w_proj_ref, b_proj_ref, w_out_ref,
                        w_ffn1_ref, b_ffn1_ref, w_ffn2_ref,
                        vecs_ref, final_w_ref, final_b_ref, o_ref):
    S_tr = x_tr_ref.shape[0]
    H = NUM_HEADS

    vecs = vecs_ref[...]                        # [N_VEC, D] f32

    def vec(i):                                 # static sublane slice -> [1, D]
        return vecs[i:i + 1, :]

    en_kpad = en_kpad_ref[...]                  # [1, S_en] additive pad mask
    tr_kpad = tr_kpad_ref[...]                  # [1, S_tr]

    row = lax.broadcasted_iota(jnp.int32, (S_tr, S_tr), 0)
    col = lax.broadcasted_iota(jnp.int32, (S_tr, S_tr), 1)
    self_mask = jnp.where(row >= col, 0.0, NEG_INF).astype(jnp.float32) + tr_kpad

    def self_block(x, proj_off, wo_idx, bo_vec, mask):
        qkv = _proj_heads(x,
                          w_proj_ref[proj_off:proj_off + 3 * H, :, :],
                          b_proj_ref[proj_off:proj_off + 3 * H, :, :])   # [3H,S,HD]
        return _mha(qkv[:H], qkv[H:2 * H], qkv[2 * H:], mask,
                    w_out_ref[wo_idx], bo_vec)

    # ---------------- encoder stack ----------------
    x = x_en_ref[...]
    for l in range(NUM_LAYERS):
        vb = VEC_ENC_STRIDE * l
        attn = self_block(x, P_ENC + l * P_ROWS_PER_ATTN, WO_ENC + l,
                          vec(vb + 0), en_kpad)
        x = _ln(x + attn, vec(vb + 1), vec(vb + 2))
        f = _ffn(x, w_ffn1_ref[FFN_ENC + l], b_ffn1_ref[FFN_ENC + l],
                 w_ffn2_ref[FFN_ENC + l], vec(vb + 3))
        x = _ln(x + f, vec(vb + 4), vec(vb + 5))
    enc_out = x

    # ---------------- decoder stack ----------------
    y = x_tr_ref[...]
    for l in range(NUM_LAYERS):
        vb = VEC_DEC_BASE + VEC_DEC_STRIDE * l
        sa = self_block(y, P_DEC_SELF + l * P_ROWS_PER_ATTN, WO_DEC_SELF + l,
                        vec(vb + 0), self_mask)
        y = _ln(y + sa, vec(vb + 1), vec(vb + 2))

        co = P_DEC_CROSS + l * P_ROWS_PER_ATTN
        q = _proj_heads(y, w_proj_ref[co:co + H, :, :],
                        b_proj_ref[co:co + H, :, :])                      # [H,St,HD]
        kv = _proj_heads(enc_out, w_proj_ref[co + H:co + 3 * H, :, :],
                         b_proj_ref[co + H:co + 3 * H, :, :])             # [2H,Se,HD]
        ca = _mha(q, kv[:H], kv[H:], en_kpad, w_out_ref[WO_DEC_CROSS + l],
                  vec(vb + 3))
        y = _ln(y + ca, vec(vb + 4), vec(vb + 5))

        f = _ffn(y, w_ffn1_ref[FFN_DEC + l], b_ffn1_ref[FFN_DEC + l],
                 w_ffn2_ref[FFN_DEC + l], vec(vb + 6))
        y = _ln(y + f, vec(vb + 7), vec(vb + 8))

    # ---------------- final projection (lane-dense, VOC padded to 128) ----------------
    o_ref[...] = (jnp.dot(y.astype(jnp.bfloat16), final_w_ref[...],
                          preferred_element_type=jnp.float32) + final_b_ref[...])


# ---------------- plain-JAX glue (embeddings, PE, pad vectors) ----------------
def sinusoidal_pos(seq_len, d):
    pos = jnp.arange(seq_len, dtype=jnp.float32)[:, None]
    i = jnp.arange(d // 2, dtype=jnp.float32)[None, :]
    angle = pos / jnp.power(10000.0, 2.0 * i / d)
    pe = jnp.zeros((seq_len, d), jnp.float32)
    pe = pe.at[:, 0::2].set(jnp.sin(angle))
    pe = pe.at[:, 1::2].set(jnp.cos(angle))
    return pe


def transformer_forward(params, en, en_attention, tr, tr_attention):
    B, S_en = en.shape
    _, S_tr = tr.shape
    D = EMB_DIM

    # TODO(synk): embedding gather + positional encoding stay in plain JAX (table lookup glue).
    x_en = params["enc_emb"][en] * math.sqrt(D) + sinusoidal_pos(S_en, D)[None]   # [B,S_en,D]
    x_tr = params["dec_emb"][tr] * math.sqrt(D) + sinusoidal_pos(S_tr, D)[None]   # [B,S_tr,D]

    # additive key-pad vectors; full [Sq,Sk] masks are built inside the kernel
    en_kpad = ((1.0 - en_attention.astype(jnp.float32)) * NEG_INF)[:, None, :]    # [B,1,S_en]
    tr_kpad = ((1.0 - tr_attention.astype(jnp.float32)) * NEG_INF)[:, None, :]    # [B,1,S_tr]

    inputs = [x_en, x_tr, en_kpad, tr_kpad,
              params["w_proj"], params["b_proj"], params["w_out"],
              params["w_ffn1"], params["b_ffn1"], params["w_ffn2"],
              params["vecs"], params["final_w"], params["final_b"]]

    def batch_spec(shape):                      # batched over grid axis b
        rest = tuple(int(s) for s in shape[1:])
        n = len(rest)
        return pl.BlockSpec((None,) + rest, lambda b, _n=n: (b,) + (0,) * _n)

    def full_spec(shape):                       # weights: whole array, constant index
        shape = tuple(int(s) for s in shape)
        n = len(shape)
        return pl.BlockSpec(shape, lambda b, _n=n: (0,) * _n)

    in_specs = ([batch_spec(a.shape) for a in inputs[:4]]
                + [full_spec(a.shape) for a in inputs[4:]])

    out_pad = pl.pallas_call(
        _transformer_kernel,
        out_shape=jax.ShapeDtypeStruct((B, S_tr, VOC_PAD), jnp.float32),
        grid=(B,),
        in_specs=in_specs,
        out_specs=pl.BlockSpec((None, S_tr, VOC_PAD), lambda b: (b, 0, 0)),
        compiler_params=pltpu.CompilerParams(
            dimension_semantics=("parallel",)),
    )(*inputs)

    return out_pad[..., :VOC_SIZE]


# ---------------- deterministic parameter init (packed layout) ----------------
def _init_w(key, shape):
    return jax.random.normal(key, shape, jnp.float32) * 0.02


def init_params(key):
    n_keys = 3 + 6 * NUM_LAYERS + 10 * NUM_LAYERS
    keys = jax.random.split(key, n_keys)
    ki = iter(range(n_keys))
    nxt = lambda: keys[next(ki)]

    enc_emb = _init_w(nxt(), (VOC_SIZE, EMB_DIM))
    dec_emb = _init_w(nxt(), (VOC_SIZE, EMB_DIM))
    final_w_raw = _init_w(nxt(), (EMB_DIM, VOC_SIZE))

    scale = 1.0 / math.sqrt(HEAD_DIM)

    def heads_in(w):     # [D, D] -> [H, D, HD]
        return jnp.transpose(w.reshape(EMB_DIM, NUM_HEADS, HEAD_DIM), (1, 0, 2))

    def heads_out(w):    # [D, D] -> [H, HD, D]
        return w.reshape(NUM_HEADS, HEAD_DIM, EMB_DIM)

    enc_proj, dec_self_proj, dec_cross_proj = [], [], []
    wo_enc, wo_dself, wo_dcross = [], [], []
    ffn1_enc, ffn2_enc, ffn1_dec, ffn2_dec = [], [], [], []

    for _ in range(NUM_LAYERS):
        wq, wk, wv, wo = (_init_w(nxt(), (EMB_DIM, EMB_DIM)) for _ in range(4))
        w1 = _init_w(nxt(), (EMB_DIM, FFN_DIM))
        w2 = _init_w(nxt(), (FFN_DIM, EMB_DIM))
        enc_proj += [heads_in(wq) * scale, heads_in(wk), heads_in(wv)]
        wo_enc.append(heads_out(wo))
        ffn1_enc.append(w1)
        ffn2_enc.append(w2)

    for _ in range(NUM_LAYERS):
        wq, wk, wv, wo = (_init_w(nxt(), (EMB_DIM, EMB_DIM)) for _ in range(4))
        cwq, cwk, cwv, cwo = (_init_w(nxt(), (EMB_DIM, EMB_DIM)) for _ in range(4))
        w1 = _init_w(nxt(), (EMB_DIM, FFN_DIM))
        w2 = _init_w(nxt(), (FFN_DIM, EMB_DIM))
        dec_self_proj += [heads_in(wq) * scale, heads_in(wk), heads_in(wv)]
        wo_dself.append(heads_out(wo))
        dec_cross_proj += [heads_in(cwq) * scale, heads_in(cwk), heads_in(cwv)]
        wo_dcross.append(heads_out(cwo))
        ffn1_dec.append(w1)
        ffn2_dec.append(w2)

    w_proj = jnp.concatenate(enc_proj + dec_self_proj + dec_cross_proj, axis=0)  # [72,D,HD]
    b_proj = jnp.zeros((N_PROJ_ROWS, 1, HEAD_DIM), jnp.float32)
    w_out = jnp.stack(wo_enc + wo_dself + wo_dcross, axis=0)                     # [6,H,HD,D]
    w_ffn1 = jnp.stack(ffn1_enc + ffn1_dec, axis=0)                              # [4,D,FFN]
    b_ffn1 = jnp.zeros((N_FFN, 1, FFN_DIM), jnp.float32)
    w_ffn2 = jnp.stack(ffn2_enc + ffn2_dec, axis=0)                              # [4,FFN,D]

    # vector slab: LayerNorm gammas = 1, everything else (betas/biases) = 0
    vecs = jnp.zeros((N_VEC, EMB_DIM), jnp.float32)
    gamma_rows = []
    for l in range(NUM_LAYERS):
        gamma_rows += [VEC_ENC_STRIDE * l + 1, VEC_ENC_STRIDE * l + 4]
    for l in range(NUM_LAYERS):
        b = VEC_DEC_BASE + VEC_DEC_STRIDE * l
        gamma_rows += [b + 1, b + 4, b + 7]
    vecs = vecs.at[jnp.array(gamma_rows)].set(1.0)

    final_w = jnp.zeros((EMB_DIM, VOC_PAD), jnp.float32).at[:, :VOC_SIZE].set(final_w_raw)
    final_b = jnp.zeros((1, VOC_PAD), jnp.float32)

    return {
        "enc_emb": enc_emb, "dec_emb": dec_emb,
        "w_proj": w_proj.astype(jnp.bfloat16),
        "b_proj": b_proj,
        "w_out": w_out.astype(jnp.bfloat16),
        "w_ffn1": w_ffn1.astype(jnp.bfloat16),
        "b_ffn1": b_ffn1,
        "w_ffn2": w_ffn2.astype(jnp.bfloat16),
        "vecs": vecs,
        "final_w": final_w.astype(jnp.bfloat16),
        "final_b": final_b,
    }


if __name__ == "__main__":
    key = jax.random.PRNGKey(0)
    k_param, k_en, k_tr = jax.random.split(key, 3)
    params = init_params(k_param)

    B, S_EN, S_TR = 2, 8, 8
    en = jax.random.randint(k_en, (B, S_EN), 0, VOC_SIZE, dtype=jnp.int32)
    tr = jax.random.randint(k_tr, (B, S_TR), 0, VOC_SIZE, dtype=jnp.int32)
    en_attention = jnp.array([[1, 1, 1, 1, 1, 1, 1, 1],
                              [1, 1, 1, 1, 1, 1, 0, 0]], dtype=jnp.int32)
    tr_attention = jnp.array([[1, 1, 1, 1, 1, 1, 1, 1],
                              [1, 1, 1, 1, 1, 0, 0, 0]], dtype=jnp.int32)

    out = jax.jit(transformer_forward)(params, en, en_attention, tr, tr_attention)
    out = jax.block_until_ready(out)
    assert out.shape == (B, S_TR, VOC_SIZE)
    assert bool(jnp.all(jnp.isfinite(out)))
    print("KERNEL_OK")
</pallas_src>

<mosaic_0001>
module attributes {stable_mosaic.version = 11 : i64} {
  func.func @_transformer_kernel(%arg0: i32, %arg1: memref<1x8x32xf32, #tpu.memory_space<vmem>>, %arg2: memref<1x8x32xf32, #tpu.memory_space<vmem>>, %arg3: memref<1x1x8xf32, #tpu.memory_space<vmem>>, %arg4: memref<1x1x8xf32, #tpu.memory_space<vmem>>, %arg5: memref<72x32x8xbf16, #tpu.memory_space<vmem>>, %arg6: memref<72x1x8xf32, #tpu.memory_space<vmem>>, %arg7: memref<6x4x8x32xbf16, #tpu.memory_space<vmem>>, %arg8: memref<4x32x64xbf16, #tpu.memory_space<vmem>>, %arg9: memref<4x1x64xf32, #tpu.memory_space<vmem>>, %arg10: memref<4x64x32xbf16, #tpu.memory_space<vmem>>, %arg11: memref<30x32xf32, #tpu.memory_space<vmem>>, %arg12: memref<32x128xbf16, #tpu.memory_space<vmem>>, %arg13: memref<1x128xf32, #tpu.memory_space<vmem>>, %arg14: memref<1x8x128xf32, #tpu.memory_space<vmem>>) attributes {dimension_semantics = [#tpu.dimension_semantics<parallel>], iteration_bounds = array<i64: 2>, scalar_prefetch = 0 : i64, scratch_operands = 0 : i64, tpu.core_type = #tpu.core_type<tc>, window_params = [{transform_indices = @transform_0, window_bounds = array<i64: 1, 8, 32>}, {transform_indices = @transform_1, window_bounds = array<i64: 1, 8, 32>}, {transform_indices = @transform_2, window_bounds = array<i64: 1, 1, 8>}, {transform_indices = @transform_3, window_bounds = array<i64: 1, 1, 8>}, {pipeline_mode = #tpu.pipeline_mode<synchronous>, transform_indices = @transform_4, window_bounds = array<i64: 72, 32, 8>}, {pipeline_mode = #tpu.pipeline_mode<synchronous>, transform_indices = @transform_5, window_bounds = array<i64: 72, 1, 8>}, {pipeline_mode = #tpu.pipeline_mode<synchronous>, transform_indices = @transform_6, window_bounds = array<i64: 6, 4, 8, 32>}, {pipeline_mode = #tpu.pipeline_mode<synchronous>, transform_indices = @transform_7, window_bounds = array<i64: 4, 32, 64>}, {pipeline_mode = #tpu.pipeline_mode<synchronous>, transform_indices = @transform_8, window_bounds = array<i64: 4, 1, 64>}, {pipeline_mode = #tpu.pipeline_mode<synchronous>, transform_indices = @transform_9, window_bounds = array<i64: 4, 64, 32>}, {pipeline_mode = #tpu.pipeline_mode<synchronous>, transform_indices = @transform_10, window_bounds = array<i64: 30, 32>}, {pipeline_mode = #tpu.pipeline_mode<synchronous>, transform_indices = @transform_11, window_bounds = array<i64: 32, 128>}, {pipeline_mode = #tpu.pipeline_mode<synchronous>, transform_indices = @transform_12, window_bounds = array<i64: 1, 128>}, {transform_indices = @transform_13, window_bounds = array<i64: 1, 8, 128>}]} {
    %c0 = arith.constant 0 : index
    %c0_0 = arith.constant 0 : index
    %0 = vector.load %arg11[%c0, %c0_0] : memref<30x32xf32, #tpu.memory_space<vmem>>, vector<30x32xf32>
    %c0_1 = arith.constant 0 : index
    %c0_2 = arith.constant 0 : index
    %c0_3 = arith.constant 0 : index
    %1 = vector.load %arg3[%c0_1, %c0_2, %c0_3] : memref<1x1x8xf32, #tpu.memory_space<vmem>>, vector<1x1x8xf32>
    %2 = vector.shape_cast %1 : vector<1x1x8xf32> to vector<1x8xf32>
    %c0_4 = arith.constant 0 : index
    %c0_5 = arith.constant 0 : index
    %c0_6 = arith.constant 0 : index
    %3 = vector.load %arg4[%c0_4, %c0_5, %c0_6] : memref<1x1x8xf32, #tpu.memory_space<vmem>>, vector<1x1x8xf32>
    %4 = vector.shape_cast %3 : vector<1x1x8xf32> to vector<1x8xf32>
    %5 = tpu.iota {dimensions = array<i32: 0>} : vector<8x8xi32>
    %6 = tpu.iota {dimensions = array<i32: 1>} : vector<8x8xi32>
    %7 = arith.cmpi sge, %5, %6 : vector<8x8xi32>
    %cst = arith.constant 0.000000e+00 : f32
    %cst_7 = arith.constant -1.000000e+09 : f32
    %8 = vector.broadcast %cst : f32 to vector<8x8xf32>
    %9 = vector.broadcast %cst_7 : f32 to vector<8x8xf32>
    %10 = arith.select %7, %8, %9 : vector<8x8xi1>, vector<8x8xf32>
    %11 = vector.broadcast %4 : vector<1x8xf32> to vector<8x8xf32>
    %12 = arith.addf %10, %11 : vector<8x8xf32>
    %c0_8 = arith.constant 0 : index
    %c0_9 = arith.constant 0 : index
    %c0_10 = arith.constant 0 : index
    %13 = vector.load %arg1[%c0_8, %c0_9, %c0_10] : memref<1x8x32xf32, #tpu.memory_space<vmem>>, vector<1x8x32xf32>
    %14 = vector.shape_cast %13 : vector<1x8x32xf32> to vector<8x32xf32>
    %15 = vector.extract_strided_slice %0 {offsets = [0, 0], sizes = [1, 32], strides = [1, 1]} : vector<30x32xf32> to vector<1x32xf32>
    %c0_11 = arith.constant 0 : index
    %c0_12 = arith.constant 0 : index
    %c0_13 = arith.constant 0 : index
    %16 = vector.load %arg5[%c0_11, %c0_12, %c0_13] : memref<72x32x8xbf16, #tpu.memory_space<vmem>>, vector<12x32x8xbf16>
    %c0_14 = arith.constant 0 : index
    %c0_15 = arith.constant 0 : index
    %c0_16 = arith.constant 0 : index
    %17 = vector.load %arg6[%c0_14, %c0_15, %c0_16] : memref<72x1x8xf32, #tpu.memory_space<vmem>>, vector<12x1x8xf32>
    %18 = arith.truncf %14 : vector<8x32xf32> to vector<8x32xbf16>
    %19 = vector.shape_cast %18 : vector<8x32xbf16> to vector<1x8x32xbf16>
    %20 = vector.broadcast %19 : vector<1x8x32xbf16> to vector<12x8x32xbf16>
    %cst_17 = arith.constant dense<0.000000e+00> : vector<12x8x8xf32>
    %21 = tpu.matmul %20, %16, %cst_17 {dimension_numbers = #tpu.dot_dimension_numbers<[2], [1], [1], [2], [0, 0, 0, 1, 1, 2], [0], [0]>} : vector<12x8x32xbf16>, vector<12x32x8xbf16>, vector<12x8x8xf32> -> vector<12x8x8xf32>
    %22 = vector.broadcast %17 : vector<12x1x8xf32> to vector<12x8x8xf32>
    %23 = arith.addf %21, %22 : vector<12x8x8xf32>
    %24 = vector.extract_strided_slice %23 {offsets = [0, 0, 0], sizes = [4, 8, 8], strides = [1, 1, 1]} : vector<12x8x8xf32> to vector<4x8x8xf32>
    %25 = vector.extract_strided_slice %23 {offsets = [4, 0, 0], sizes = [4, 8, 8], strides = [1, 1, 1]} : vector<12x8x8xf32> to vector<4x8x8xf32>
    %26 = vector.extract_strided_slice %23 {offsets = [8, 0, 0], sizes = [4, 8, 8], strides = [1, 1, 1]} : vector<12x8x8xf32> to vector<4x8x8xf32>
    %c0_18 = arith.constant 0 : index
    %c0_19 = arith.constant 0 : index
    %c0_20 = arith.constant 0 : index
    %c0_21 = arith.constant 0 : index
    %27 = vector.load %arg7[%c0_18, %c0_19, %c0_20, %c0_21] : memref<6x4x8x32xbf16, #tpu.memory_space<vmem>>, vector<1x4x8x32xbf16>
    %28 = vector.shape_cast %27 : vector<1x4x8x32xbf16> to vector<4x8x32xbf16>
    %29 = arith.truncf %24 : vector<4x8x8xf32> to vector<4x8x8xbf16>
    %30 = arith.truncf %25 : vector<4x8x8xf32> to vector<4x8x8xbf16>
    %cst_22 = arith.constant dense<0.000000e+00> : vector<4x8x8xf32>
    %31 = tpu.matmul %29, %30, %cst_22 {dimension_numbers = #tpu.dot_dimension_numbers<[2], [2], [1], [1], [0, 0, 0, 1, 1, 1], [0], [0]>} : vector<4x8x8xbf16>, vector<4x8x8xbf16>, vector<4x8x8xf32> -> vector<4x8x8xf32>
    %32 = vector.shape_cast %2 : vector<1x8xf32> to vector<1x1x8xf32>
    %33 = vector.broadcast %32 : vector<1x1x8xf32> to vector<4x8x8xf32>
    %34 = arith.addf %31, %33 : vector<4x8x8xf32>
    %cst_23 = arith.constant dense<0xFF800000> : vector<4x8xf32>
    %35 = vector.multi_reduction <maximumf>, %34, %cst_23 [2] : vector<4x8x8xf32> to vector<4x8xf32>
    %36 = vector.shape_cast %35 : vector<4x8xf32> to vector<4x8x1xf32>
    %37 = vector.broadcast %36 : vector<4x8x1xf32> to vector<4x8x8xf32>
    %38 = arith.subf %34, %37 : vector<4x8x8xf32>
    %39 = math.exp %38 : vector<4x8x8xf32>
    %cst_24 = arith.constant dense<0.000000e+00> : vector<4x8xf32>
    %40 = vector.multi_reduction <add>, %39, %cst_24 [2] : vector<4x8x8xf32> to vector<4x8xf32>
    %41 = vector.shape_cast %40 : vector<4x8xf32> to vector<4x8x1xf32>
    %42 = tpu.reciprocal %41 {approx = true} : vector<4x8x1xf32> -> vector<4x8x1xf32>
    %43 = vector.broadcast %42 : vector<4x8x1xf32> to vector<4x8x8xf32>
    %44 = arith.mulf %39, %43 : vector<4x8x8xf32>
    %45 = arith.truncf %44 : vector<4x8x8xf32> to vector<4x8x8xbf16>
    %46 = arith.truncf %26 : vector<4x8x8xf32> to vector<4x8x8xbf16>
    %cst_25 = arith.constant dense<0.000000e+00> : vector<4x8x8xf32>
    %47 = tpu.matmul %45, %46, %cst_25 {dimension_numbers = #tpu.dot_dimension_numbers<[2], [1], [1], [2], [0, 0, 0, 1, 1, 2], [0], [0]>} : vector<4x8x8xbf16>, vector<4x8x8xbf16>, vector<4x8x8xf32> -> vector<4x8x8xf32>
    %48 = arith.truncf %47 : vector<4x8x8xf32> to vector<4x8x8xbf16>
    %cst_26 = arith.constant dense<0.000000e+00> : vector<4x8x32xf32>
    %49 = tpu.matmul %48, %28, %cst_26 {dimension_numbers = #tpu.dot_dimension_numbers<[2], [1], [1], [2], [0, 0, 0, 1, 1, 2], [0], [0]>} : vector<4x8x8xbf16>, vector<4x8x32xbf16>, vector<4x8x32xf32> -> vector<4x8x32xf32>
    %cst_27 = arith.constant dense<0.000000e+00> : vector<8x32xf32>
    %50 = vector.multi_reduction <add>, %49, %cst_27 [0] : vector<4x8x32xf32> to vector<8x32xf32>
    %51 = vector.broadcast %15 : vector<1x32xf32> to vector<8x32xf32>
    %52 = arith.addf %50, %51 : vector<8x32xf32>
    %53 = arith.addf %14, %52 : vector<8x32xf32>
    %54 = vector.extract_strided_slice %0 {offsets = [1, 0], sizes = [1, 32], strides = [1, 1]} : vector<30x32xf32> to vector<1x32xf32>
    %55 = vector.extract_strided_slice %0 {offsets = [2, 0], sizes = [1, 32], strides = [1, 1]} : vector<30x32xf32> to vector<1x32xf32>
    %cst_28 = arith.constant dense<0.000000e+00> : vector<8xf32>
    %56 = vector.multi_reduction <add>, %53, %cst_28 [1] : vector<8x32xf32> to vector<8xf32>
    %57 = vector.shape_cast %56 : vector<8xf32> to vector<8x1xf32>
    %cst_29 = arith.constant 3.200000e+01 : f32
    %58 = vector.broadcast %cst_29 : f32 to vector<8x1xf32>
    %59 = arith.divf %57, %58 : vector<8x1xf32>
    %60 = vector.broadcast %59 : vector<8x1xf32> to vector<8x32xf32>
    %61 = arith.subf %53, %60 : vector<8x32xf32>
    %62 = arith.mulf %61, %61 : vector<8x32xf32>
    %cst_30 = arith.constant dense<0.000000e+00> : vector<8xf32>
    %63 = vector.multi_reduction <add>, %62, %cst_30 [1] : vector<8x32xf32> to vector<8xf32>
    %64 = vector.shape_cast %63 : vector<8xf32> to vector<8x1xf32>
    %cst_31 = arith.constant 3.200000e+01 : f32
    %65 = vector.broadcast %cst_31 : f32 to vector<8x1xf32>
    %66 = arith.divf %64, %65 : vector<8x1xf32>
    %67 = vector.broadcast %59 : vector<8x1xf32> to vector<8x32xf32>
    %68 = arith.subf %53, %67 : vector<8x32xf32>
    %cst_32 = arith.constant 9.99999974E-6 : f32
    %69 = vector.broadcast %cst_32 : f32 to vector<8x1xf32>
    %70 = arith.addf %66, %69 : vector<8x1xf32>
    %71 = math.rsqrt %70 : vector<8x1xf32>
    %72 = vector.broadcast %71 : vector<8x1xf32> to vector<8x32xf32>
    %73 = arith.mulf %68, %72 : vector<8x32xf32>
    %74 = vector.broadcast %54 : vector<1x32xf32> to vector<8x32xf32>
    %75 = arith.mulf %73, %74 : vector<8x32xf32>
    %76 = vector.broadcast %55 : vector<1x32xf32> to vector<8x32xf32>
    %77 = arith.addf %75, %76 : vector<8x32xf32>
    %c0_33 = arith.constant 0 : index
    %c0_34 = arith.constant 0 : index
    %c0_35 = arith.constant 0 : index
    %78 = vector.load %arg8[%c0_33, %c0_34, %c0_35] : memref<4x32x64xbf16, #tpu.memory_space<vmem>>, vector<1x32x64xbf16>
    %79 = vector.shape_cast %78 : vector<1x32x64xbf16> to vector<32x64xbf16>
    %c0_36 = arith.constant 0 : index
    %c0_37 = arith.constant 0 : index
    %c0_38 = arith.constant 0 : index
    %80 = vector.load %arg9[%c0_36, %c0_37, %c0_38] : memref<4x1x64xf32, #tpu.memory_space<vmem>>, vector<1x1x64xf32>
    %81 = vector.shape_cast %80 : vector<1x1x64xf32> to vector<1x64xf32>
    %c0_39 = arith.constant 0 : index
    %c0_40 = arith.constant 0 : index
    %c0_41 = arith.constant 0 : index
    %82 = vector.load %arg10[%c0_39, %c0_40, %c0_41] : memref<4x64x32xbf16, #tpu.memory_space<vmem>>, vector<1x64x32xbf16>
    %83 = vector.shape_cast %82 : vector<1x64x32xbf16> to vector<64x32xbf16>
    %84 = vector.extract_strided_slice %0 {offsets = [3, 0], sizes = [1, 32], strides = [1, 1]} : vector<30x32xf32> to vector<1x32xf32>
    %85 = arith.truncf %77 : vector<8x32xf32> to vector<8x32xbf16>
    %cst_42 = arith.constant dense<0.000000e+00> : vector<8x64xf32>
    %86 = tpu.matmul %85, %79, %cst_42 {dimension_numbers = #tpu.dot_dimension_numbers<[1], [0], [0], [1], [0, 0, 1, 1], [], []>} : vector<8x32xbf16>, vector<32x64xbf16>, vector<8x64xf32> -> vector<8x64xf32>
    %87 = vector.broadcast %81 : vector<1x64xf32> to vector<8x64xf32>
    %88 = arith.addf %86, %87 : vector<8x64xf32>
    %cst_43 = arith.constant 0.000000e+00 : f32
    %89 = vector.broadcast %cst_43 : f32 to vector<8x64xf32>
    %90 = arith.maximumf %88, %89 : vector<8x64xf32>
    %91 = arith.truncf %90 : vector<8x64xf32> to vector<8x64xbf16>
    %cst_44 = arith.constant dense<0.000000e+00> : vector<8x32xf32>
    %92 = tpu.matmul %91, %83, %cst_44 {dimension_numbers = #tpu.dot_dimension_numbers<[1], [0], [0], [1], [0, 0, 1, 1], [], []>} : vector<8x64xbf16>, vector<64x32xbf16>, vector<8x32xf32> -> vector<8x32xf32>
    %93 = vector.broadcast %84 : vector<1x32xf32> to vector<8x32xf32>
    %94 = arith.addf %92, %93 : vector<8x32xf32>
    %95 = arith.addf %77, %94 : vector<8x32xf32>
    %96 = vector.extract_strided_slice %0 {offsets = [4, 0], sizes = [1, 32], strides = [1, 1]} : vector<30x32xf32> to vector<1x32xf32>
    %97 = vector.extract_strided_slice %0 {offsets = [5, 0], sizes = [1, 32], strides = [1, 1]} : vector<30x32xf32> to vector<1x32xf32>
    %cst_45 = arith.constant dense<0.000000e+00> : vector<8xf32>
    %98 = vector.multi_reduction <add>, %95, %cst_45 [1] : vector<8x32xf32> to vector<8xf32>
    %99 = vector.shape_cast %98 : vector<8xf32> to vector<8x1xf32>
    %cst_46 = arith.constant 3.200000e+01 : f32
    %100 = vector.broadcast %cst_46 : f32 to vector<8x1xf32>
    %101 = arith.divf %99, %100 : vector<8x1xf32>
    %102 = vector.broadcast %101 : vector<8x1xf32> to vector<8x32xf32>
    %103 = arith.subf %95, %102 : vector<8x32xf32>
    %104 = arith.mulf %103, %103 : vector<8x32xf32>
    %cst_47 = arith.constant dense<0.000000e+00> : vector<8xf32>
    %105 = vector.multi_reduction <add>, %104, %cst_47 [1] : vector<8x32xf32> to vector<8xf32>
    %106 = vector.shape_cast %105 : vector<8xf32> to vector<8x1xf32>
    %cst_48 = arith.constant 3.200000e+01 : f32
    %107 = vector.broadcast %cst_48 : f32 to vector<8x1xf32>
    %108 = arith.divf %106, %107 : vector<8x1xf32>
    %109 = vector.broadcast %101 : vector<8x1xf32> to vector<8x32xf32>
    %110 = arith.subf %95, %109 : vector<8x32xf32>
    %cst_49 = arith.constant 9.99999974E-6 : f32
    %111 = vector.broadcast %cst_49 : f32 to vector<8x1xf32>
    %112 = arith.addf %108, %111 : vector<8x1xf32>
    %113 = math.rsqrt %112 : vector<8x1xf32>
    %114 = vector.broadcast %113 : vector<8x1xf32> to vector<8x32xf32>
    %115 = arith.mulf %110, %114 : vector<8x32xf32>
    %116 = vector.broadcast %96 : vector<1x32xf32> to vector<8x32xf32>
    %117 = arith.mulf %115, %116 : vector<8x32xf32>
    %118 = vector.broadcast %97 : vector<1x32xf32> to vector<8x32xf32>
    %119 = arith.addf %117, %118 : vector<8x32xf32>
    %120 = vector.extract_strided_slice %0 {offsets = [6, 0], sizes = [1, 32], strides = [1, 1]} : vector<30x32xf32> to vector<1x32xf32>
    %c12 = arith.constant 12 : index
    %c0_50 = arith.constant 0 : index
    %c0_51 = arith.constant 0 : index
    %121 = vector.load %arg5[%c12, %c0_50, %c0_51] : memref<72x32x8xbf16, #tpu.memory_space<vmem>>, vector<12x32x8xbf16>
    %c12_52 = arith.constant 12 : index
    %c0_53 = arith.constant 0 : index
    %c0_54 = arith.constant 0 : index
    %122 = vector.load %arg6[%c12_52, %c0_53, %c0_54] : memref<72x1x8xf32, #tpu.memory_space<vmem>>, vector<12x1x8xf32>
    %123 = arith.truncf %119 : vector<8x32xf32> to vector<8x32xbf16>
    %124 = vector.shape_cast %123 : vector<8x32xbf16> to vector<1x8x32xbf16>
    %125 = vector.broadcast %124 : vector<1x8x32xbf16> to vector<12x8x32xbf16>
    %cst_55 = arith.constant dense<0.000000e+00> : vector<12x8x8xf32>
    %126 = tpu.matmul %125, %121, %cst_55 {dimension_numbers = #tpu.dot_dimension_numbers<[2], [1], [1], [2], [0, 0, 0, 1, 1, 2], [0], [0]>} : vector<12x8x32xbf16>, vector<12x32x8xbf16>, vector<12x8x8xf32> -> vector<12x8x8xf32>
    %127 = vector.broadcast %122 : vector<12x1x8xf32> to vector<12x8x8xf32>
    %128 = arith.addf %126, %127 : vector<12x8x8xf32>
    %129 = vector.extract_strided_slice %128 {offsets = [0, 0, 0], sizes = [4, 8, 8], strides = [1, 1, 1]} : vector<12x8x8xf32> to vector<4x8x8xf32>
    %130 = vector.extract_strided_slice %128 {offsets = [4, 0, 0], sizes = [4, 8, 8], strides = [1, 1, 1]} : vector<12x8x8xf32> to vector<4x8x8xf32>
    %131 = vector.extract_strided_slice %128 {offsets = [8, 0, 0], sizes = [4, 8, 8], strides = [1, 1, 1]} : vector<12x8x8xf32> to vector<4x8x8xf32>
    %c1 = arith.constant 1 : index
    %c0_56 = arith.constant 0 : index
    %c0_57 = arith.constant 0 : index
    %c0_58 = arith.constant 0 : index
    %132 = vector.load %arg7[%c1, %c0_56, %c0_57, %c0_58] : memref<6x4x8x32xbf16, #tpu.memory_space<vmem>>, vector<1x4x8x32xbf16>
    %133 = vector.shape_cast %132 : vector<1x4x8x32xbf16> to vector<4x8x32xbf16>
    %134 = arith.truncf %129 : vector<4x8x8xf32> to vector<4x8x8xbf16>
    %135 = arith.truncf %130 : vector<4x8x8xf32> to vector<4x8x8xbf16>
    %cst_59 = arith.constant dense<0.000000e+00> : vector<4x8x8xf32>
    %136 = tpu.matmul %134, %135, %cst_59 {dimension_numbers = #tpu.dot_dimension_numbers<[2], [2], [1], [1], [0, 0, 0, 1, 1, 1], [0], [0]>} : vector<4x8x8xbf16>, vector<4x8x8xbf16>, vector<4x8x8xf32> -> vector<4x8x8xf32>
    %137 = vector.shape_cast %2 : vector<1x8xf32> to vector<1x1x8xf32>
    %138 = vector.broadcast %137 : vector<1x1x8xf32> to vector<4x8x8xf32>
    %139 = arith.addf %136, %138 : vector<4x8x8xf32>
    %cst_60 = arith.constant dense<0xFF800000> : vector<4x8xf32>
    %140 = vector.multi_reduction <maximumf>, %139, %cst_60 [2] : vector<4x8x8xf32> to vector<4x8xf32>
    %141 = vector.shape_cast %140 : vector<4x8xf32> to vector<4x8x1xf32>
    %142 = vector.broadcast %141 : vector<4x8x1xf32> to vector<4x8x8xf32>
    %143 = arith.subf %139, %142 : vector<4x8x8xf32>
    %144 = math.exp %143 : vector<4x8x8xf32>
    %cst_61 = arith.constant dense<0.000000e+00> : vector<4x8xf32>
    %145 = vector.multi_reduction <add>, %144, %cst_61 [2] : vector<4x8x8xf32> to vector<4x8xf32>
    %146 = vector.shape_cast %145 : vector<4x8xf32> to vector<4x8x1xf32>
    %147 = tpu.reciprocal %146 {approx = true} : vector<4x8x1xf32> -> vector<4x8x1xf32>
    %148 = vector.broadcast %147 : vector<4x8x1xf32> to vector<4x8x8xf32>
    %149 = arith.mulf %144, %148 : vector<4x8x8xf32>
    %150 = arith.truncf %149 : vector<4x8x8xf32> to vector<4x8x8xbf16>
    %151 = arith.truncf %131 : vector<4x8x8xf32> to vector<4x8x8xbf16>
    %cst_62 = arith.constant dense<0.000000e+00> : vector<4x8x8xf32>
    %152 = tpu.matmul %150, %151, %cst_62 {dimension_numbers = #tpu.dot_dimension_numbers<[2], [1], [1], [2], [0, 0, 0, 1, 1, 2], [0], [0]>} : vector<4x8x8xbf16>, vector<4x8x8xbf16>, vector<4x8x8xf32> -> vector<4x8x8xf32>
    %153 = arith.truncf %152 : vector<4x8x8xf32> to vector<4x8x8xbf16>
    %cst_63 = arith.constant dense<0.000000e+00> : vector<4x8x32xf32>
    %154 = tpu.matmul %153, %133, %cst_63 {dimension_numbers = #tpu.dot_dimension_numbers<[2], [1], [1], [2], [0, 0, 0, 1, 1, 2], [0], [0]>} : vector<4x8x8xbf16>, vector<4x8x32xbf16>, vector<4x8x32xf32> -> vector<4x8x32xf32>
    %cst_64 = arith.constant dense<0.000000e+00> : vector<8x32xf32>
    %155 = vector.multi_reduction <add>, %154, %cst_64 [0] : vector<4x8x32xf32> to vector<8x32xf32>
    %156 = vector.broadcast %120 : vector<1x32xf32> to vector<8x32xf32>
    %157 = arith.addf %155, %156 : vector<8x32xf32>
    %158 = arith.addf %119, %157 : vector<8x32xf32>
    %159 = vector.extract_strided_slice %0 {offsets = [7, 0], sizes = [1, 32], strides = [1, 1]} : vector<30x32xf32> to vector<1x32xf32>
    %160 = vector.extract_strided_slice %0 {offsets = [8, 0], sizes = [1, 32], strides = [1, 1]} : vector<30x32xf32> to vector<1x32xf32>
    %cst_65 = arith.constant dense<0.000000e+00> : vector<8xf32>
    %161 = vector.multi_reduction <add>, %158, %cst_65 [1] : vector<8x32xf32> to vector<8xf32>
    %162 = vector.shape_cast %161 : vector<8xf32> to vector<8x1xf32>
    %cst_66 = arith.constant 3.200000e+01 : f32
    %163 = vector.broadcast %cst_66 : f32 to vector<8x1xf32>
    %164 = arith.divf %162, %163 : vector<8x1xf32>
    %165 = vector.broadcast %164 : vector<8x1xf32> to vector<8x32xf32>
    %166 = arith.subf %158, %165 : vector<8x32xf32>
    %167 = arith.mulf %166, %166 : vector<8x32xf32>
    %cst_67 = arith.constant dense<0.000000e+00> : vector<8xf32>
    %168 = vector.multi_reduction <add>, %167, %cst_67 [1] : vector<8x32xf32> to vector<8xf32>
    %169 = vector.shape_cast %168 : vector<8xf32> to vector<8x1xf32>
    %cst_68 = arith.constant 3.200000e+01 : f32
    %170 = vector.broadcast %cst_68 : f32 to vector<8x1xf32>
    %171 = arith.divf %169, %170 : vector<8x1xf32>
    %172 = vector.broadcast %164 : vector<8x1xf32> to vector<8x32xf32>
    %173 = arith.subf %158, %172 : vector<8x32xf32>
    %cst_69 = arith.constant 9.99999974E-6 : f32
    %174 = vector.broadcast %cst_69 : f32 to vector<8x1xf32>
    %175 = arith.addf %171, %174 : vector<8x1xf32>
    %176 = math.rsqrt %175 : vector<8x1xf32>
    %177 = vector.broadcast %176 : vector<8x1xf32> to vector<8x32xf32>
    %178 = arith.mulf %173, %177 : vector<8x32xf32>
    %179 = vector.broadcast %159 : vector<1x32xf32> to vector<8x32xf32>
    %180 = arith.mulf %178, %179 : vector<8x32xf32>
    %181 = vector.broadcast %160 : vector<1x32xf32> to vector<8x32xf32>
    %182 = arith.addf %180, %181 : vector<8x32xf32>
    %c1_70 = arith.constant 1 : index
    %c0_71 = arith.constant 0 : index
    %c0_72 = arith.constant 0 : index
    %183 = vector.load %arg8[%c1_70, %c0_71, %c0_72] : memref<4x32x64xbf16, #tpu.memory_space<vmem>>, vector<1x32x64xbf16>
    %184 = vector.shape_cast %183 : vector<1x32x64xbf16> to vector<32x64xbf16>
    %c1_73 = arith.constant 1 : index
    %c0_74 = arith.constant 0 : index
    %c0_75 = arith.constant 0 : index
    %185 = vector.load %arg9[%c1_73, %c0_74, %c0_75] : memref<4x1x64xf32, #tpu.memory_space<vmem>>, vector<1x1x64xf32>
    %186 = vector.shape_cast %185 : vector<1x1x64xf32> to vector<1x64xf32>
    %c1_76 = arith.constant 1 : index
    %c0_77 = arith.constant 0 : index
    %c0_78 = arith.constant 0 : index
    %187 = vector.load %arg10[%c1_76, %c0_77, %c0_78] : memref<4x64x32xbf16, #tpu.memory_space<vmem>>, vector<1x64x32xbf16>
    %188 = vector.shape_cast %187 : vector<1x64x32xbf16> to vector<64x32xbf16>
    %189 = vector.extract_strided_slice %0 {offsets = [9, 0], sizes = [1, 32], strides = [1, 1]} : vector<30x32xf32> to vector<1x32xf32>
    %190 = arith.truncf %182 : vector<8x32xf32> to vector<8x32xbf16>
    %cst_79 = arith.constant dense<0.000000e+00> : vector<8x64xf32>
    %191 = tpu.matmul %190, %184, %cst_79 {dimension_numbers = #tpu.dot_dimension_numbers<[1], [0], [0], [1], [0, 0, 1, 1], [], []>} : vector<8x32xbf16>, vector<32x64xbf16>, vector<8x64xf32> -> vector<8x64xf32>
    %192 = vector.broadcast %186 : vector<1x64xf32> to vector<8x64xf32>
    %193 = arith.addf %191, %192 : vector<8x64xf32>
    %cst_80 = arith.constant 0.000000e+00 : f32
    %194 = vector.broadcast %cst_80 : f32 to vector<8x64xf32>
    %195 = arith.maximumf %193, %194 : vector<8x64xf32>
    %196 = arith.truncf %195 : vector<8x64xf32> to vector<8x64xbf16>
    %cst_81 = arith.constant dense<0.000000e+00> : vector<8x32xf32>
    %197 = tpu.matmul %196, %188, %cst_81 {dimension_numbers = #tpu.dot_dimension_numbers<[1], [0], [0], [1], [0, 0, 1, 1], [], []>} : vector<8x64xbf16>, vector<64x32xbf16>, vector<8x32xf32> -> vector<8x32xf32>
    %198 = vector.broadcast %189 : vector<1x32xf32> to vector<8x32xf32>
    %199 = arith.addf %197, %198 : vector<8x32xf32>
    %200 = arith.addf %182, %199 : vector<8x32xf32>
    %201 = vector.extract_strided_slice %0 {offsets = [10, 0], sizes = [1, 32], strides = [1, 1]} : vector<30x32xf32> to vector<1x32xf32>
    %202 = vector.extract_strided_slice %0 {offsets = [11, 0], sizes = [1, 32], strides = [1, 1]} : vector<30x32xf32> to vector<1x32xf32>
    %cst_82 = arith.constant dense<0.000000e+00> : vector<8xf32>
    %203 = vector.multi_reduction <add>, %200, %cst_82 [1] : vector<8x32xf32> to vector<8xf32>
    %204 = vector.shape_cast %203 : vector<8xf32> to vector<8x1xf32>
    %cst_83 = arith.constant 3.200000e+01 : f32
    %205 = vector.broadcast %cst_83 : f32 to vector<8x1xf32>
    %206 = arith.divf %204, %205 : vector<8x1xf32>
    %207 = vector.broadcast %206 : vector<8x1xf32> to vector<8x32xf32>
    %208 = arith.subf %200, %207 : vector<8x32xf32>
    %209 = arith.mulf %208, %208 : vector<8x32xf32>
    %cst_84 = arith.constant dense<0.000000e+00> : vector<8xf32>
    %210 = vector.multi_reduction <add>, %209, %cst_84 [1] : vector<8x32xf32> to vector<8xf32>
    %211 = vector.shape_cast %210 : vector<8xf32> to vector<8x1xf32>
    %cst_85 = arith.constant 3.200000e+01 : f32
    %212 = vector.broadcast %cst_85 : f32 to vector<8x1xf32>
    %213 = arith.divf %211, %212 : vector<8x1xf32>
    %214 = vector.broadcast %206 : vector<8x1xf32> to vector<8x32xf32>
    %215 = arith.subf %200, %214 : vector<8x32xf32>
    %cst_86 = arith.constant 9.99999974E-6 : f32
    %216 = vector.broadcast %cst_86 : f32 to vector<8x1xf32>
    %217 = arith.addf %213, %216 : vector<8x1xf32>
    %218 = math.rsqrt %217 : vector<8x1xf32>
    %219 = vector.broadcast %218 : vector<8x1xf32> to vector<8x32xf32>
    %220 = arith.mulf %215, %219 : vector<8x32xf32>
    %221 = vector.broadcast %201 : vector<1x32xf32> to vector<8x32xf32>
    %222 = arith.mulf %220, %221 : vector<8x32xf32>
    %223 = vector.broadcast %202 : vector<1x32xf32> to vector<8x32xf32>
    %224 = arith.addf %222, %223 : vector<8x32xf32>
    %c0_87 = arith.constant 0 : index
    %c0_88 = arith.constant 0 : index
    %c0_89 = arith.constant 0 : index
    %225 = vector.load %arg2[%c0_87, %c0_88, %c0_89] : memref<1x8x32xf32, #tpu.memory_space<vmem>>, vector<1x8x32xf32>
    %226 = vector.shape_cast %225 : vector<1x8x32xf32> to vector<8x32xf32>
    %227 = vector.extract_strided_slice %0 {offsets = [12, 0], sizes = [1, 32], strides = [1, 1]} : vector<30x32xf32> to vector<1x32xf32>
    %c24 = arith.constant 24 : index
    %c0_90 = arith.constant 0 : index
    %c0_91 = arith.constant 0 : index
    %228 = vector.load %arg5[%c24, %c0_90, %c0_91] : memref<72x32x8xbf16, #tpu.memory_space<vmem>>, vector<12x32x8xbf16>
    %c24_92 = arith.constant 24 : index
    %c0_93 = arith.constant 0 : index
    %c0_94 = arith.constant 0 : index
    %229 = vector.load %arg6[%c24_92, %c0_93, %c0_94] : memref<72x1x8xf32, #tpu.memory_space<vmem>>, vector<12x1x8xf32>
    %230 = arith.truncf %226 : vector<8x32xf32> to vector<8x32xbf16>
    %231 = vector.shape_cast %230 : vector<8x32xbf16> to vector<1x8x32xbf16>
    %232 = vector.broadcast %231 : vector<1x8x32xbf16> to vector<12x8x32xbf16>
    %cst_95 = arith.constant dense<0.000000e+00> : vector<12x8x8xf32>
    %233 = tpu.matmul %232, %228, %cst_95 {dimension_numbers = #tpu.dot_dimension_numbers<[2], [1], [1], [2], [0, 0, 0, 1, 1, 2], [0], [0]>} : vector<12x8x32xbf16>, vector<12x32x8xbf16>, vector<12x8x8xf32> -> vector<12x8x8xf32>
    %234 = vector.broadcast %229 : vector<12x1x8xf32> to vector<12x8x8xf32>
    %235 = arith.addf %233, %234 : vector<12x8x8xf32>
    %236 = vector.extract_strided_slice %235 {offsets = [0, 0, 0], sizes = [4, 8, 8], strides = [1, 1, 1]} : vector<12x8x8xf32> to vector<4x8x8xf32>
    %237 = vector.extract_strided_slice %235 {offsets = [4, 0, 0], sizes = [4, 8, 8], strides = [1, 1, 1]} : vector<12x8x8xf32> to vector<4x8x8xf32>
    %238 = vector.extract_strided_slice %235 {offsets = [8, 0, 0], sizes = [4, 8, 8], strides = [1, 1, 1]} : vector<12x8x8xf32> to vector<4x8x8xf32>
    %c2 = arith.constant 2 : index
    %c0_96 = arith.constant 0 : index
    %c0_97 = arith.constant 0 : index
    %c0_98 = arith.constant 0 : index
    %239 = vector.load %arg7[%c2, %c0_96, %c0_97, %c0_98] : memref<6x4x8x32xbf16, #tpu.memory_space<vmem>>, vector<1x4x8x32xbf16>
    %240 = vector.shape_cast %239 : vector<1x4x8x32xbf16> to vector<4x8x32xbf16>
    %241 = arith.truncf %236 : vector<4x8x8xf32> to vector<4x8x8xbf16>
    %242 = arith.truncf %237 : vector<4x8x8xf32> to vector<4x8x8xbf16>
    %cst_99 = arith.constant dense<0.000000e+00> : vector<4x8x8xf32>
    %243 = tpu.matmul %241, %242, %cst_99 {dimension_numbers = #tpu.dot_dimension_numbers<[2], [2], [1], [1], [0, 0, 0, 1, 1, 1], [0], [0]>} : vector<4x8x8xbf16>, vector<4x8x8xbf16>, vector<4x8x8xf32> -> vector<4x8x8xf32>
    %244 = vector.shape_cast %12 : vector<8x8xf32> to vector<1x8x8xf32>
    %245 = vector.broadcast %244 : vector<1x8x8xf32> to vector<4x8x8xf32>
    %246 = arith.addf %243, %245 : vector<4x8x8xf32>
    %cst_100 = arith.constant dense<0xFF800000> : vector<4x8xf32>
    %247 = vector.multi_reduction <maximumf>, %246, %cst_100 [2] : vector<4x8x8xf32> to vector<4x8xf32>
    %248 = vector.shape_cast %247 : vector<4x8xf32> to vector<4x8x1xf32>
    %249 = vector.broadcast %248 : vector<4x8x1xf32> to vector<4x8x8xf32>
    %250 = arith.subf %246, %249 : vector<4x8x8xf32>
    %251 = math.exp %250 : vector<4x8x8xf32>
    %cst_101 = arith.constant dense<0.000000e+00> : vector<4x8xf32>
    %252 = vector.multi_reduction <add>, %251, %cst_101 [2] : vector<4x8x8xf32> to vector<4x8xf32>
    %253 = vector.shape_cast %252 : vector<4x8xf32> to vector<4x8x1xf32>
    %254 = tpu.reciprocal %253 {approx = true} : vector<4x8x1xf32> -> vector<4x8x1xf32>
    %255 = vector.broadcast %254 : vector<4x8x1xf32> to vector<4x8x8xf32>
    %256 = arith.mulf %251, %255 : vector<4x8x8xf32>
    %257 = arith.truncf %256 : vector<4x8x8xf32> to vector<4x8x8xbf16>
    %258 = arith.truncf %238 : vector<4x8x8xf32> to vector<4x8x8xbf16>
    %cst_102 = arith.constant dense<0.000000e+00> : vector<4x8x8xf32>
    %259 = tpu.matmul %257, %258, %cst_102 {dimension_numbers = #tpu.dot_dimension_numbers<[2], [1], [1], [2], [0, 0, 0, 1, 1, 2], [0], [0]>} : vector<4x8x8xbf16>, vector<4x8x8xbf16>, vector<4x8x8xf32> -> vector<4x8x8xf32>
    %260 = arith.truncf %259 : vector<4x8x8xf32> to vector<4x8x8xbf16>
    %cst_103 = arith.constant dense<0.000000e+00> : vector<4x8x32xf32>
    %261 = tpu.matmul %260, %240, %cst_103 {dimension_numbers = #tpu.dot_dimension_numbers<[2], [1], [1], [2], [0, 0, 0, 1, 1, 2], [0], [0]>} : vector<4x8x8xbf16>, vector<4x8x32xbf16>, vector<4x8x32xf32> -> vector<4x8x32xf32>
    %cst_104 = arith.constant dense<0.000000e+00> : vector<8x32xf32>
    %262 = vector.multi_reduction <add>, %261, %cst_104 [0] : vector<4x8x32xf32> to vector<8x32xf32>
    %263 = vector.broadcast %227 : vector<1x32xf32> to vector<8x32xf32>
    %264 = arith.addf %262, %263 : vector<8x32xf32>
    %265 = arith.addf %226, %264 : vector<8x32xf32>
    %266 = vector.extract_strided_slice %0 {offsets = [13, 0], sizes = [1, 32], strides = [1, 1]} : vector<30x32xf32> to vector<1x32xf32>
    %267 = vector.extract_strided_slice %0 {offsets = [14, 0], sizes = [1, 32], strides = [1, 1]} : vector<30x32xf32> to vector<1x32xf32>
    %cst_105 = arith.constant dense<0.000000e+00> : vector<8xf32>
    %268 = vector.multi_reduction <add>, %265, %cst_105 [1] : vector<8x32xf32> to vector<8xf32>
    %269 = vector.shape_cast %268 : vector<8xf32> to vector<8x1xf32>
    %cst_106 = arith.constant 3.200000e+01 : f32
    %270 = vector.broadcast %cst_106 : f32 to vector<8x1xf32>
    %271 = arith.divf %269, %270 : vector<8x1xf32>
    %272 = vector.broadcast %271 : vector<8x1xf32> to vector<8x32xf32>
    %273 = arith.subf %265, %272 : vector<8x32xf32>
    %274 = arith.mulf %273, %273 : vector<8x32xf32>
    %cst_107 = arith.constant dense<0.000000e+00> : vector<8xf32>
    %275 = vector.multi_reduction <add>, %274, %cst_107 [1] : vector<8x32xf32> to vector<8xf32>
    %276 = vector.shape_cast %275 : vector<8xf32> to vector<8x1xf32>
    %cst_108 = arith.constant 3.200000e+01 : f32
    %277 = vector.broadcast %cst_108 : f32 to vector<8x1xf32>
    %278 = arith.divf %276, %277 : vector<8x1xf32>
    %279 = vector.broadcast %271 : vector<8x1xf32> to vector<8x32xf32>
    %280 = arith.subf %265, %279 : vector<8x32xf32>
    %cst_109 = arith.constant 9.99999974E-6 : f32
    %281 = vector.broadcast %cst_109 : f32 to vector<8x1xf32>
    %282 = arith.addf %278, %281 : vector<8x1xf32>
    %283 = math.rsqrt %282 : vector<8x1xf32>
    %284 = vector.broadcast %283 : vector<8x1xf32> to vector<8x32xf32>
    %285 = arith.mulf %280, %284 : vector<8x32xf32>
    %286 = vector.broadcast %266 : vector<1x32xf32> to vector<8x32xf32>
    %287 = arith.mulf %285, %286 : vector<8x32xf32>
    %288 = vector.broadcast %267 : vector<1x32xf32> to vector<8x32xf32>
    %289 = arith.addf %287, %288 : vector<8x32xf32>
    %c48 = arith.constant 48 : index
    %c0_110 = arith.constant 0 : index
    %c0_111 = arith.constant 0 : index
    %290 = vector.load %arg5[%c48, %c0_110, %c0_111] : memref<72x32x8xbf16, #tpu.memory_space<vmem>>, vector<4x32x8xbf16>
    %c48_112 = arith.constant 48 : index
    %c0_113 = arith.constant 0 : index
    %c0_114 = arith.constant 0 : index
    %291 = vector.load %arg6[%c48_112, %c0_113, %c0_114] : memref<72x1x8xf32, #tpu.memory_space<vmem>>, vector<4x1x8xf32>
    %292 = arith.truncf %289 : vector<8x32xf32> to vector<8x32xbf16>
    %293 = vector.shape_cast %292 : vector<8x32xbf16> to vector<1x8x32xbf16>
    %294 = vector.broadcast %293 : vector<1x8x32xbf16> to vector<4x8x32xbf16>
    %cst_115 = arith.constant dense<0.000000e+00> : vector<4x8x8xf32>
    %295 = tpu.matmul %294, %290, %cst_115 {dimension_numbers = #tpu.dot_dimension_numbers<[2], [1], [1], [2], [0, 0, 0, 1, 1, 2], [0], [0]>} : vector<4x8x32xbf16>, vector<4x32x8xbf16>, vector<4x8x8xf32> -> vector<4x8x8xf32>
    %296 = vector.broadcast %291 : vector<4x1x8xf32> to vector<4x8x8xf32>
    %297 = arith.addf %295, %296 : vector<4x8x8xf32>
    %c52 = arith.constant 52 : index
    %c0_116 = arith.constant 0 : index
    %c0_117 = arith.constant 0 : index
    %298 = vector.load %arg5[%c52, %c0_116, %c0_117] : memref<72x32x8xbf16, #tpu.memory_space<vmem>>, vector<8x32x8xbf16>
    %c52_118 = arith.constant 52 : index
    %c0_119 = arith.constant 0 : index
    %c0_120 = arith.constant 0 : index
    %299 = vector.load %arg6[%c52_118, %c0_119, %c0_120] : memref<72x1x8xf32, #tpu.memory_space<vmem>>, vector<8x1x8xf32>
    %300 = arith.truncf %224 : vector<8x32xf32> to vector<8x32xbf16>
    %301 = vector.shape_cast %300 : vector<8x32xbf16> to vector<1x8x32xbf16>
    %302 = vector.broadcast %301 : vector<1x8x32xbf16> to vector<8x8x32xbf16>
    %cst_121 = arith.constant dense<0.000000e+00> : vector<8x8x8xf32>
    %303 = tpu.matmul %302, %298, %cst_121 {dimension_numbers = #tpu.dot_dimension_numbers<[2], [1], [1], [2], [0, 0, 0, 1, 1, 2], [0], [0]>} : vector<8x8x32xbf16>, vector<8x32x8xbf16>, vector<8x8x8xf32> -> vector<8x8x8xf32>
    %304 = vector.broadcast %299 : vector<8x1x8xf32> to vector<8x8x8xf32>
    %305 = arith.addf %303, %304 : vector<8x8x8xf32>
    %306 = vector.extract_strided_slice %305 {offsets = [0, 0, 0], sizes = [4, 8, 8], strides = [1, 1, 1]} : vector<8x8x8xf32> to vector<4x8x8xf32>
    %307 = vector.extract_strided_slice %305 {offsets = [4, 0, 0], sizes = [4, 8, 8], strides = [1, 1, 1]} : vector<8x8x8xf32> to vector<4x8x8xf32>
    %c4 = arith.constant 4 : index
    %c0_122 = arith.constant 0 : index
    %c0_123 = arith.constant 0 : index
    %c0_124 = arith.constant 0 : index
    %308 = vector.load %arg7[%c4, %c0_122, %c0_123, %c0_124] : memref<6x4x8x32xbf16, #tpu.memory_space<vmem>>, vector<1x4x8x32xbf16>
    %309 = vector.shape_cast %308 : vector<1x4x8x32xbf16> to vector<4x8x32xbf16>
    %310 = vector.extract_strided_slice %0 {offsets = [15, 0], sizes = [1, 32], strides = [1, 1]} : vector<30x32xf32> to vector<1x32xf32>
    %311 = arith.truncf %297 : vector<4x8x8xf32> to vector<4x8x8xbf16>
    %312 = arith.truncf %306 : vector<4x8x8xf32> to vector<4x8x8xbf16>
    %cst_125 = arith.constant dense<0.000000e+00> : vector<4x8x8xf32>
    %313 = tpu.matmul %311, %312, %cst_125 {dimension_numbers = #tpu.dot_dimension_numbers<[2], [2], [1], [1], [0, 0, 0, 1, 1, 1], [0], [0]>} : vector<4x8x8xbf16>, vector<4x8x8xbf16>, vector<4x8x8xf32> -> vector<4x8x8xf32>
    %314 = vector.shape_cast %2 : vector<1x8xf32> to vector<1x1x8xf32>
    %315 = vector.broadcast %314 : vector<1x1x8xf32> to vector<4x8x8xf32>
    %316 = arith.addf %313, %315 : vector<4x8x8xf32>
    %cst_126 = arith.constant dense<0xFF800000> : vector<4x8xf32>
    %317 = vector.multi_reduction <maximumf>, %316, %cst_126 [2] : vector<4x8x8xf32> to vector<4x8xf32>
    %318 = vector.shape_cast %317 : vector<4x8xf32> to vector<4x8x1xf32>
    %319 = vector.broadcast %318 : vector<4x8x1xf32> to vector<4x8x8xf32>
    %320 = arith.subf %316, %319 : vector<4x8x8xf32>
    %321 = math.exp %320 : vector<4x8x8xf32>
    %cst_127 = arith.constant dense<0.000000e+00> : vector<4x8xf32>
    %322 = vector.multi_reduction <add>, %321, %cst_127 [2] : vector<4x8x8xf32> to vector<4x8xf32>
    %323 = vector.shape_cast %322 : vector<4x8xf32> to vector<4x8x1xf32>
    %324 = tpu.reciprocal %323 {approx = true} : vector<4x8x1xf32> -> vector<4x8x1xf32>
    %325 = vector.broadcast %324 : vector<4x8x1xf32> to vector<4x8x8xf32>
    %326 = arith.mulf %321, %325 : vector<4x8x8xf32>
    %327 = arith.truncf %326 : vector<4x8x8xf32> to vector<4x8x8xbf16>
    %328 = arith.truncf %307 : vector<4x8x8xf32> to vector<4x8x8xbf16>
    %cst_128 = arith.constant dense<0.000000e+00> : vector<4x8x8xf32>
    %329 = tpu.matmul %327, %328, %cst_128 {dimension_numbers = #tpu.dot_dimension_numbers<[2], [1], [1], [2], [0, 0, 0, 1, 1, 2], [0], [0]>} : vector<4x8x8xbf16>, vector<4x8x8xbf16>, vector<4x8x8xf32> -> vector<4x8x8xf32>
    %330 = arith.truncf %329 : vector<4x8x8xf32> to vector<4x8x8xbf16>
    %cst_129 = arith.constant dense<0.000000e+00> : vector<4x8x32xf32>
    %331 = tpu.matmul %330, %309, %cst_129 {dimension_numbers = #tpu.dot_dimension_numbers<[2], [1], [1], [2], [0, 0, 0, 1, 1, 2], [0], [0]>} : vector<4x8x8xbf16>, vector<4x8x32xbf16>, vector<4x8x32xf32> -> vector<4x8x32xf32>
    %cst_130 = arith.constant dense<0.000000e+00> : vector<8x32xf32>
    %332 = vector.multi_reduction <add>, %331, %cst_130 [0] : vector<4x8x32xf32> to vector<8x32xf32>
    %333 = vector.broadcast %310 : vector<1x32xf32> to vector<8x32xf32>
    %334 = arith.addf %332, %333 : vector<8x32xf32>
    %335 = arith.addf %289, %334 : vector<8x32xf32>
    %336 = vector.extract_strided_slice %0 {offsets = [16, 0], sizes = [1, 32], strides = [1, 1]} : vector<30x32xf32> to vector<1x32xf32>
    %337 = vector.extract_strided_slice %0 {offsets = [17, 0], sizes = [1, 32], strides = [1, 1]} : vector<30x32xf32> to vector<1x32xf32>
    %cst_131 = arith.constant dense<0.000000e+00> : vector<8xf32>
    %338 = vector.multi_reduction <add>, %335, %cst_131 [1] : vector<8x32xf32> to vector<8xf32>
    %339 = vector.shape_cast %338 : vector<8xf32> to vector<8x1xf32>
    %cst_132 = arith.constant 3.200000e+01 : f32
    %340 = vector.broadcast %cst_132 : f32 to vector<8x1xf32>
    %341 = arith.divf %339, %340 : vector<8x1xf32>
    %342 = vector.broadcast %341 : vector<8x1xf32> to vector<8x32xf32>
    %343 = arith.subf %335, %342 : vector<8x32xf32>
    %344 = arith.mulf %343, %343 : vector<8x32xf32>
    %cst_133 = arith.constant dense<0.000000e+00> : vector<8xf32>
    %345 = vector.multi_reduction <add>, %344, %cst_133 [1] : vector<8x32xf32> to vector<8xf32>
    %346 = vector.shape_cast %345 : vector<8xf32> to vector<8x1xf32>
    %cst_134 = arith.constant 3.200000e+01 : f32
    %347 = vector.broadcast %cst_134 : f32 to vector<8x1xf32>
    %348 = arith.divf %346, %347 : vector<8x1xf32>
    %349 = vector.broadcast %341 : vector<8x1xf32> to vector<8x32xf32>
    %350 = arith.subf %335, %349 : vector<8x32xf32>
    %cst_135 = arith.constant 9.99999974E-6 : f32
    %351 = vector.broadcast %cst_135 : f32 to vector<8x1xf32>
    %352 = arith.addf %348, %351 : vector<8x1xf32>
    %353 = math.rsqrt %352 : vector<8x1xf32>
    %354 = vector.broadcast %353 : vector<8x1xf32> to vector<8x32xf32>
    %355 = arith.mulf %350, %354 : vector<8x32xf32>
    %356 = vector.broadcast %336 : vector<1x32xf32> to vector<8x32xf32>
    %357 = arith.mulf %355, %356 : vector<8x32xf32>
    %358 = vector.broadcast %337 : vector<1x32xf32> to vector<8x32xf32>
    %359 = arith.addf %357, %358 : vector<8x32xf32>
    %c2_136 = arith.constant 2 : index
    %c0_137 = arith.constant 0 : index
    %c0_138 = arith.constant 0 : index
    %360 = vector.load %arg8[%c2_136, %c0_137, %c0_138] : memref<4x32x64xbf16, #tpu.memory_space<vmem>>, vector<1x32x64xbf16>
    %361 = vector.shape_cast %360 : vector<1x32x64xbf16> to vector<32x64xbf16>
    %c2_139 = arith.constant 2 : index
    %c0_140 = arith.constant 0 : index
    %c0_141 = arith.constant 0 : index
    %362 = vector.load %arg9[%c2_139, %c0_140, %c0_141] : memref<4x1x64xf32, #tpu.memory_space<vmem>>, vector<1x1x64xf32>
    %363 = vector.shape_cast %362 : vector<1x1x64xf32> to vector<1x64xf32>
    %c2_142 = arith.constant 2 : index
    %c0_143 = arith.constant 0 : index
    %c0_144 = arith.constant 0 : index
    %364 = vector.load %arg10[%c2_142, %c0_143, %c0_144] : memref<4x64x32xbf16, #tpu.memory_space<vmem>>, vector<1x64x32xbf16>
    %365 = vector.shape_cast %364 : vector<1x64x32xbf16> to vector<64x32xbf16>
    %366 = vector.extract_strided_slice %0 {offsets = [18, 0], sizes = [1, 32], strides = [1, 1]} : vector<30x32xf32> to vector<1x32xf32>
    %367 = arith.truncf %359 : vector<8x32xf32> to vector<8x32xbf16>
    %cst_145 = arith.constant dense<0.000000e+00> : vector<8x64xf32>
    %368 = tpu.matmul %367, %361, %cst_145 {dimension_numbers = #tpu.dot_dimension_numbers<[1], [0], [0], [1], [0, 0, 1, 1], [], []>} : vector<8x32xbf16>, vector<32x64xbf16>, vector<8x64xf32> -> vector<8x64xf32>
    %369 = vector.broadcast %363 : vector<1x64xf32> to vector<8x64xf32>
    %370 = arith.addf %368, %369 : vector<8x64xf32>
    %cst_146 = arith.constant 0.000000e+00 : f32
    %371 = vector.broadcast %cst_146 : f32 to vector<8x64xf32>
    %372 = arith.maximumf %370, %371 : vector<8x64xf32>
    %373 = arith.truncf %372 : vector<8x64xf32> to vector<8x64xbf16>
    %cst_147 = arith.constant dense<0.000000e+00> : vector<8x32xf32>
    %374 = tpu.matmul %373, %365, %cst_147 {dimension_numbers = #tpu.dot_dimension_numbers<[1], [0], [0], [1], [0, 0, 1, 1], [], []>} : vector<8x64xbf16>, vector<64x32xbf16>, vector<8x32xf32> -> vector<8x32xf32>
    %375 = vector.broadcast %366 : vector<1x32xf32> to vector<8x32xf32>
    %376 = arith.addf %374, %375 : vector<8x32xf32>
    %377 = arith.addf %359, %376 : vector<8x32xf32>
    %378 = vector.extract_strided_slice %0 {offsets = [19, 0], sizes = [1, 32], strides = [1, 1]} : vector<30x32xf32> to vector<1x32xf32>
    %379 = vector.extract_strided_slice %0 {offsets = [20, 0], sizes = [1, 32], strides = [1, 1]} : vector<30x32xf32> to vector<1x32xf32>
    %cst_148 = arith.constant dense<0.000000e+00> : vector<8xf32>
    %380 = vector.multi_reduction <add>, %377, %cst_148 [1] : vector<8x32xf32> to vector<8xf32>
    %381 = vector.shape_cast %380 : vector<8xf32> to vector<8x1xf32>
    %cst_149 = arith.constant 3.200000e+01 : f32
    %382 = vector.broadcast %cst_149 : f32 to vector<8x1xf32>
    %383 = arith.divf %381, %382 : vector<8x1xf32>
    %384 = vector.broadcast %383 : vector<8x1xf32> to vector<8x32xf32>
    %385 = arith.subf %377, %384 : vector<8x32xf32>
    %386 = arith.mulf %385, %385 : vector<8x32xf32>
    %cst_150 = arith.constant dense<0.000000e+00> : vector<8xf32>
    %387 = vector.multi_reduction <add>, %386, %cst_150 [1] : vector<8x32xf32> to vector<8xf32>
    %388 = vector.shape_cast %387 : vector<8xf32> to vector<8x1xf32>
    %cst_151 = arith.constant 3.200000e+01 : f32
    %389 = vector.broadcast %cst_151 : f32 to vector<8x1xf32>
    %390 = arith.divf %388, %389 : vector<8x1xf32>
    %391 = vector.broadcast %383 : vector<8x1xf32> to vector<8x32xf32>
    %392 = arith.subf %377, %391 : vector<8x32xf32>
    %cst_152 = arith.constant 9.99999974E-6 : f32
    %393 = vector.broadcast %cst_152 : f32 to vector<8x1xf32>
    %394 = arith.addf %390, %393 : vector<8x1xf32>
    %395 = math.rsqrt %394 : vector<8x1xf32>
    %396 = vector.broadcast %395 : vector<8x1xf32> to vector<8x32xf32>
    %397 = arith.mulf %392, %396 : vector<8x32xf32>
    %398 = vector.broadcast %378 : vector<1x32xf32> to vector<8x32xf32>
    %399 = arith.mulf %397, %398 : vector<8x32xf32>
    %400 = vector.broadcast %379 : vector<1x32xf32> to vector<8x32xf32>
    %401 = arith.addf %399, %400 : vector<8x32xf32>
    %402 = vector.extract_strided_slice %0 {offsets = [21, 0], sizes = [1, 32], strides = [1, 1]} : vector<30x32xf32> to vector<1x32xf32>
    %c36 = arith.constant 36 : index
    %c0_153 = arith.constant 0 : index
    %c0_154 = arith.constant 0 : index
    %403 = vector.load %arg5[%c36, %c0_153, %c0_154] : memref<72x32x8xbf16, #tpu.memory_space<vmem>>, vector<12x32x8xbf16>
    %c36_155 = arith.constant 36 : index
    %c0_156 = arith.constant 0 : index
    %c0_157 = arith.constant 0 : index
    %404 = vector.load %arg6[%c36_155, %c0_156, %c0_157] : memref<72x1x8xf32, #tpu.memory_space<vmem>>, vector<12x1x8xf32>
    %405 = arith.truncf %401 : vector<8x32xf32> to vector<8x32xbf16>
    %406 = vector.shape_cast %405 : vector<8x32xbf16> to vector<1x8x32xbf16>
    %407 = vector.broadcast %406 : vector<1x8x32xbf16> to vector<12x8x32xbf16>
    %cst_158 = arith.constant dense<0.000000e+00> : vector<12x8x8xf32>
    %408 = tpu.matmul %407, %403, %cst_158 {dimension_numbers = #tpu.dot_dimension_numbers<[2], [1], [1], [2], [0, 0, 0, 1, 1, 2], [0], [0]>} : vector<12x8x32xbf16>, vector<12x32x8xbf16>, vector<12x8x8xf32> -> vector<12x8x8xf32>
    %409 = vector.broadcast %404 : vector<12x1x8xf32> to vector<12x8x8xf32>
    %410 = arith.addf %408, %409 : vector<12x8x8xf32>
    %411 = vector.extract_strided_slice %410 {offsets = [0, 0, 0], sizes = [4, 8, 8], strides = [1, 1, 1]} : vector<12x8x8xf32> to vector<4x8x8xf32>
    %412 = vector.extract_strided_slice %410 {offsets = [4, 0, 0], sizes = [4, 8, 8], strides = [1, 1, 1]} : vector<12x8x8xf32> to vector<4x8x8xf32>
    %413 = vector.extract_strided_slice %410 {offsets = [8, 0, 0], sizes = [4, 8, 8], strides = [1, 1, 1]} : vector<12x8x8xf32> to vector<4x8x8xf32>
    %c3 = arith.constant 3 : index
    %c0_159 = arith.constant 0 : index
    %c0_160 = arith.constant 0 : index
    %c0_161 = arith.constant 0 : index
    %414 = vector.load %arg7[%c3, %c0_159, %c0_160, %c0_161] : memref<6x4x8x32xbf16, #tpu.memory_space<vmem>>, vector<1x4x8x32xbf16>
    %415 = vector.shape_cast %414 : vector<1x4x8x32xbf16> to vector<4x8x32xbf16>
    %416 = arith.truncf %411 : vector<4x8x8xf32> to vector<4x8x8xbf16>
    %417 = arith.truncf %412 : vector<4x8x8xf32> to vector<4x8x8xbf16>
    %cst_162 = arith.constant dense<0.000000e+00> : vector<4x8x8xf32>
    %418 = tpu.matmul %416, %417, %cst_162 {dimension_numbers = #tpu.dot_dimension_numbers<[2], [2], [1], [1], [0, 0, 0, 1, 1, 1], [0], [0]>} : vector<4x8x8xbf16>, vector<4x8x8xbf16>, vector<4x8x8xf32> -> vector<4x8x8xf32>
    %419 = vector.shape_cast %12 : vector<8x8xf32> to vector<1x8x8xf32>
    %420 = vector.broadcast %419 : vector<1x8x8xf32> to vector<4x8x8xf32>
    %421 = arith.addf %418, %420 : vector<4x8x8xf32>
    %cst_163 = arith.constant dense<0xFF800000> : vector<4x8xf32>
    %422 = vector.multi_reduction <maximumf>, %421, %cst_163 [2] : vector<4x8x8xf32> to vector<4x8xf32>
    %423 = vector.shape_cast %422 : vector<4x8xf32> to vector<4x8x1xf32>
    %424 = vector.broadcast %423 : vector<4x8x1xf32> to vector<4x8x8xf32>
    %425 = arith.subf %421, %424 : vector<4x8x8xf32>
    %426 = math.exp %425 : vector<4x8x8xf32>
    %cst_164 = arith.constant dense<0.000000e+00> : vector<4x8xf32>
    %427 = vector.multi_reduction <add>, %426, %cst_164 [2] : vector<4x8x8xf32> to vector<4x8xf32>
    %428 = vector.shape_cast %427 : vector<4x8xf32> to vector<4x8x1xf32>
    %429 = tpu.reciprocal %428 {approx = true} : vector<4x8x1xf32> -> vector<4x8x1xf32>
    %430 = vector.broadcast %429 : vector<4x8x1xf32> to vector<4x8x8xf32>
    %431 = arith.mulf %426, %430 : vector<4x8x8xf32>
    %432 = arith.truncf %431 : vector<4x8x8xf32> to vector<4x8x8xbf16>
    %433 = arith.truncf %413 : vector<4x8x8xf32> to vector<4x8x8xbf16>
    %cst_165 = arith.constant dense<0.000000e+00> : vector<4x8x8xf32>
    %434 = tpu.matmul %432, %433, %cst_165 {dimension_numbers = #tpu.dot_dimension_numbers<[2], [1], [1], [2], [0, 0, 0, 1, 1, 2], [0], [0]>} : vector<4x8x8xbf16>, vector<4x8x8xbf16>, vector<4x8x8xf32> -> vector<4x8x8xf32>
    %435 = arith.truncf %434 : vector<4x8x8xf32> to vector<4x8x8xbf16>
    %cst_166 = arith.constant dense<0.000000e+00> : vector<4x8x32xf32>
    %436 = tpu.matmul %435, %415, %cst_166 {dimension_numbers = #tpu.dot_dimension_numbers<[2], [1], [1], [2], [0, 0, 0, 1, 1, 2], [0], [0]>} : vector<4x8x8xbf16>, vector<4x8x32xbf16>, vector<4x8x32xf32> -> vector<4x8x32xf32>
    %cst_167 = arith.constant dense<0.000000e+00> : vector<8x32xf32>
    %437 = vector.multi_reduction <add>, %436, %cst_167 [0] : vector<4x8x32xf32> to vector<8x32xf32>
    %438 = vector.broadcast %402 : vector<1x32xf32> to vector<8x32xf32>
    %439 = arith.addf %437, %438 : vector<8x32xf32>
    %440 = arith.addf %401, %439 : vector<8x32xf32>
    %441 = vector.extract_strided_slice %0 {offsets = [22, 0], sizes = [1, 32], strides = [1, 1]} : vector<30x32xf32> to vector<1x32xf32>
    %442 = vector.extract_strided_slice %0 {offsets = [23, 0], sizes = [1, 32], strides = [1, 1]} : vector<30x32xf32> to vector<1x32xf32>
    %cst_168 = arith.constant dense<0.000000e+00> : vector<8xf32>
    %443 = vector.multi_reduction <add>, %440, %cst_168 [1] : vector<8x32xf32> to vector<8xf32>
    %444 = vector.shape_cast %443 : vector<8xf32> to vector<8x1xf32>
    %cst_169 = arith.constant 3.200000e+01 : f32
    %445 = vector.broadcast %cst_169 : f32 to vector<8x1xf32>
    %446 = arith.divf %444, %445 : vector<8x1xf32>
    %447 = vector.broadcast %446 : vector<8x1xf32> to vector<8x32xf32>
    %448 = arith.subf %440, %447 : vector<8x32xf32>
    %449 = arith.mulf %448, %448 : vector<8x32xf32>
    %cst_170 = arith.constant dense<0.000000e+00> : vector<8xf32>
    %450 = vector.multi_reduction <add>, %449, %cst_170 [1] : vector<8x32xf32> to vector<8xf32>
    %451 = vector.shape_cast %450 : vector<8xf32> to vector<8x1xf32>
    %cst_171 = arith.constant 3.200000e+01 : f32
    %452 = vector.broadcast %cst_171 : f32 to vector<8x1xf32>
    %453 = arith.divf %451, %452 : vector<8x1xf32>
    %454 = vector.broadcast %446 : vector<8x1xf32> to vector<8x32xf32>
    %455 = arith.subf %440, %454 : vector<8x32xf32>
    %cst_172 = arith.constant 9.99999974E-6 : f32
    %456 = vector.broadcast %cst_172 : f32 to vector<8x1xf32>
    %457 = arith.addf %453, %456 : vector<8x1xf32>
    %458 = math.rsqrt %457 : vector<8x1xf32>
    %459 = vector.broadcast %458 : vector<8x1xf32> to vector<8x32xf32>
    %460 = arith.mulf %455, %459 : vector<8x32xf32>
    %461 = vector.broadcast %441 : vector<1x32xf32> to vector<8x32xf32>
    %462 = arith.mulf %460, %461 : vector<8x32xf32>
    %463 = vector.broadcast %442 : vector<1x32xf32> to vector<8x32xf32>
    %464 = arith.addf %462, %463 : vector<8x32xf32>
    %c60 = arith.constant 60 : index
    %c0_173 = arith.constant 0 : index
    %c0_174 = arith.constant 0 : index
    %465 = vector.load %arg5[%c60, %c0_173, %c0_174] : memref<72x32x8xbf16, #tpu.memory_space<vmem>>, vector<4x32x8xbf16>
    %c60_175 = arith.constant 60 : index
    %c0_176 = arith.constant 0 : index
    %c0_177 = arith.constant 0 : index
    %466 = vector.load %arg6[%c60_175, %c0_176, %c0_177] : memref<72x1x8xf32, #tpu.memory_space<vmem>>, vector<4x1x8xf32>
    %467 = arith.truncf %464 : vector<8x32xf32> to vector<8x32xbf16>
    %468 = vector.shape_cast %467 : vector<8x32xbf16> to vector<1x8x32xbf16>
    %469 = vector.broadcast %468 : vector<1x8x32xbf16> to vector<4x8x32xbf16>
    %cst_178 = arith.constant dense<0.000000e+00> : vector<4x8x8xf32>
    %470 = tpu.matmul %469, %465, %cst_178 {dimension_numbers = #tpu.dot_dimension_numbers<[2], [1], [1], [2], [0, 0, 0, 1, 1, 2], [0], [0]>} : vector<4x8x32xbf16>, vector<4x32x8xbf16>, vector<4x8x8xf32> -> vector<4x8x8xf32>
    %471 = vector.broadcast %466 : vector<4x1x8xf32> to vector<4x8x8xf32>
    %472 = arith.addf %470, %471 : vector<4x8x8xf32>
    %c64 = arith.constant 64 : index
    %c0_179 = arith.constant 0 : index
    %c0_180 = arith.constant 0 : index
    %473 = vector.load %arg5[%c64, %c0_179, %c0_180] : memref<72x32x8xbf16, #tpu.memory_space<vmem>>, vector<8x32x8xbf16>
    %c64_181 = arith.constant 64 : index
    %c0_182 = arith.constant 0 : index
    %c0_183 = arith.constant 0 : index
    %474 = vector.load %arg6[%c64_181, %c0_182, %c0_183] : memref<72x1x8xf32, #tpu.memory_space<vmem>>, vector<8x1x8xf32>
    %475 = arith.truncf %224 : vector<8x32xf32> to vector<8x32xbf16>
    %476 = vector.shape_cast %475 : vector<8x32xbf16> to vector<1x8x32xbf16>
    %477 = vector.broadcast %476 : vector<1x8x32xbf16> to vector<8x8x32xbf16>
    %cst_184 = arith.constant dense<0.000000e+00> : vector<8x8x8xf32>
    %478 = tpu.matmul %477, %473, %cst_184 {dimension_numbers = #tpu.dot_dimension_numbers<[2], [1], [1], [2], [0, 0, 0, 1, 1, 2], [0], [0]>} : vector<8x8x32xbf16>, vector<8x32x8xbf16>, vector<8x8x8xf32> -> vector<8x8x8xf32>
    %479 = vector.broadcast %474 : vector<8x1x8xf32> to vector<8x8x8xf32>
    %480 = arith.addf %478, %479 : vector<8x8x8xf32>
    %481 = vector.extract_strided_slice %480 {offsets = [0, 0, 0], sizes = [4, 8, 8], strides = [1, 1, 1]} : vector<8x8x8xf32> to vector<4x8x8xf32>
    %482 = vector.extract_strided_slice %480 {offsets = [4, 0, 0], sizes = [4, 8, 8], strides = [1, 1, 1]} : vector<8x8x8xf32> to vector<4x8x8xf32>
    %c5 = arith.constant 5 : index
    %c0_185 = arith.constant 0 : index
    %c0_186 = arith.constant 0 : index
    %c0_187 = arith.constant 0 : index
    %483 = vector.load %arg7[%c5, %c0_185, %c0_186, %c0_187] : memref<6x4x8x32xbf16, #tpu.memory_space<vmem>>, vector<1x4x8x32xbf16>
    %484 = vector.shape_cast %483 : vector<1x4x8x32xbf16> to vector<4x8x32xbf16>
    %485 = vector.extract_strided_slice %0 {offsets = [24, 0], sizes = [1, 32], strides = [1, 1]} : vector<30x32xf32> to vector<1x32xf32>
    %486 = arith.truncf %472 : vector<4x8x8xf32> to vector<4x8x8xbf16>
    %487 = arith.truncf %481 : vector<4x8x8xf32> to vector<4x8x8xbf16>
    %cst_188 = arith.constant dense<0.000000e+00> : vector<4x8x8xf32>
    %488 = tpu.matmul %486, %487, %cst_188 {dimension_numbers = #tpu.dot_dimension_numbers<[2], [2], [1], [1], [0, 0, 0, 1, 1, 1], [0], [0]>} : vector<4x8x8xbf16>, vector<4x8x8xbf16>, vector<4x8x8xf32> -> vector<4x8x8xf32>
    %489 = vector.shape_cast %2 : vector<1x8xf32> to vector<1x1x8xf32>
    %490 = vector.broadcast %489 : vector<1x1x8xf32> to vector<4x8x8xf32>
    %491 = arith.addf %488, %490 : vector<4x8x8xf32>
    %cst_189 = arith.constant dense<0xFF800000> : vector<4x8xf32>
    %492 = vector.multi_reduction <maximumf>, %491, %cst_189 [2] : vector<4x8x8xf32> to vector<4x8xf32>
    %493 = vector.shape_cast %492 : vector<4x8xf32> to vector<4x8x1xf32>
    %494 = vector.broadcast %493 : vector<4x8x1xf32> to vector<4x8x8xf32>
    %495 = arith.subf %491, %494 : vector<4x8x8xf32>
    %496 = math.exp %495 : vector<4x8x8xf32>
    %cst_190 = arith.constant dense<0.000000e+00> : vector<4x8xf32>
    %497 = vector.multi_reduction <add>, %496, %cst_190 [2] : vector<4x8x8xf32> to vector<4x8xf32>
    %498 = vector.shape_cast %497 : vector<4x8xf32> to vector<4x8x1xf32>
    %499 = tpu.reciprocal %498 {approx = true} : vector<4x8x1xf32> -> vector<4x8x1xf32>
    %500 = vector.broadcast %499 : vector<4x8x1xf32> to vector<4x8x8xf32>
    %501 = arith.mulf %496, %500 : vector<4x8x8xf32>
    %502 = arith.truncf %501 : vector<4x8x8xf32> to vector<4x8x8xbf16>
    %503 = arith.truncf %482 : vector<4x8x8xf32> to vector<4x8x8xbf16>
    %cst_191 = arith.constant dense<0.000000e+00> : vector<4x8x8xf32>
    %504 = tpu.matmul %502, %503, %cst_191 {dimension_numbers = #tpu.dot_dimension_numbers<[2], [1], [1], [2], [0, 0, 0, 1, 1, 2], [0], [0]>} : vector<4x8x8xbf16>, vector<4x8x8xbf16>, vector<4x8x8xf32> -> vector<4x8x8xf32>
    %505 = arith.truncf %504 : vector<4x8x8xf32> to vector<4x8x8xbf16>
    %cst_192 = arith.constant dense<0.000000e+00> : vector<4x8x32xf32>
    %506 = tpu.matmul %505, %484, %cst_192 {dimension_numbers = #tpu.dot_dimension_numbers<[2], [1], [1], [2], [0, 0, 0, 1, 1, 2], [0], [0]>} : vector<4x8x8xbf16>, vector<4x8x32xbf16>, vector<4x8x32xf32> -> vector<4x8x32xf32>
    %cst_193 = arith.constant dense<0.000000e+00> : vector<8x32xf32>
    %507 = vector.multi_reduction <add>, %506, %cst_193 [0] : vector<4x8x32xf32> to vector<8x32xf32>
    %508 = vector.broadcast %485 : vector<1x32xf32> to vector<8x32xf32>
    %509 = arith.addf %507, %508 : vector<8x32xf32>
    %510 = arith.addf %464, %509 : vector<8x32xf32>
    %511 = vector.extract_strided_slice %0 {offsets = [25, 0], sizes = [1, 32], strides = [1, 1]} : vector<30x32xf32> to vector<1x32xf32>
    %512 = vector.extract_strided_slice %0 {offsets = [26, 0], sizes = [1, 32], strides = [1, 1]} : vector<30x32xf32> to vector<1x32xf32>
    %cst_194 = arith.constant dense<0.000000e+00> : vector<8xf32>
    %513 = vector.multi_reduction <add>, %510, %cst_194 [1] : vector<8x32xf32> to vector<8xf32>
    %514 = vector.shape_cast %513 : vector<8xf32> to vector<8x1xf32>
    %cst_195 = arith.constant 3.200000e+01 : f32
    %515 = vector.broadcast %cst_195 : f32 to vector<8x1xf32>
    %516 = arith.divf %514, %515 : vector<8x1xf32>
    %517 = vector.broadcast %516 : vector<8x1xf32> to vector<8x32xf32>
    %518 = arith.subf %510, %517 : vector<8x32xf32>
    %519 = arith.mulf %518, %518 : vector<8x32xf32>
    %cst_196 = arith.constant dense<0.000000e+00> : vector<8xf32>
    %520 = vector.multi_reduction <add>, %519, %cst_196 [1] : vector<8x32xf32> to vector<8xf32>
    %521 = vector.shape_cast %520 : vector<8xf32> to vector<8x1xf32>
    %cst_197 = arith.constant 3.200000e+01 : f32
    %522 = vector.broadcast %cst_197 : f32 to vector<8x1xf32>
    %523 = arith.divf %521, %522 : vector<8x1xf32>
    %524 = vector.broadcast %516 : vector<8x1xf32> to vector<8x32xf32>
    %525 = arith.subf %510, %524 : vector<8x32xf32>
    %cst_198 = arith.constant 9.99999974E-6 : f32
    %526 = vector.broadcast %cst_198 : f32 to vector<8x1xf32>
    %527 = arith.addf %523, %526 : vector<8x1xf32>
    %528 = math.rsqrt %527 : vector<8x1xf32>
    %529 = vector.broadcast %528 : vector<8x1xf32> to vector<8x32xf32>
    %530 = arith.mulf %525, %529 : vector<8x32xf32>
    %531 = vector.broadcast %511 : vector<1x32xf32> to vector<8x32xf32>
    %532 = arith.mulf %530, %531 : vector<8x32xf32>
    %533 = vector.broadcast %512 : vector<1x32xf32> to vector<8x32xf32>
    %534 = arith.addf %532, %533 : vector<8x32xf32>
    %c3_199 = arith.constant 3 : index
    %c0_200 = arith.constant 0 : index
    %c0_201 = arith.constant 0 : index
    %535 = vector.load %arg8[%c3_199, %c0_200, %c0_201] : memref<4x32x64xbf16, #tpu.memory_space<vmem>>, vector<1x32x64xbf16>
    %536 = vector.shape_cast %535 : vector<1x32x64xbf16> to vector<32x64xbf16>
    %c3_202 = arith.constant 3 : index
    %c0_203 = arith.constant 0 : index
    %c0_204 = arith.constant 0 : index
    %537 = vector.load %arg9[%c3_202, %c0_203, %c0_204] : memref<4x1x64xf32, #tpu.memory_space<vmem>>, vector<1x1x64xf32>
    %538 = vector.shape_cast %537 : vector<1x1x64xf32> to vector<1x64xf32>
    %c3_205 = arith.constant 3 : index
    %c0_206 = arith.constant 0 : index
    %c0_207 = arith.constant 0 : index
    %539 = vector.load %arg10[%c3_205, %c0_206, %c0_207] : memref<4x64x32xbf16, #tpu.memory_space<vmem>>, vector<1x64x32xbf16>
    %540 = vector.shape_cast %539 : vector<1x64x32xbf16> to vector<64x32xbf16>
    %541 = vector.extract_strided_slice %0 {offsets = [27, 0], sizes = [1, 32], strides = [1, 1]} : vector<30x32xf32> to vector<1x32xf32>
    %542 = arith.truncf %534 : vector<8x32xf32> to vector<8x32xbf16>
    %cst_208 = arith.constant dense<0.000000e+00> : vector<8x64xf32>
    %543 = tpu.matmul %542, %536, %cst_208 {dimension_numbers = #tpu.dot_dimension_numbers<[1], [0], [0], [1], [0, 0, 1, 1], [], []>} : vector<8x32xbf16>, vector<32x64xbf16>, vector<8x64xf32> -> vector<8x64xf32>
    %544 = vector.broadcast %538 : vector<1x64xf32> to vector<8x64xf32>
    %545 = arith.addf %543, %544 : vector<8x64xf32>
    %cst_209 = arith.constant 0.000000e+00 : f32
    %546 = vector.broadcast %cst_209 : f32 to vector<8x64xf32>
    %547 = arith.maximumf %545, %546 : vector<8x64xf32>
    %548 = arith.truncf %547 : vector<8x64xf32> to vector<8x64xbf16>
    %cst_210 = arith.constant dense<0.000000e+00> : vector<8x32xf32>
    %549 = tpu.matmul %548, %540, %cst_210 {dimension_numbers = #tpu.dot_dimension_numbers<[1], [0], [0], [1], [0, 0, 1, 1], [], []>} : vector<8x64xbf16>, vector<64x32xbf16>, vector<8x32xf32> -> vector<8x32xf32>
    %550 = vector.broadcast %541 : vector<1x32xf32> to vector<8x32xf32>
    %551 = arith.addf %549, %550 : vector<8x32xf32>
    %552 = arith.addf %534, %551 : vector<8x32xf32>
    %553 = vector.extract_strided_slice %0 {offsets = [28, 0], sizes = [1, 32], strides = [1, 1]} : vector<30x32xf32> to vector<1x32xf32>
    %554 = vector.extract_strided_slice %0 {offsets = [29, 0], sizes = [1, 32], strides = [1, 1]} : vector<30x32xf32> to vector<1x32xf32>
    %cst_211 = arith.constant dense<0.000000e+00> : vector<8xf32>
    %555 = vector.multi_reduction <add>, %552, %cst_211 [1] : vector<8x32xf32> to vector<8xf32>
    %556 = vector.shape_cast %555 : vector<8xf32> to vector<8x1xf32>
    %cst_212 = arith.constant 3.200000e+01 : f32
    %557 = vector.broadcast %cst_212 : f32 to vector<8x1xf32>
    %558 = arith.divf %556, %557 : vector<8x1xf32>
    %559 = vector.broadcast %558 : vector<8x1xf32> to vector<8x32xf32>
    %560 = arith.subf %552, %559 : vector<8x32xf32>
    %561 = arith.mulf %560, %560 : vector<8x32xf32>
    %cst_213 = arith.constant dense<0.000000e+00> : vector<8xf32>
    %562 = vector.multi_reduction <add>, %561, %cst_213 [1] : vector<8x32xf32> to vector<8xf32>
    %563 = vector.shape_cast %562 : vector<8xf32> to vector<8x1xf32>
    %cst_214 = arith.constant 3.200000e+01 : f32
    %564 = vector.broadcast %cst_214 : f32 to vector<8x1xf32>
    %565 = arith.divf %563, %564 : vector<8x1xf32>
    %566 = vector.broadcast %558 : vector<8x1xf32> to vector<8x32xf32>
    %567 = arith.subf %552, %566 : vector<8x32xf32>
    %cst_215 = arith.constant 9.99999974E-6 : f32
    %568 = vector.broadcast %cst_215 : f32 to vector<8x1xf32>
    %569 = arith.addf %565, %568 : vector<8x1xf32>
    %570 = math.rsqrt %569 : vector<8x1xf32>
    %571 = vector.broadcast %570 : vector<8x1xf32> to vector<8x32xf32>
    %572 = arith.mulf %567, %571 : vector<8x32xf32>
    %573 = vector.broadcast %553 : vector<1x32xf32> to vector<8x32xf32>
    %574 = arith.mulf %572, %573 : vector<8x32xf32>
    %575 = vector.broadcast %554 : vector<1x32xf32> to vector<8x32xf32>
    %576 = arith.addf %574, %575 : vector<8x32xf32>
    %577 = arith.truncf %576 : vector<8x32xf32> to vector<8x32xbf16>
    %c0_216 = arith.constant 0 : index
    %c0_217 = arith.constant 0 : index
    %578 = vector.load %arg12[%c0_216, %c0_217] : memref<32x128xbf16, #tpu.memory_space<vmem>>, vector<32x128xbf16>
    %cst_218 = arith.constant dense<0.000000e+00> : vector<8x128xf32>
    %579 = tpu.matmul %577, %578, %cst_218 {dimension_numbers = #tpu.dot_dimension_numbers<[1], [0], [0], [1], [0, 0, 1, 1], [], []>} : vector<8x32xbf16>, vector<32x128xbf16>, vector<8x128xf32> -> vector<8x128xf32>
    %c0_219 = arith.constant 0 : index
    %c0_220 = arith.constant 0 : index
    %580 = vector.load %arg13[%c0_219, %c0_220] : memref<1x128xf32, #tpu.memory_space<vmem>>, vector<1x128xf32>
    %581 = vector.broadcast %580 : vector<1x128xf32> to vector<8x128xf32>
    %582 = arith.addf %579, %581 : vector<8x128xf32>
    %c0_221 = arith.constant 0 : index
    %c0_222 = arith.constant 0 : index
    %c0_223 = arith.constant 0 : index
    %583 = vector.load %arg14[%c0_221, %c0_222, %c0_223] : memref<1x8x128xf32, #tpu.memory_space<vmem>>, vector<1x8x128xf32>
    %584 = vector.shape_cast %583 : vector<1x8x128xf32> to vector<8x128xf32>
    %585 = vector.shape_cast %582 : vector<8x128xf32> to vector<1x8x128xf32>
    tpu.vector_store %arg14[%c0_221, %c0_222, %c0_223], %585 {strides = array<i32>} : memref<1x8x128xf32, #tpu.memory_space<vmem>>, vector<1x8x128xf32>,
    return
  }
  func.func @transform_0(%arg0: i32) -> (i32, i32, i32) {
    %c0_i32 = arith.constant 0 : i32
    %c0_i32_0 = arith.constant 0 : i32
    %c0_i32_1 = arith.constant 0 : i32
    return %arg0, %c0_i32, %c0_i32_0 : i32, i32, i32
  }
  func.func @transform_1(%arg0: i32) -> (i32, i32, i32) {
    %c0_i32 = arith.constant 0 : i32
    %c0_i32_0 = arith.constant 0 : i32
    %c0_i32_1 = arith.constant 0 : i32
    return %arg0, %c0_i32, %c0_i32_0 : i32, i32, i32
  }
  func.func @transform_2(%arg0: i32) -> (i32, i32, i32) {
    %c0_i32 = arith.constant 0 : i32
    %c0_i32_0 = arith.constant 0 : i32
    %c0_i32_1 = arith.constant 0 : i32
    return %arg0, %c0_i32, %c0_i32_0 : i32, i32, i32
  }
  func.func @transform_3(%arg0: i32) -> (i32, i32, i32) {
    %c0_i32 = arith.constant 0 : i32
    %c0_i32_0 = arith.constant 0 : i32
    %c0_i32_1 = arith.constant 0 : i32
    return %arg0, %c0_i32, %c0_i32_0 : i32, i32, i32
  }
  func.func @transform_4(%arg0: i32) -> (i32, i32, i32) {
    %c0_i32 = arith.constant 0 : i32
    %c0_i32_0 = arith.constant 0 : i32
    %c0_i32_1 = arith.constant 0 : i32
    %c0_i32_2 = arith.constant 0 : i32
    return %c0_i32, %c0_i32_0, %c0_i32_1 : i32, i32, i32
  }
  func.func @transform_5(%arg0: i32) -> (i32, i32, i32) {
    %c0_i32 = arith.constant 0 : i32
    %c0_i32_0 = arith.constant 0 : i32
    %c0_i32_1 = arith.constant 0 : i32
    %c0_i32_2 = arith.constant 0 : i32
    return %c0_i32, %c0_i32_0, %c0_i32_1 : i32, i32, i32
  }
  func.func @transform_6(%arg0: i32) -> (i32, i32, i32, i32) {
    %c0_i32 = arith.constant 0 : i32
    %c0_i32_0 = arith.constant 0 : i32
    %c0_i32_1 = arith.constant 0 : i32
    %c0_i32_2 = arith.constant 0 : i32
    %c0_i32_3 = arith.constant 0 : i32
    return %c0_i32, %c0_i32_0, %c0_i32_1, %c0_i32_2 : i32, i32, i32, i32
  }
  func.func @transform_7(%arg0: i32) -> (i32, i32, i32) {
    %c0_i32 = arith.constant 0 : i32
    %c0_i32_0 = arith.constant 0 : i32
    %c0_i32_1 = arith.constant 0 : i32
    %c0_i32_2 = arith.constant 0 : i32
    return %c0_i32, %c0_i32_0, %c0_i32_1 : i32, i32, i32
  }
  func.func @transform_8(%arg0: i32) -> (i32, i32, i32) {
    %c0_i32 = arith.constant 0 : i32
    %c0_i32_0 = arith.constant 0 : i32
    %c0_i32_1 = arith.constant 0 : i32
    %c0_i32_2 = arith.constant 0 : i32
    return %c0_i32, %c0_i32_0, %c0_i32_1 : i32, i32, i32
  }
  func.func @transform_9(%arg0: i32) -> (i32, i32, i32) {
    %c0_i32 = arith.constant 0 : i32
    %c0_i32_0 = arith.constant 0 : i32
    %c0_i32_1 = arith.constant 0 : i32
    %c0_i32_2 = arith.constant 0 : i32
    return %c0_i32, %c0_i32_0, %c0_i32_1 : i32, i32, i32
  }
  func.func @transform_10(%arg0: i32) -> (i32, i32) {
    %c0_i32 = arith.constant 0 : i32
    %c0_i32_0 = arith.constant 0 : i32
    %c0_i32_1 = arith.constant 0 : i32
    return %c0_i32, %c0_i32_0 : i32, i32
  }
  func.func @transform_11(%arg0: i32) -> (i32, i32) {
    %c0_i32 = arith.constant 0 : i32
    %c0_i32_0 = arith.constant 0 : i32
    %c0_i32_1 = arith.constant 0 : i32
    return %c0_i32, %c0_i32_0 : i32, i32
  }
  func.func @transform_12(%arg0: i32) -> (i32, i32) {
    %c0_i32 = arith.constant 0 : i32
    %c0_i32_0 = arith.constant 0 : i32
    %c0_i32_1 = arith.constant 0 : i32
    return %c0_i32, %c0_i32_0 : i32, i32
  }
  func.func @transform_13(%arg0: i32) -> (i32, i32, i32) {
    %c0_i32 = arith.constant 0 : i32
    %c0_i32_0 = arith.constant 0 : i32
    %c0_i32_1 = arith.constant 0 : i32
    return %arg0, %c0_i32, %c0_i32_0 : i32, i32, i32
  }
}

</mosaic_0001>

<llo_original>
// kernel: transformer_forward.1
$region0: #{transformer_forward.1}
  #allocation0 [shape = 'u32[]', space=smem, size = 0x4, offset = 0x4, fixed_abs, tag = 'smem constant byte address 0x4 - core index']
  #allocation1 [shape = 'u32[72,128]{1,0:T(1,128)}', space=vmem, size = 0x9000, scoped, tag = 'internal scratch']
  %s0 = inlined_call_operand.vmem [shape: f32[2,8,32], index: 0, kind: input, shape index: {}]
  %s1 = inlined_call_operand.vmem [shape: f32[2,8,32], index: 1, kind: input, shape index: {}]
  %s2 = inlined_call_operand.vmem [shape: f32[2,1,8], index: 2, kind: input, shape index: {}]
  %s3 = inlined_call_operand.vmem [shape: f32[2,1,8], index: 3, kind: input, shape index: {}]
  %s4 = inlined_call_operand.vmem [shape: bf16[72,32,8], index: 4, kind: input, shape index: {}]
  %s5 = inlined_call_operand.vmem [shape: f32[72,1,8], index: 5, kind: input, shape index: {}]
  %s6 = inlined_call_operand.vmem [shape: bf16[6,4,8,32], index: 6, kind: input, shape index: {}]
  %s7 = inlined_call_operand.vmem [shape: bf16[4,32,64], index: 7, kind: input, shape index: {}]
  %s8 = inlined_call_operand.vmem [shape: f32[4,1,64], index: 8, kind: input, shape index: {}]
  %s9 = inlined_call_operand.vmem [shape: bf16[4,64,32], index: 9, kind: input, shape index: {}]
  %s10 = inlined_call_operand.vmem [shape: f32[30,32], index: 10, kind: input, shape index: {}]
  %s11 = inlined_call_operand.vmem [shape: bf16[32,128], index: 11, kind: input, shape index: {}]
  %s12 = inlined_call_operand.vmem [shape: f32[1,128], index: 12, kind: input, shape index: {}]
  %s13 = inlined_call_operand.hbm [shape: f32[2,8,128], index: 13, kind: output, shape index: {}]
  %s14 = sld [smem:[#allocation0]]
  $region85: #{transformer_forward.1} parent=0
    _
  %s16 = ssub.s32 1, %s14
  %s17 = scalar_select 0, %s16, %s14
  $region1: #{transformer_forward.1} parent=0
    #allocation2 [shape = 'u8[8192]{0}', space=vmem, size = 0x2000, scoped, tag = 'output window, operand 0']
    #allocation3 [shape = 's32[2]{0}', space=sflag, size = 0x8, scoped, tag = 'scoped memory for transformer_forward.1']
    %18 = vsyncpa [#allocation3], 0
    %s19 = scalar_lea.sflag [#allocation3], 1
    %20 = vsyncpa %s19, 0
    loop: start=0, step=1, limit=4
    $region2: #{transformer_forward.1} parent=1 // loop_pre_header
      _
    $region3: #{transformer_forward.1} parent=1 // loop_header
      %s22 = sphi 0, %s26
      %p23 = scmp.ge.s32.totalorder %s22, 4
      %s32 = sphi 0, %s34
      %s35 = sphi 0, %s32
      %s36 = sphi 0, %s35
      %s52 = sphi 0, %s36
      %s58 = sphi 0, %s60
      %s61 = sphi 0, %s58
      %s62 = sphi 0, %s61
      %s78 = sphi 0, %s62
      %s84 = sphi 0, %s86
      %s87 = sphi 0, %s84
      %s88 = sphi 0, %s87
      %s104 = sphi 0, %s88
      %s110 = sphi 0, %s112
      %s113 = sphi 0, %s110
      %s114 = sphi 0, %s113
      %s130 = sphi 0, %s114
      %s134 = sphi 0, %s134
      %s136 = sphi 0, %s134
      %s137 = sphi 0, %s136
      %s151 = sphi 0, %s137
      %s155 = sphi 0, %s155
      %s157 = sphi 0, %s155
      %s158 = sphi 0, %s157
      %s172 = sphi 0, %s158
      %s176 = sphi 0, %s176
      %s178 = sphi 0, %s176
      %s179 = sphi 0, %s178
      %s193 = sphi 0, %s179
      %s197 = sphi 0, %s197
      %s199 = sphi 0, %s197
      %s200 = sphi 0, %s199
      %s214 = sphi 0, %s200
      %s218 = sphi 0, %s218
      %s220 = sphi 0, %s218
      %s221 = sphi 0, %s220
      %s235 = sphi 0, %s221
      %s239 = sphi 0, %s239
      %s241 = sphi 0, %s239
      %s242 = sphi 0, %s241
      %s256 = sphi 0, %s242
      %s260 = sphi 0, %s260
      %s262 = sphi 0, %s260
      %s263 = sphi 0, %s262
      %s277 = sphi 0, %s263
      %s281 = sphi 0, %s281
      %s283 = sphi 0, %s281
      %s284 = sphi 0, %s283
      %s298 = sphi 0, %s284
      %s302 = sphi 0, %s302
      %s304 = sphi 0, %s302
      %s305 = sphi 0, %s304
      %s319 = sphi 0, %s305
      %s325 = sphi 0, %s327
      %s328 = sphi 0, %s325
      %s329 = sphi 0, %s328
      %s345 = sphi 0, %s329
    $region4: #{transformer_forward.1} parent=1 // loop_header_branch
      %25 = sbr.rel (%p23) target = $region8
    $region5: #{transformer_forward.1} parent=1 // loop_body
      %s27 = ssub.s32 %s22, 1
      %s28 = ssub.s32 %s22, 2
      %s29 = sadd.s32 %s22, 1
      %s30 = ssub.s32 %s22, %s29
      %p31 = scmp.eq.s32.totalorder %s30, 0
      %s33 = sadd.s32 %s32, 1
      %s34 = scalar_select %p31, %s32, %s33
      %p37 = pneg %p31
      %p38 = scmp.eq.s32.totalorder %s22, 1
      %p39 = por %p37, %p38
      %p40 = scmp.ne.s32.totalorder %s32, %s35
      %p41 = scmp.eq.s32.totalorder %s22, 0
      %p42 = por %p40, %p41
      %p43 = scmp.ne.s32.totalorder %s32, %s35
      %p44 = scmp.eq.s32.totalorder %s27, 1
      %p45 = por %p43, %p44
      %p46 = scmp.ne.s32.totalorder %s35, %s36
      %p47 = scmp.eq.s32.totalorder %s27, 0
      %p48 = por %p46, %p47
      %p49 = scmp.ne.s32.totalorder %s35, %s36
      %p50 = scmp.eq.s32.totalorder %s28, 1
      %p51 = por %p49, %p50
      %p53 = scmp.ne.s32.totalorder %s36, %s52
      %p54 = scmp.eq.s32.totalorder %s28, 0
      %p55 = por %p53, %p54
      %s56 = ssub.s32 %s22, %s29
      %p57 = scmp.eq.s32.totalorder %s56, 0
      %s59 = sadd.s32 %s58, 1
      %s60 = scalar_select %p57, %s58, %s59
      %p63 = pneg %p57
      %p64 = scmp.eq.s32.totalorder %s22, 1
      %p65 = por %p63, %p64
      %p66 = scmp.ne.s32.totalorder %s58, %s61
      %p67 = scmp.eq.s32.totalorder %s22, 0
      %p68 = por %p66, %p67
      %p69 = scmp.ne.s32.totalorder %s58, %s61
      %p70 = scmp.eq.s32.totalorder %s27, 1
      %p71 = por %p69, %p70
      %p72 = scmp.ne.s32.totalorder %s61, %s62
      %p73 = scmp.eq.s32.totalorder %s27, 0
      %p74 = por %p72, %p73
      %p75 = scmp.ne.s32.totalorder %s61, %s62
      %p76 = scmp.eq.s32.totalorder %s28, 1
      %p77 = por %p75, %p76
      %p79 = scmp.ne.s32.totalorder %s62, %s78
      %p80 = scmp.eq.s32.totalorder %s28, 0
      %p81 = por %p79, %p80
      %s82 = ssub.s32 %s22, %s29
      %p83 = scmp.eq.s32.totalorder %s82, 0
      %s85 = sadd.s32 %s84, 1
      %s86 = scalar_select %p83, %s84, %s85
      %p89 = pneg %p83
      %p90 = scmp.eq.s32.totalorder %s22, 1
      %p91 = por %p89, %p90
      %p92 = scmp.ne.s32.totalorder %s84, %s87
      %p93 = scmp.eq.s32.totalorder %s22, 0
      %p94 = por %p92, %p93
      %p95 = scmp.ne.s32.totalorder %s84, %s87
      %p96 = scmp.eq.s32.totalorder %s27, 1
      %p97 = por %p95, %p96
      %p98 = scmp.ne.s32.totalorder %s87, %s88
      %p99 = scmp.eq.s32.totalorder %s27, 0
      %p100 = por %p98, %p99
      %p101 = scmp.ne.s32.totalorder %s87, %s88
      %p102 = scmp.eq.s32.totalorder %s28, 1
      %p103 = por %p101, %p102
      %p105 = scmp.ne.s32.totalorder %s88, %s104
      %p106 = scmp.eq.s32.totalorder %s28, 0
      %p107 = por %p105, %p106
      %s108 = ssub.s32 %s22, %s29
      %p109 = scmp.eq.s32.totalorder %s108, 0
      %s111 = sadd.s32 %s110, 1
      %s112 = scalar_select %p109, %s110, %s111
      %p115 = pneg %p109
      %p116 = scmp.eq.s32.totalorder %s22, 1
      %p117 = por %p115, %p116
      %p118 = scmp.ne.s32.totalorder %s110, %s113
      %p119 = scmp.eq.s32.totalorder %s22, 0
      %p120 = por %p118, %p119
      %p121 = scmp.ne.s32.totalorder %s110, %s113
      %p122 = scmp.eq.s32.totalorder %s27, 1
      %p123 = por %p121, %p122
      %p124 = scmp.ne.s32.totalorder %s113, %s114
      %p125 = scmp.eq.s32.totalorder %s27, 0
      %p126 = por %p124, %p125
      %p127 = scmp.ne.s32.totalorder %s113, %s114
      %p128 = scmp.eq.s32.totalorder %s28, 1
      %p129 = por %p127, %p128
      %p131 = scmp.ne.s32.totalorder %s114, %s130
      %p132 = scmp.eq.s32.totalorder %s28, 0
      %p133 = por %p131, %p132
      %s135 = sadd.s32 %s134, 1
      %p138 = scmp.eq.s32.totalorder %s22, 1
      %p139 = scmp.ne.s32.totalorder %s134, %s136
      %p140 = scmp.eq.s32.totalorder %s22, 0
      %p141 = por %p139, %p140
      %p142 = scmp.ne.s32.totalorder %s134, %s136
      %p143 = scmp.eq.s32.totalorder %s27, 1
      %p144 = por %p142, %p143
      %p145 = scmp.ne.s32.totalorder %s136, %s137
      %p146 = scmp.eq.s32.totalorder %s27, 0
      %p147 = por %p145, %p146
      %p148 = scmp.ne.s32.totalorder %s136, %s137
      %p149 = scmp.eq.s32.totalorder %s28, 1
      %p150 = por %p148, %p149
      %p152 = scmp.ne.s32.totalorder %s137, %s151
      %p153 = scmp.eq.s32.totalorder %s28, 0
      %p154 = por %p152, %p153
      %s156 = sadd.s32 %s155, 1
      %p159 = scmp.eq.s32.totalorder %s22, 1
      %p160 = scmp.ne.s32.totalorder %s155, %s157
      %p161 = scmp.eq.s32.totalorder %s22, 0
      %p162 = por %p160, %p161
      %p163 = scmp.ne.s32.totalorder %s155, %s157
      %p164 = scmp.eq.s32.totalorder %s27, 1
      %p165 = por %p163, %p164
      %p166 = scmp.ne.s32.totalorder %s157, %s158
      %p167 = scmp.eq.s32.totalorder %s27, 0
      %p168 = por %p166, %p167
      %p169 = scmp.ne.s32.totalorder %s157, %s158
      %p170 = scmp.eq.s32.totalorder %s28, 1
      %p171 = por %p169, %p170
      %p173 = scmp.ne.s32.totalorder %s158, %s172
      %p174 = scmp.eq.s32.totalorder %s28, 0
      %p175 = por %p173, %p174
      %s177 = sadd.s32 %s176, 1
      %p180 = scmp.eq.s32.totalorder %s22, 1
      %p181 = scmp.ne.s32.totalorder %s176, %s178
      %p182 = scmp.eq.s32.totalorder %s22, 0
      %p183 = por %p181, %p182
      %p184 = scmp.ne.s32.totalorder %s176, %s178
      %p185 = scmp.eq.s32.totalorder %s27, 1
      %p186 = por %p184, %p185
      %p187 = scmp.ne.s32.totalorder %s178, %s179
      %p188 = scmp.eq.s32.totalorder %s27, 0
      %p189 = por %p187, %p188
      %p190 = scmp.ne.s32.totalorder %s178, %s179
      %p191 = scmp.eq.s32.totalorder %s28, 1
      %p192 = por %p190, %p191
      %p194 = scmp.ne.s32.totalorder %s179, %s193
      %p195 = scmp.eq.s32.totalorder %s28, 0
      %p196 = por %p194, %p195
      %s198 = sadd.s32 %s197, 1
      %p201 = scmp.eq.s32.totalorder %s22, 1
      %p202 = scmp.ne.s32.totalorder %s197, %s199
      %p203 = scmp.eq.s32.totalorder %s22, 0
      %p204 = por %p202, %p203
      %p205 = scmp.ne.s32.totalorder %s197, %s199
      %p206 = scmp.eq.s32.totalorder %s27, 1
      %p207 = por %p205, %p206
      %p208 = scmp.ne.s32.totalorder %s199, %s200
      %p209 = scmp.eq.s32.totalorder %s27, 0
      %p210 = por %p208, %p209
      %p211 = scmp.ne.s32.totalorder %s199, %s200
      %p212 = scmp.eq.s32.totalorder %s28, 1
      %p213 = por %p211, %p212
      %p215 = scmp.ne.s32.totalorder %s200, %s214
      %p216 = scmp.eq.s32.totalorder %s28, 0
      %p217 = por %p215, %p216
      %s219 = sadd.s32 %s218, 1
      %p222 = scmp.eq.s32.totalorder %s22, 1
      %p223 = scmp.ne.s32.totalorder %s218, %s220
      %p224 = scmp.eq.s32.totalorder %s22, 0
      %p225 = por %p223, %p224
      %p226 = scmp.ne.s32.totalorder %s218, %s220
      %p227 = scmp.eq.s32.totalorder %s27, 1
      %p228 = por %p226, %p227
      %p229 = scmp.ne.s32.totalorder %s220, %s221
      %p230 = scmp.eq.s32.totalorder %s27, 0
      %p231 = por %p229, %p230
      %p232 = scmp.ne.s32.totalorder %s220, %s221
      %p233 = scmp.eq.s32.totalorder %s28, 1
      %p234 = por %p232, %p233
      %p236 = scmp.ne.s32.totalorder %s221, %s235
      %p237 = scmp.eq.s32.totalorder %s28, 0
      %p238 = por %p236, %p237
      %s240 = sadd.s32 %s239, 1
      %p243 = scmp.eq.s32.totalorder %s22, 1
      %p244 = scmp.ne.s32.totalorder %s239, %s241
      %p245 = scmp.eq.s32.totalorder %s22, 0
      %p246 = por %p244, %p245
      %p247 = scmp.ne.s32.totalorder %s239, %s241
      %p248 = scmp.eq.s32.totalorder %s27, 1
      %p249 = por %p247, %p248
      %p250 = scmp.ne.s32.totalorder %s241, %s242
      %p251 = scmp.eq.s32.totalorder %s27, 0
      %p252 = por %p250, %p251
      %p253 = scmp.ne.s32.totalorder %s241, %s242
      %p254 = scmp.eq.s32.totalorder %s28, 1
      %p255 = por %p253, %p254
      %p257 = scmp.ne.s32.totalorder %s242, %s256
      %p258 = scmp.eq.s32.totalorder %s28, 0
      %p259 = por %p257, %p258
      %s261 = sadd.s32 %s260, 1
      %p264 = scmp.eq.s32.totalorder %s22, 1
      %p265 = scmp.ne.s32.totalorder %s260, %s262
      %p266 = scmp.eq.s32.totalorder %s22, 0
      %p267 = por %p265, %p266
      %p268 = scmp.ne.s32.totalorder %s260, %s262
      %p269 = scmp.eq.s32.totalorder %s27, 1
      %p270 = por %p268, %p269
      %p271 = scmp.ne.s32.totalorder %s262, %s263
      %p272 = scmp.eq.s32.totalorder %s27, 0
      %p273 = por %p271, %p272
      %p274 = scmp.ne.s32.totalorder %s262, %s263
      %p275 = scmp.eq.s32.totalorder %s28, 1
      %p276 = por %p274, %p275
      %p278 = scmp.ne.s32.totalorder %s263, %s277
      %p279 = scmp.eq.s32.totalorder %s28, 0
      %p280 = por %p278, %p279
      %s282 = sadd.s32 %s281, 1
      %p285 = scmp.eq.s32.totalorder %s22, 1
      %p286 = scmp.ne.s32.totalorder %s281, %s283
      %p287 = scmp.eq.s32.totalorder %s22, 0
      %p288 = por %p286, %p287
      %p289 = scmp.ne.s32.totalorder %s281, %s283
      %p290 = scmp.eq.s32.totalorder %s27, 1
      %p291 = por %p289, %p290
      %p292 = scmp.ne.s32.totalorder %s283, %s284
      %p293 = scmp.eq.s32.totalorder %s27, 0
      %p294 = por %p292, %p293
      %p295 = scmp.ne.s32.totalorder %s283, %s284
      %p296 = scmp.eq.s32.totalorder %s28, 1
      %p297 = por %p295, %p296
      %p299 = scmp.ne.s32.totalorder %s284, %s298
      %p300 = scmp.eq.s32.totalorder %s28, 0
      %p301 = por %p299, %p300
      %s303 = sadd.s32 %s302, 1
      %p306 = scmp.eq.s32.totalorder %s22, 1
      %p307 = scmp.ne.s32.totalorder %s302, %s304
      %p308 = scmp.eq.s32.totalorder %s22, 0
      %p309 = por %p307, %p308
      %p310 = scmp.ne.s32.totalorder %s302, %s304
      %p311 = scmp.eq.s32.totalorder %s27, 1
      %p312 = por %p310, %p311
      %p313 = scmp.ne.s32.totalorder %s304, %s305
      %p314 = scmp.eq.s32.totalorder %s27, 0
      %p315 = por %p313, %p314
      %p316 = scmp.ne.s32.totalorder %s304, %s305
      %p317 = scmp.eq.s32.totalorder %s28, 1
      %p318 = por %p316, %p317
      %p320 = scmp.ne.s32.totalorder %s305, %s319
      %p321 = scmp.eq.s32.totalorder %s28, 0
      %p322 = por %p320, %p321
      %s323 = ssub.s32 %s22, %s29
      %p324 = scmp.eq.s32.totalorder %s323, 0
      %s326 = sadd.s32 %s325, 1
      %s327 = scalar_select %p324, %s325, %s326
      %p330 = pneg %p324
      %p331 = scmp.eq.s32.totalorder %s22, 1
      %p332 = por %p330, %p331
      %p333 = scmp.ne.s32.totalorder %s325, %s328
      %p334 = scmp.eq.s32.totalorder %s22, 0
      %p335 = por %p333, %p334
      %p336 = scmp.ne.s32.totalorder %s325, %s328
      %p337 = scmp.eq.s32.totalorder %s27, 1
      %p338 = por %p336, %p337
      %p339 = scmp.ne.s32.totalorder %s328, %s329
      %p340 = scmp.eq.s32.totalorder %s27, 0
      %p341 = por %p339, %p340
      %p342 = scmp.ne.s32.totalorder %s328, %s329
      %p343 = scmp.eq.s32.totalorder %s28, 1
      %p344 = por %p342, %p343
      %p346 = scmp.ne.s32.totalorder %s329, %s345
      %p347 = scmp.eq.s32.totalorder %s28, 0
      %p348 = por %p346, %p347
      %p349 = scmp.le.s32.totalorder 1, %s22
      %p350 = scmp.lt.s32.totalorder %s22, 3
      %p351 = pnand %p349, %p350
      %p352 = pneg %p351
      // Predicated region
      $region9: #{transformer_forward.1} parent=5 // pred_check
        _
      $region10: #{transformer_forward.1} parent=5 // pred_check_branch
        %354 = sbr.rel (%p351) target = $region12
      $region11: #{transformer_forward.1} parent=5 // pred_region
        %s355 = ssub.s32 %s22, 1
        // Predicated region
        $region13: #{transformer_forward.1} parent=11 // pred_check
          %p356 = pneg %p147
        $region14: #{transformer_forward.1} parent=11 // pred_check_branch
          %358 = sbr.rel (%p356) target = $region16
        $region15: #{transformer_forward.1} parent=11 // pred_region
          _
        $region16: #{transformer_forward.1} parent=11 // pred_fallthru
          _
        // Predicated region
        $region17: #{transformer_forward.1} parent=11 // pred_check
          %p359 = pneg %p168
        $region18: #{transformer_forward.1} parent=11 // pred_check_branch
          %361 = sbr.rel (%p359) target = $region20
        $region19: #{transformer_forward.1} parent=11 // pred_region
          _
        $region20: #{transformer_forward.1} parent=11 // pred_fallthru
          _
        // Predicated region
        $region21: #{transformer_forward.1} parent=11 // pred_check
          %p362 = pneg %p189
        $region22: #{transformer_forward.1} parent=11 // pred_check_branch
          %364 = sbr.rel (%p362) target = $region24
        $region23: #{transformer_forward.1} parent=11 // pred_region
          _
        $region24: #{transformer_forward.1} parent=11 // pred_fallthru
          _
        // Predicated region
        $region25: #{transformer_forward.1} parent=11 // pred_check
          %p365 = pneg %p210
        $region26: #{transformer_forward.1} parent=11 // pred_check_branch
          %367 = sbr.rel (%p365) target = $region28
        $region27: #{transformer_forward.1} parent=11 // pred_region
          _
        $region28: #{transformer_forward.1} parent=11 // pred_fallthru
          _
        // Predicated region
        $region29: #{transformer_forward.1} parent=11 // pred_check
          %p368 = pneg %p231
        $region30: #{transformer_forward.1} parent=11 // pred_check_branch
          %370 = sbr.rel (%p368) target = $region32
        $region31: #{transformer_forward.1} parent=11 // pred_region
          _
        $region32: #{transformer_forward.1} parent=11 // pred_fallthru
          _
        // Predicated region
        $region33: #{transformer_forward.1} parent=11 // pred_check
          %p371 = pneg %p252
        $region34: #{transformer_forward.1} parent=11 // pred_check_branch
          %373 = sbr.rel (%p371) target = $region36
        $region35: #{transformer_forward.1} parent=11 // pred_region
          _
        $region36: #{transformer_forward.1} parent=11 // pred_fallthru
          _
        // Predicated region
        $region37: #{transformer_forward.1} parent=11 // pred_check
          %p374 = pneg %p273
        $region38: #{transformer_forward.1} parent=11 // pred_check_branch
          %376 = sbr.rel (%p374) target = $region40
        $region39: #{transformer_forward.1} parent=11 // pred_region
          _
        $region40: #{transformer_forward.1} parent=11 // pred_fallthru
          _
        // Predicated region
        $region41: #{transformer_forward.1} parent=11 // pred_check
          %p377 = pneg %p294
        $region42: #{transformer_forward.1} parent=11 // pred_check_branch
          %379 = sbr.rel (%p377) target = $region44
        $region43: #{transformer_forward.1} parent=11 // pred_region
          _
        $region44: #{transformer_forward.1} parent=11 // pred_fallthru
          _
        // Predicated region
        $region45: #{transformer_forward.1} parent=11 // pred_check
          %p380 = pneg %p315
        $region46: #{transformer_forward.1} parent=11 // pred_check_branch
          %382 = sbr.rel (%p380) target = $region48
        $region47: #{transformer_forward.1} parent=11 // pred_region
          _
        $region48: #{transformer_forward.1} parent=11 // pred_fallthru
          _
      $region12: #{transformer_forward.1} parent=5 // pred_fallthru
        _
      %p383 = scmp.lt.s32.totalorder %s22, 2
      // Predicated region
      $region49: #{transformer_forward.1} parent=5 // pred_check
        %p384 = pneg %p383
      $region50: #{transformer_forward.1} parent=5 // pred_check_branch
        %386 = sbr.rel (%p384) target = $region52
      $region51: #{transformer_forward.1} parent=5 // pred_region
        // Predicated region
        $region53: #{transformer_forward.1} parent=51 // pred_check
          %p387 = pneg %p42
        $region54: #{transformer_forward.1} parent=51 // pred_check_branch
          %389 = sbr.rel (%p387) target = $region56
        $region55: #{transformer_forward.1} parent=51 // pred_region
          %p390 = scmp.lt.s32.totalorder %s22, 1
          %s391 = scalar_select %p390, %s22, 1
          %s392 = smul.addr %s391, 8
          %s393 = scalar_lea.vmem %s0, %s392
        $region56: #{transformer_forward.1} parent=51 // pred_fallthru
          _
        // Predicated region
        $region57: #{transformer_forward.1} parent=51 // pred_check
          %p394 = pneg %p68
        $region58: #{transformer_forward.1} parent=51 // pred_check_branch
          %396 = sbr.rel (%p394) target = $region60
        $region59: #{transformer_forward.1} parent=51 // pred_region
          %p397 = scmp.lt.s32.totalorder %s22, 1
          %s398 = scalar_select %p397, %s22, 1
          %s399 = smul.addr %s398, 8
          %s400 = scalar_lea.vmem %s1, %s399
        $region60: #{transformer_forward.1} parent=51 // pred_fallthru
          _
        // Predicated region
        $region61: #{transformer_forward.1} parent=51 // pred_check
          %p401 = pneg %p94
        $region62: #{transformer_forward.1} parent=51 // pred_check_branch
          %403 = sbr.rel (%p401) target = $region64
        $region63: #{transformer_forward.1} parent=51 // pred_region
          %p404 = scmp.lt.s32.totalorder %s22, 1
          %s405 = scalar_select %p404, %s22, 1
          %s406 = scalar_lea.vmem %s2, %s405
        $region64: #{transformer_forward.1} parent=51 // pred_fallthru
          _
        // Predicated region
        $region65: #{transformer_forward.1} parent=51 // pred_check
          %p407 = pneg %p120
        $region66: #{transformer_forward.1} parent=51 // pred_check_branch
          %409 = sbr.rel (%p407) target = $region68
        $region67: #{transformer_forward.1} parent=51 // pred_region
          %p410 = scmp.lt.s32.totalorder %s22, 1
          %s411 = scalar_select %p410, %s22, 1
          %s412 = scalar_lea.vmem %s3, %s411
        $region68: #{transformer_forward.1} parent=51 // pred_fallthru
          _
      $region52: #{transformer_forward.1} parent=5 // pred_fallthru
        _
      %p413 = scmp.le.s32.totalorder 1, %s22
      %p414 = scmp.lt.s32.totalorder %s22, 3
      %p415 = pnand %p413, %p414
      %p416 = pneg %p415
      // Predicated region
      $region69: #{transformer_forward.1} parent=5 // pred_check
        _
      $region70: #{transformer_forward.1} parent=5 // pred_check_branch
        %418 = sbr.rel (%p415) target = $region72
      $region71: #{transformer_forward.1} parent=5 // pred_region
        %s419 = ssub.s32 %s22, 1
        %p420 = scmp.lt.s32.totalorder %s27, 1
        %s421 = scalar_select %p420, %s27, 1
        %s422 = smul.addr %s421, 8
        %s423 = scalar_lea.vmem %s0, %s422
        %p424 = pneg %p48
        %p425 = pneg %p45
        %p426 = scmp.lt.s32.totalorder %s27, 1
        %s427 = scalar_select %p426, %s27, 1
        %s428 = smul.addr %s427, 8
        %s429 = scalar_lea.vmem %s1, %s428
        %p430 = pneg %p74
        %p431 = pneg %p71
        %p432 = scmp.lt.s32.totalorder %s27, 1
        %s433 = scalar_select %p432, %s27, 1
        %s434 = scalar_lea.vmem %s2, %s433
        %p435 = pneg %p100
        %p436 = pneg %p97
        %p437 = scmp.lt.s32.totalorder %s27, 1
        %s438 = scalar_select %p437, %s27, 1
        %s439 = scalar_lea.vmem %s3, %s438
        %p440 = pneg %p126
        %p441 = pneg %p123
        %p442 = pneg %p147
        %p443 = pneg %p144
        %p444 = pneg %p168
        %p445 = pneg %p165
        %p446 = pneg %p189
        %p447 = pneg %p186
        %p448 = pneg %p210
        %p449 = pneg %p207
        %p450 = pneg %p231
        %p451 = pneg %p228
        %p452 = pneg %p252
        %p453 = pneg %p249
        %p454 = pneg %p273
        %p455 = pneg %p270
        %p456 = pneg %p294
        %p457 = pneg %p291
        %p458 = pneg %p315
        %p459 = pneg %p312
        %p460 = pneg %p341
        %p461 = pneg %p338
        %s462 = sand.u32 %s328, 1
        %s463 = scalar_lea.sflag [#allocation3], %s462
        %s464 = sand.u32 %s328, 1
        %s465 = smul.addr %s464, 8
        %s466 = scalar_lea.vmem [#allocation2], %s465
        %p467 = scmp.lt.s32.totalorder %s27, 1
        %s468 = scalar_select %p467, %s27, 1
        %s469 = smul.addr %s468, 8
        %s470 = scalar_lea.vmem %s0, %s469
        %p471 = scmp.lt.s32.totalorder %s27, 1
        %s472 = scalar_select %p471, %s27, 1
        %s473 = smul.addr %s472, 8
        %s474 = scalar_lea.vmem %s1, %s473
        %p475 = scmp.lt.s32.totalorder %s27, 1
        %s476 = scalar_select %p475, %s27, 1
        %s477 = scalar_lea.vmem %s2, %s476
        %p478 = scmp.lt.s32.totalorder %s27, 1
        %s479 = scalar_select %p478, %s27, 1
        %s480 = scalar_lea.vmem %s3, %s479
        %v482 = vld [vmem:[%s10] sm:$0xff]
        %v483 = vld [vmem:[%s10 + $0x8] sm:$0xff]
        %v484 = vld [vmem:[%s10 + $0x10] sm:$0xff]
        %v485 = vld [vmem:[%s10 + $0x18] sm:$0x3f]
        %v486 = vld [vmem:[%s477] sm:$0x1]
        %v487 = vld [vmem:[%s480] sm:$0x1]
        %v488 = vlaneseq
        %v489 = vshrl.u32 %v488, 7
        %v490 = vlaneseq
        %v491 = vand.u32 %v490, 127
        %vm492 = vcmp.ge.s32.totalorder %v489, %v491
        %v493 = vsel %vm492, 0.0, -1e+09
        %v495 = vperm.slane %v487, 0
        %v497 = vadd.f32 %v493, %v495
        %v498 = vld [vmem:[%s470] sm:$0xff]
        %v499 = vld [vmem:[%s4] sm:$0xf]
        %v500 = vld [vmem:[%s4 + $0x4] sm:$0xf]
        %v501 = vld [vmem:[%s4 + $0x8] sm:$0xf]
        %v502 = vld [vmem:[%s4 + $0xc] sm:$0xf]
        %v503 = vld [vmem:[%s4 + $0x10] sm:$0xf]
        %v504 = vld [vmem:[%s4 + $0x14] sm:$0xf]
        %v505 = vld [vmem:[%s4 + $0x18] sm:$0xf]
        %v506 = vld [vmem:[%s4 + $0x1c] sm:$0xf]
        %v507 = vld [vmem:[%s4 + $0x20] sm:$0xf]
        %v508 = vld [vmem:[%s4 + $0x24] sm:$0xf]
        %v509 = vld [vmem:[%s4 + $0x28] sm:$0xf]
        %v510 = vld [vmem:[%s4 + $0x2c] sm:$0xf]
        %v511 = vld [vmem:[%s4 + $0x30] sm:$0xf]
        %v512 = vld [vmem:[%s4 + $0x34] sm:$0xf]
        %v513 = vld [vmem:[%s4 + $0x38] sm:$0xf]
        %v514 = vld [vmem:[%s4 + $0x3c] sm:$0xf]
        %v515 = vld [vmem:[%s4 + $0x40] sm:$0xf]
        %v516 = vld [vmem:[%s4 + $0x44] sm:$0xf]
        %v517 = vld [vmem:[%s4 + $0x48] sm:$0xf]
        %v518 = vld [vmem:[%s4 + $0x4c] sm:$0xf]
        %v519 = vld [vmem:[%s4 + $0x50] sm:$0xf]
        %v520 = vld [vmem:[%s4 + $0x54] sm:$0xf]
        %v521 = vld [vmem:[%s4 + $0x58] sm:$0xf]
        %v522 = vld [vmem:[%s4 + $0x5c] sm:$0xf]
        %v523 = vld [vmem:[%s4 + $0x60] sm:$0xf]
        %v524 = vld [vmem:[%s4 + $0x64] sm:$0xf]
        %v525 = vld [vmem:[%s4 + $0x68] sm:$0xf]
        %v526 = vld [vmem:[%s4 + $0x6c] sm:$0xf]
        %v527 = vld [vmem:[%s4 + $0x70] sm:$0xf]
        %v528 = vld [vmem:[%s4 + $0x74] sm:$0xf]
        %v529 = vld [vmem:[%s4 + $0x78] sm:$0xf]
        %v530 = vld [vmem:[%s4 + $0x7c] sm:$0xf]
        %v531 = vld [vmem:[%s4 + $0x80] sm:$0xf]
        %v532 = vld [vmem:[%s4 + $0x84] sm:$0xf]
        %v533 = vld [vmem:[%s4 + $0x88] sm:$0xf]
        %v534 = vld [vmem:[%s4 + $0x8c] sm:$0xf]
        %v535 = vld [vmem:[%s4 + $0x90] sm:$0xf]
        %v536 = vld [vmem:[%s4 + $0x94] sm:$0xf]
        %v537 = vld [vmem:[%s4 + $0x98] sm:$0xf]
        %v538 = vld [vmem:[%s4 + $0x9c] sm:$0xf]
        %v539 = vld [vmem:[%s4 + $0xa0] sm:$0xf]
        %v540 = vld [vmem:[%s4 + $0xa4] sm:$0xf]
        %v541 = vld [vmem:[%s4 + $0xa8] sm:$0xf]
        %v542 = vld [vmem:[%s4 + $0xac] sm:$0xf]
        %v543 = vld [vmem:[%s4 + $0xb0] sm:$0xf]
        %v544 = vld [vmem:[%s4 + $0xb4] sm:$0xf]
        %v545 = vld [vmem:[%s4 + $0xb8] sm:$0xf]
        %v546 = vld [vmem:[%s4 + $0xbc] sm:$0xf]
        %v547 = vld [vmem:[%s5] sm:$0x1]
        %v548 = vld [vmem:[%s5 + $0x1] sm:$0x1]
        %v549 = vld [vmem:[%s5 + $0x2] sm:$0x1]
        %v550 = vld [vmem:[%s5 + $0x3] sm:$0x1]
        %v551 = vld [vmem:[%s5 + $0x4] sm:$0x1]
        %v552 = vld [vmem:[%s5 + $0x5] sm:$0x1]
        %v553 = vld [vmem:[%s5 + $0x6] sm:$0x1]
        %v554 = vld [vmem:[%s5 + $0x7] sm:$0x1]
        %v555 = vld [vmem:[%s5 + $0x8] sm:$0x1]
        %v556 = vld [vmem:[%s5 + $0x9] sm:$0x1]
        %v557 = vld [vmem:[%s5 + $0xa] sm:$0x1]
        %v558 = vld [vmem:[%s5 + $0xb] sm:$0x1]
        %v559 = vpack.c.bf16 %v498, %v498
        %v572 = vperm.slane %v547, 0
        %v573 = vperm.slane %v548, 0
        %v574 = vperm.slane %v549, 0
        %v575 = vperm.slane %v550, 0
        %v576 = vperm.slane %v551, 0
        %v577 = vperm.slane %v552, 0
        %v578 = vperm.slane %v553, 0
        %v579 = vperm.slane %v554, 0
        %v580 = vperm.slane %v555, 0
        %v581 = vperm.slane %v556, 0
        %v582 = vperm.slane %v557, 0
        %v583 = vperm.slane %v558, 0
        %v600 = vunpack.c.l.b16 %v499
        %v601 = vunpack.c.l.b16 %v500
        %v602 = vunpack.c.l.b16 %v501
        %v603 = vunpack.c.l.b16 %v502
        %v604 = vpack.c.b16 %v601, %v600
        %v605 = vpack.c.b16 %v603, %v602
        %vm608 = vcmask 261120
        %v610 = vsel %vm608, %v559, 0
        %612 = vmatpush.bf16.msra.mxu0 0
        %613 = vmatpush.bf16.msra.mxu0 0
        %614 = vmatpush.bf16.msra.mxu0 0
        %615 = vmatpush.bf16.msra.mxu0 0
        %616 = vmatpush.bf16.msra.mxu0 0
        %617 = vmatpush.bf16.msra.mxu0 0
        %618 = vmatpush.bf16.msra.mxu0 %v605
        %619 = vmatpush.bf16.msra.mxu0 %v604
        %620 = vmatmul.bf16.gmra.mxu0 %v610
        %v621 = vpop.f32.mrf.mxu0
        %v622 = vadd.f32 %v572, %v621
        %v623 = vpop.f32.mrf.mxu0
        %624 = vdwg.mxu0
        %v629 = vunpack.c.l.b16 %v503
        %v630 = vunpack.c.l.b16 %v504
        %v631 = vunpack.c.l.b16 %v505
        %v632 = vunpack.c.l.b16 %v506
        %v633 = vpack.c.b16 %v630, %v629
        %v634 = vpack.c.b16 %v632, %v631
        %637 = vmatpush.bf16.msra.mxu0 0
        %638 = vmatpush.bf16.msra.mxu0 0
        %639 = vmatpush.bf16.msra.mxu0 0
        %640 = vmatpush.bf16.msra.mxu0 0
        %641 = vmatpush.bf16.msra.mxu0 0
        %642 = vmatpush.bf16.msra.mxu0 0
        %643 = vmatpush.bf16.msra.mxu0 %v634
        %644 = vmatpush.bf16.msra.mxu0 %v633
        %645 = vmatmul.bf16.gmra.mxu0 %v610
        %v646 = vpop.f32.mrf.mxu0
        %v647 = vadd.f32 %v573, %v646
        %v648 = vpop.f32.mrf.mxu0
        %649 = vdwg.mxu0
        %v654 = vunpack.c.l.b16 %v507
        %v655 = vunpack.c.l.b16 %v508
        %v656 = vunpack.c.l.b16 %v509
        %v657 = vunpack.c.l.b16 %v510
        %v658 = vpack.c.b16 %v655, %v654
        %v659 = vpack.c.b16 %v657, %v656
        %662 = vmatpush.bf16.msra.mxu0 0
        %663 = vmatpush.bf16.msra.mxu0 0
        %664 = vmatpush.bf16.msra.mxu0 0
        %665 = vmatpush.bf16.msra.mxu0 0
        %666 = vmatpush.bf16.msra.mxu0 0
        %667 = vmatpush.bf16.msra.mxu0 0
        %668 = vmatpush.bf16.msra.mxu0 %v659
        %669 = vmatpush.bf16.msra.mxu0 %v658
        %670 = vmatmul.bf16.gmra.mxu0 %v610
        %v671 = vpop.f32.mrf.mxu0
        %v672 = vadd.f32 %v574, %v671
        %v673 = vpop.f32.mrf.mxu0
        %674 = vdwg.mxu0
        %v679 = vunpack.c.l.b16 %v511
        %v680 = vunpack.c.l.b16 %v512
        %v681 = vunpack.c.l.b16 %v513
        %v682 = vunpack.c.l.b16 %v514
        %v683 = vpack.c.b16 %v680, %v679
        %v684 = vpack.c.b16 %v682, %v681
        %687 = vmatpush.bf16.msra.mxu0 0
        %688 = vmatpush.bf16.msra.mxu0 0
        %689 = vmatpush.bf16.msra.mxu0 0
        %690 = vmatpush.bf16.msra.mxu0 0
        %691 = vmatpush.bf16.msra.mxu0 0
        %692 = vmatpush.bf16.msra.mxu0 0
        %693 = vmatpush.bf16.msra.mxu0 %v684
        %694 = vmatpush.bf16.msra.mxu0 %v683
        %695 = vmatmul.bf16.gmra.mxu0 %v610
        %v696 = vpop.f32.mrf.mxu0
        %v697 = vadd.f32 %v575, %v696
        %v698 = vpop.f32.mrf.mxu0
        %699 = vdwg.mxu0
        %v704 = vunpack.c.l.b16 %v515
        %v705 = vunpack.c.l.b16 %v516
        %v706 = vunpack.c.l.b16 %v517
        %v707 = vunpack.c.l.b16 %v518
        %v708 = vpack.c.b16 %v705, %v704
        %v709 = vpack.c.b16 %v707, %v706
        %712 = vmatpush.bf16.msra.mxu0 0
        %713 = vmatpush.bf16.msra.mxu0 0
        %714 = vmatpush.bf16.msra.mxu0 0
        %715 = vmatpush.bf16.msra.mxu0 0
        %716 = vmatpush.bf16.msra.mxu0 0
        %717 = vmatpush.bf16.msra.mxu0 0
        %718 = vmatpush.bf16.msra.mxu0 %v709
        %719 = vmatpush.bf16.msra.mxu0 %v708
        %720 = vmatmul.bf16.gmra.mxu0 %v610
        %v721 = vpop.f32.mrf.mxu0
        %v722 = vadd.f32 %v576, %v721
        %v723 = vpop.f32.mrf.mxu0
        %724 = vdwg.mxu0
        %v729 = vunpack.c.l.b16 %v519
        %v730 = vunpack.c.l.b16 %v520
        %v731 = vunpack.c.l.b16 %v521
        %v732 = vunpack.c.l.b16 %v522
        %v733 = vpack.c.b16 %v730, %v729
        %v734 = vpack.c.b16 %v732, %v731
        %737 = vmatpush.bf16.msra.mxu0 0
        %738 = vmatpush.bf16.msra.mxu0 0
        %739 = vmatpush.bf16.msra.mxu0 0
        %740 = vmatpush.bf16.msra.mxu0 0
        %741 = vmatpush.bf16.msra.mxu0 0
        %742 = vmatpush.bf16.msra.mxu0 0
        %743 = vmatpush.bf16.msra.mxu0 %v734
        %744 = vmatpush.bf16.msra.mxu0 %v733
        %745 = vmatmul.bf16.gmra.mxu0 %v610
        %v746 = vpop.f32.mrf.mxu0
        %v747 = vadd.f32 %v577, %v746
        %v748 = vpop.f32.mrf.mxu0
        %749 = vdwg.mxu0
        %v754 = vunpack.c.l.b16 %v523
        %v755 = vunpack.c.l.b16 %v524
        %v756 = vunpack.c.l.b16 %v525
        %v757 = vunpack.c.l.b16 %v526
        %v758 = vpack.c.b16 %v755, %v754
        %v759 = vpack.c.b16 %v757, %v756
        %762 = vmatpush.bf16.msra.mxu0 0
        %763 = vmatpush.bf16.msra.mxu0 0
        %764 = vmatpush.bf16.msra.mxu0 0
        %765 = vmatpush.bf16.msra.mxu0 0
        %766 = vmatpush.bf16.msra.mxu0 0
        %767 = vmatpush.bf16.msra.mxu0 0
        %768 = vmatpush.bf16.msra.mxu0 %v759
        %769 = vmatpush.bf16.msra.mxu0 %v758
        %770 = vmatmul.bf16.gmra.mxu0 %v610
        %v771 = vpop.f32.mrf.mxu0
        %v772 = vadd.f32 %v578, %v771
        %v773 = vpop.f32.mrf.mxu0
        %774 = vdwg.mxu0
        %v779 = vunpack.c.l.b16 %v527
        %v780 = vunpack.c.l.b16 %v528
        %v781 = vunpack.c.l.b16 %v529
        %v782 = vunpack.c.l.b16 %v530
        %v783 = vpack.c.b16 %v780, %v779
        %v784 = vpack.c.b16 %v782, %v781
        %787 = vmatpush.bf16.msra.mxu0 0
        %788 = vmatpush.bf16.msra.mxu0 0
        %789 = vmatpush.bf16.msra.mxu0 0
        %790 = vmatpush.bf16.msra.mxu0 0
        %791 = vmatpush.bf16.msra.mxu0 0
        %792 = vmatpush.bf16.msra.mxu0 0
        %793 = vmatpush.bf16.msra.mxu0 %v784
        %794 = vmatpush.bf16.msra.mxu0 %v783
        %795 = vmatmul.bf16.gmra.mxu0 %v610
        %v796 = vpop.f32.mrf.mxu0
        %v797 = vadd.f32 %v579, %v796
        %v798 = vpop.f32.mrf.mxu0
        %799 = vdwg.mxu0
        %v804 = vunpack.c.l.b16 %v531
        %v805 = vunpack.c.l.b16 %v532
        %v806 = vunpack.c.l.b16 %v533
        %v807 = vunpack.c.l.b16 %v534
        %v808 = vpack.c.b16 %v805, %v804
        %v809 = vpack.c.b16 %v807, %v806
        %812 = vmatpush.bf16.msra.mxu0 0
        %813 = vmatpush.bf16.msra.mxu0 0
        %814 = vmatpush.bf16.msra.mxu0 0
        %815 = vmatpush.bf16.msra.mxu0 0
        %816 = vmatpush.bf16.msra.mxu0 0
        %817 = vmatpush.bf16.msra.mxu0 0
        %818 = vmatpush.bf16.msra.mxu0 %v809
        %819 = vmatpush.bf16.msra.mxu0 %v808
        %820 = vmatmul.bf16.gmra.mxu0 %v610
        %v821 = vpop.f32.mrf.mxu0
        %v822 = vadd.f32 %v580, %v821
        %v823 = vpop.f32.mrf.mxu0
        %824 = vdwg.mxu0
        %v829 = vunpack.c.l.b16 %v535
        %v830 = vunpack.c.l.b16 %v536
        %v831 = vunpack.c.l.b16 %v537
        %v832 = vunpack.c.l.b16 %v538
        %v833 = vpack.c.b16 %v830, %v829
        %v834 = vpack.c.b16 %v832, %v831
        %837 = vmatpush.bf16.msra.mxu0 0
        %838 = vmatpush.bf16.msra.mxu0 0
        %839 = vmatpush.bf16.msra.mxu0 0
        %840 = vmatpush.bf16.msra.mxu0 0
        %841 = vmatpush.bf16.msra.mxu0 0
        %842 = vmatpush.bf16.msra.mxu0 0
        %843 = vmatpush.bf16.msra.mxu0 %v834
        %844 = vmatpush.bf16.msra.mxu0 %v833
        %845 = vmatmul.bf16.gmra.mxu0 %v610
        %v846 = vpop.f32.mrf.mxu0
        %v847 = vadd.f32 %v581, %v846
        %v848 = vpop.f32.mrf.mxu0
        %849 = vdwg.mxu0
        %v854 = vunpack.c.l.b16 %v539
        %v855 = vunpack.c.l.b16 %v540
        %v856 = vunpack.c.l.b16 %v541
        %v857 = vunpack.c.l.b16 %v542
        %v858 = vpack.c.b16 %v855, %v854
        %v859 = vpack.c.b16 %v857, %v856
        %862 = vmatpush.bf16.msra.mxu0 0
        %863 = vmatpush.bf16.msra.mxu0 0
        %864 = vmatpush.bf16.msra.mxu0 0
        %865 = vmatpush.bf16.msra.mxu0 0
        %866 = vmatpush.bf16.msra.mxu0 0
        %867 = vmatpush.bf16.msra.mxu0 0
        %868 = vmatpush.bf16.msra.mxu0 %v859
        %869 = vmatpush.bf16.msra.mxu0 %v858
        %870 = vmatmul.bf16.gmra.mxu0 %v610
        %v871 = vpop.f32.mrf.mxu0
        %v872 = vadd.f32 %v582, %v871
        %v873 = vpop.f32.mrf.mxu0
        %874 = vdwg.mxu0
        %v879 = vunpack.c.l.b16 %v543
        %v880 = vunpack.c.l.b16 %v544
        %v881 = vunpack.c.l.b16 %v545
        %v882 = vunpack.c.l.b16 %v546
        %v883 = vpack.c.b16 %v880, %v879
        %v884 = vpack.c.b16 %v882, %v881
        %887 = vmatpush.bf16.msra.mxu0 0
        %888 = vmatpush.bf16.msra.mxu0 0
        %889 = vmatpush.bf16.msra.mxu0 0
        %890 = vmatpush.bf16.msra.mxu0 0
        %891 = vmatpush.bf16.msra.mxu0 0
        %892 = vmatpush.bf16.msra.mxu0 0
        %893 = vmatpush.bf16.msra.mxu0 %v884
        %894 = vmatpush.bf16.msra.mxu0 %v883
        %895 = vmatmul.bf16.gmra.mxu0 %v610
        %v896 = vpop.f32.mrf.mxu0
        %v897 = vadd.f32 %v583, %v896
        %v898 = vpop.f32.mrf.mxu0
        %899 = vdwg.mxu0
        %v900 = vld [vmem:[%s6] sm:$0xf]
        %v901 = vld [vmem:[%s6 + $0x4] sm:$0xf]
        %v902 = vld [vmem:[%s6 + $0x8] sm:$0xf]
        %v903 = vld [vmem:[%s6 + $0xc] sm:$0xf]
        %v904 = vpack.c.bf16 %v622, %v622
        %v905 = vpack.c.bf16 %v647, %v647
        %v906 = vpack.c.bf16 %v672, %v672
        %v907 = vpack.c.bf16 %v697, %v697
        %v908 = vpack.c.bf16 %v722, %v722
        %v909 = vpack.c.bf16 %v747, %v747
        %v910 = vpack.c.bf16 %v772, %v772
        %v911 = vpack.c.bf16 %v797, %v797
        %v913 = vperm.slane %v486, 0
        %vm915 = vcmask 64512
        %v917 = vsel %vm915, %v904, 0
        %v920 = vsel %vm915, %v908, 0
        %922 = vmatpush.bf16.xpose.msra.mxu0 0
        %923 = vmatpush.bf16.xpose.msra.mxu0 0
        %924 = vmatpush.bf16.xpose.msra.mxu0 0
        %925 = vmatpush.bf16.xpose.msra.mxu0 0
        %926 = vmatpush.bf16.xpose.msra.mxu0 0
        %927 = vmatpush.bf16.xpose.msra.mxu0 0
        %928 = vmatpush.bf16.xpose.msra.mxu0 0
        %929 = vmatpush.bf16.xpose.msra.mxu0 %v920
        %930 = vmatmul.bf16.gmra.mxu0 %v917
        %v931 = vpop.f32.mrf.mxu0
        %v932 = vadd.f32 %v913, %v931
        %v933 = vpop.f32.mrf.mxu0
        %934 = vdwg.mxu0
        %v936 = vsel %vm915, %v905, 0
        %v939 = vsel %vm915, %v909, 0
        %941 = vmatpush.bf16.xpose.msra.mxu0 0
        %942 = vmatpush.bf16.xpose.msra.mxu0 0
        %943 = vmatpush.bf16.xpose.msra.mxu0 0
        %944 = vmatpush.bf16.xpose.msra.mxu0 0
        %945 = vmatpush.bf16.xpose.msra.mxu0 0
        %946 = vmatpush.bf16.xpose.msra.mxu0 0
        %947 = vmatpush.bf16.xpose.msra.mxu0 0
        %948 = vmatpush.bf16.xpose.msra.mxu0 %v939
        %949 = vmatmul.bf16.gmra.mxu0 %v936
        %v950 = vpop.f32.mrf.mxu0
        %v951 = vadd.f32 %v913, %v950
        %v952 = vpop.f32.mrf.mxu0
        %953 = vdwg.mxu0
        %v955 = vsel %vm915, %v906, 0
        %v958 = vsel %vm915, %v910, 0
        %960 = vmatpush.bf16.xpose.msra.mxu0 0
        %961 = vmatpush.bf16.xpose.msra.mxu0 0
        %962 = vmatpush.bf16.xpose.msra.mxu0 0
        %963 = vmatpush.bf16.xpose.msra.mxu0 0
        %964 = vmatpush.bf16.xpose.msra.mxu0 0
        %965 = vmatpush.bf16.xpose.msra.mxu0 0
        %966 = vmatpush.bf16.xpose.msra.mxu0 0
        %967 = vmatpush.bf16.xpose.msra.mxu0 %v958
        %968 = vmatmul.bf16.gmra.mxu0 %v955
        %v969 = vpop.f32.mrf.mxu0
        %v970 = vadd.f32 %v913, %v969
        %v971 = vpop.f32.mrf.mxu0
        %972 = vdwg.mxu0
        %v974 = vsel %vm915, %v907, 0
        %v977 = vsel %vm915, %v911, 0
        %979 = vmatpush.bf16.xpose.msra.mxu0 0
        %980 = vmatpush.bf16.xpose.msra.mxu0 0
        %981 = vmatpush.bf16.xpose.msra.mxu0 0
        %982 = vmatpush.bf16.xpose.msra.mxu0 0
        %983 = vmatpush.bf16.xpose.msra.mxu0 0
        %984 = vmatpush.bf16.xpose.msra.mxu0 0
        %985 = vmatpush.bf16.xpose.msra.mxu0 0
        %986 = vmatpush.bf16.xpose.msra.mxu0 %v977
        %987 = vmatmul.bf16.gmra.mxu0 %v974
        %v988 = vpop.f32.mrf.mxu0
        %v989 = vadd.f32 %v913, %v988
        %v990 = vpop.f32.mrf.mxu0
        %991 = vdwg.mxu0
        %v992 = vsel %vm915, %v932, -inf
        %993 = vmax.xlane.f32.xlu0 %v992
        %v994 = vpop.xlane.xlu0 %993
        %v995 = vsel %vm915, %v951, -inf
        %996 = vmax.xlane.f32.xlu0 %v995
        %v997 = vpop.xlane.xlu0 %996
        %v998 = vsel %vm915, %v970, -inf
        %999 = vmax.xlane.f32.xlu0 %v998
        %v1000 = vpop.xlane.xlu0 %999
        %v1001 = vsel %vm915, %v989, -inf
        %1002 = vmax.xlane.f32.xlu0 %v1001
        %v1003 = vpop.xlane.xlu0 %1002
        %v1004 = vsub.f32 %v932, %v994
        %v1005 = vsub.f32 %v951, %v997
        %v1006 = vsub.f32 %v970, %v1000
        %v1007 = vsub.f32 %v989, %v1003
        %v1008 = vmul.f32 %v1004, 1.442695
        %v1009 = vpow.pop %v1008
        %v1010 = vmul.f32 %v1005, 1.442695
        %v1011 = vpow.pop %v1010
        %v1012 = vmul.f32 %v1006, 1.442695
        %v1013 = vpow.pop %v1012
        %v1014 = vmul.f32 %v1007, 1.442695
        %v1015 = vpow.pop %v1014
        %v1016 = vsel %vm915, %v1009, 0.0
        %1017 = vadd.xlane.f32.xlu0 %v1016
        %v1018 = vpop.xlane.xlu0 %1017
        %v1019 = vsel %vm915, %v1011, 0.0
        %1020 = vadd.xlane.f32.xlu0 %v1019
        %v1021 = vpop.xlane.xlu0 %1020
        %v1022 = vsel %vm915, %v1013, 0.0
        %1023 = vadd.xlane.f32.xlu0 %v1022
        %v1024 = vpop.xlane.xlu0 %1023
        %v1025 = vsel %vm915, %v1015, 0.0
        %1026 = vadd.xlane.f32.xlu0 %v1025
        %v1027 = vpop.xlane.xlu0 %1026
        %v1028 = vrcp.pop %v1018
        %v1029 = vrcp.pop %v1021
        %v1030 = vrcp.pop %v1024
        %v1031 = vrcp.pop %v1027
        %v1032 = vmul.f32 %v1009, %v1028
        %v1033 = vmul.f32 %v1011, %v1029
        %v1034 = vmul.f32 %v1013, %v1030
        %v1035 = vmul.f32 %v1015, %v1031
        %v1036 = vpack.c.bf16 %v1032, %v1032
        %v1037 = vpack.c.bf16 %v1033, %v1033
        %v1038 = vpack.c.bf16 %v1034, %v1034
        %v1039 = vpack.c.bf16 %v1035, %v1035
        %v1040 = vpack.c.bf16 %v822, %v822
        %v1041 = vpack.c.bf16 %v847, %v847
        %v1042 = vpack.c.bf16 %v872, %v872
        %v1043 = vpack.c.bf16 %v897, %v897
        %v1045 = vsel %vm915, %v1036, 0
        %vm1047 = vcmask 1043456
        %v1049 = vsel %vm1047, %v1040, 0
        %1051 = vmatpush.bf16.msra.mxu0 0
        %1052 = vmatpush.bf16.msra.mxu0 0
        %1053 = vmatpush.bf16.msra.mxu0 0
        %1054 = vmatpush.bf16.msra.mxu0 0
        %1055 = vmatpush.bf16.msra.mxu0 0
        %1056 = vmatpush.bf16.msra.mxu0 0
        %1057 = vmatpush.bf16.msra.mxu0 0
        %1058 = vmatpush.bf16.msra.mxu0 %v1049
        %1059 = vmatmul.bf16.gmra.mxu0 %v1045
        %v1060 = vpop.f32.mrf.mxu0
        %v1061 = vadd.f32 0.0, %v1060
        %v1062 = vpop.f32.mrf.mxu0
        %1063 = vdwg.mxu0
        %v1065 = vsel %vm915, %v1037, 0
        %v1068 = vsel %vm1047, %v1041, 0
        %1070 = vmatpush.bf16.msra.mxu0 0
        %1071 = vmatpush.bf16.msra.mxu0 0
        %1072 = vmatpush.bf16.msra.mxu0 0
        %1073 = vmatpush.bf16.msra.mxu0 0
        %1074 = vmatpush.bf16.msra.mxu0 0
        %1075 = vmatpush.bf16.msra.mxu0 0
        %1076 = vmatpush.bf16.msra.mxu0 0
        %1077 = vmatpush.bf16.msra.mxu0 %v1068
        %1078 = vmatmul.bf16.gmra.mxu0 %v1065
        %v1079 = vpop.f32.mrf.mxu0
        %v1080 = vadd.f32 0.0, %v1079
        %v1081 = vpop.f32.mrf.mxu0
        %1082 = vdwg.mxu0
        %v1084 = vsel %vm915, %v1038, 0
        %v1087 = vsel %vm1047, %v1042, 0
        %1089 = vmatpush.bf16.msra.mxu0 0
        %1090 = vmatpush.bf16.msra.mxu0 0
        %1091 = vmatpush.bf16.msra.mxu0 0
        %1092 = vmatpush.bf16.msra.mxu0 0
        %1093 = vmatpush.bf16.msra.mxu0 0
        %1094 = vmatpush.bf16.msra.mxu0 0
        %1095 = vmatpush.bf16.msra.mxu0 0
        %1096 = vmatpush.bf16.msra.mxu0 %v1087
        %1097 = vmatmul.bf16.gmra.mxu0 %v1084
        %v1098 = vpop.f32.mrf.mxu0
        %v1099 = vadd.f32 0.0, %v1098
        %v1100 = vpop.f32.mrf.mxu0
        %1101 = vdwg.mxu0
        %v1103 = vsel %vm915, %v1039, 0
        %v1106 = vsel %vm1047, %v1043, 0
        %1108 = vmatpush.bf16.msra.mxu0 0
        %1109 = vmatpush.bf16.msra.mxu0 0
        %1110 = vmatpush.bf16.msra.mxu0 0
        %1111 = vmatpush.bf16.msra.mxu0 0
        %1112 = vmatpush.bf16.msra.mxu0 0
        %1113 = vmatpush.bf16.msra.mxu0 0
        %1114 = vmatpush.bf16.msra.mxu0 0
        %1115 = vmatpush.bf16.msra.mxu0 %v1106
        %1116 = vmatmul.bf16.gmra.mxu0 %v1103
        %v1117 = vpop.f32.mrf.mxu0
        %v1118 = vadd.f32 0.0, %v1117
        %v1119 = vpop.f32.mrf.mxu0
        %1120 = vdwg.mxu0
        %v1121 = vpack.c.bf16 %v1061, %v1061
        %v1122 = vpack.c.bf16 %v1080, %v1080
        %v1123 = vpack.c.bf16 %v1099, %v1099
        %v1124 = vpack.c.bf16 %v1118, %v1118
        %v1126 = vsel %vm915, %v1121, 0
        %v1129 = vsel %vm1047, %v900, 0
        %1131 = vmatpush.bf16.msra.mxu0 0
        %1132 = vmatpush.bf16.msra.mxu0 0
        %1133 = vmatpush.bf16.msra.mxu0 0
        %1134 = vmatpush.bf16.msra.mxu0 0
        %1135 = vmatpush.bf16.msra.mxu0 0
        %1136 = vmatpush.bf16.msra.mxu0 0
        %1137 = vmatpush.bf16.msra.mxu0 0
        %1138 = vmatpush.bf16.msra.mxu0 %v1129
        %1139 = vmatmul.bf16.gmra.mxu0 %v1126
        %v1140 = vpop.f32.mrf.mxu0
        %v1141 = vadd.f32 0.0, %v1140
        %v1142 = vpop.f32.mrf.mxu0
        %1143 = vdwg.mxu0
        %v1145 = vsel %vm915, %v1122, 0
        %v1148 = vsel %vm1047, %v901, 0
        %1150 = vmatpush.bf16.msra.mxu0 0
        %1151 = vmatpush.bf16.msra.mxu0 0
        %1152 = vmatpush.bf16.msra.mxu0 0
        %1153 = vmatpush.bf16.msra.mxu0 0
        %1154 = vmatpush.bf16.msra.mxu0 0
        %1155 = vmatpush.bf16.msra.mxu0 0
        %1156 = vmatpush.bf16.msra.mxu0 0
        %1157 = vmatpush.bf16.msra.mxu0 %v1148
        %1158 = vmatmul.bf16.gmra.mxu0 %v1145
        %v1159 = vpop.f32.mrf.mxu0
        %v1160 = vadd.f32 0.0, %v1159
        %v1161 = vpop.f32.mrf.mxu0
        %1162 = vdwg.mxu0
        %v1164 = vsel %vm915, %v1123, 0
        %v1167 = vsel %vm1047, %v902, 0
        %1169 = vmatpush.bf16.msra.mxu0 0
        %1170 = vmatpush.bf16.msra.mxu0 0
        %1171 = vmatpush.bf16.msra.mxu0 0
        %1172 = vmatpush.bf16.msra.mxu0 0
        %1173 = vmatpush.bf16.msra.mxu0 0
        %1174 = vmatpush.bf16.msra.mxu0 0
        %1175 = vmatpush.bf16.msra.mxu0 0
        %1176 = vmatpush.bf16.msra.mxu0 %v1167
        %1177 = vmatmul.bf16.gmra.mxu0 %v1164
        %v1178 = vpop.f32.mrf.mxu0
        %v1179 = vadd.f32 0.0, %v1178
        %v1180 = vpop.f32.mrf.mxu0
        %1181 = vdwg.mxu0
        %v1183 = vsel %vm915, %v1124, 0
        %v1186 = vsel %vm1047, %v903, 0
        %1188 = vmatpush.bf16.msra.mxu0 0
        %1189 = vmatpush.bf16.msra.mxu0 0
        %1190 = vmatpush.bf16.msra.mxu0 0
        %1191 = vmatpush.bf16.msra.mxu0 0
        %1192 = vmatpush.bf16.msra.mxu0 0
        %1193 = vmatpush.bf16.msra.mxu0 0
        %1194 = vmatpush.bf16.msra.mxu0 0
        %1195 = vmatpush.bf16.msra.mxu0 %v1186
        %1196 = vmatmul.bf16.gmra.mxu0 %v1183
        %v1197 = vpop.f32.mrf.mxu0
        %v1198 = vadd.f32 0.0, %v1197
        %v1199 = vpop.f32.mrf.mxu0
        %1200 = vdwg.mxu0
        %v1201 = vsel %vm608, %v1141, 0.0
        %v1202 = vsel %vm608, %v1160, 0.0
        %v1203 = vadd.f32 %v1201, %v1202
        %v1204 = vsel %vm608, %v1179, 0.0
        %v1205 = vadd.f32 %v1203, %v1204
        %v1206 = vsel %vm608, %v1198, 0.0
        %v1207 = vadd.f32 %v1205, %v1206
        %v1208 = vperm.slane %v482, 0
        %v1209 = vadd.f32 %v1207, %v1208
        %v1210 = vadd.f32 %v498, %v1209
        %v1211 = vsel %vm608, %v1210, 0.0
        %1212 = vadd.xlane.f32.xlu0 %v1211
        %v1213 = vpop.xlane.xlu0 %1212
        %v1214 = vrcp.pop 32.0
        %v1215 = vmul.f32 32.0, %v1214
        %v1216 = vsub.f32 1.0, %v1215
        %v1217 = vmul.f32 %v1214, %v1216
        %v1218 = vadd.f32 %v1214, %v1217
        %vm1219 = vweird.f32 %v1214
        %v1220 = vsel %vm1219, %v1214, %v1218
        %v1221 = vmul.f32 %v1213, %v1220
        %v1222 = vsub.f32 %v1210, %v1221
        %v1223 = vmul.f32 %v1222, %v1222
        %v1224 = vsel %vm608, %v1223, 0.0
        %1225 = vadd.xlane.f32.xlu0 %v1224
        %v1226 = vpop.xlane.xlu0 %1225
        %v1227 = vmul.f32 %v1226, %v1220
        %v1228 = vadd.f32 %v1227, 1e-05
        %v1229 = vrsqrt.pop %v1228
        %v1230 = vmul.f32 %v1229, %v1228
        %v1231 = vmul.f32 %v1230, %v1229
        %v1232 = vmul.f32 0.5, %v1231
        %v1233 = vsub.f32 1.5, %v1232
        %v1234 = vmul.f32 %v1229, %v1233
        %vm1235 = vweird.f32 %v1228
        %vm1236 = vweird.f32 %v1229
        %vm1237 = vmor %vm1235, %vm1236
        %v1238 = vsel %vm1237, %v1229, %v1234
        %v1239 = vmul.f32 %v1222, %v1238
        %v1240 = vperm.slane %v482, 1
        %v1241 = vmul.f32 %v1239, %v1240
        %v1242 = vperm.slane %v482, 2
        %v1243 = vadd.f32 %v1241, %v1242
        %v1244 = vld [vmem:[%s7] sm:$0xf]
        %v1245 = vld [vmem:[%s7 + $0x4] sm:$0xf]
        %v1246 = vld [vmem:[%s7 + $0x8] sm:$0xf]
        %v1247 = vld [vmem:[%s7 + $0xc] sm:$0xf]
        %v1248 = vld [vmem:[%s8] sm:$0x1]
        %v1249 = vld [vmem:[%s9] sm:$0xf]
        %v1250 = vld [vmem:[%s9 + $0x4] sm:$0xf]
        %v1251 = vld [vmem:[%s9 + $0x8] sm:$0xf]
        %v1252 = vld [vmem:[%s9 + $0xc] sm:$0xf]
        %v1253 = vld [vmem:[%s9 + $0x10] sm:$0xf]
        %v1254 = vld [vmem:[%s9 + $0x14] sm:$0xf]
        %v1255 = vld [vmem:[%s9 + $0x18] sm:$0xf]
        %v1256 = vld [vmem:[%s9 + $0x1c] sm:$0xf]
        %v1257 = vpack.c.bf16 %v1243, %v1243
        %v1259 = vperm.slane %v1248, 0
        %v1265 = vunpack.c.l.b16 %v1244
        %v1266 = vunpack.c.l.b16 %v1245
        %v1267 = vunpack.c.l.b16 %v1246
        %v1268 = vunpack.c.l.b16 %v1247
        %v1269 = vpack.c.b16 %v1266, %v1265
        %v1270 = vpack.c.b16 %v1268, %v1267
        %v1274 = vsel %vm608, %v1257, 0
        %1276 = vmatpush.bf16.msra.mxu0 0
        %1277 = vmatpush.bf16.msra.mxu0 0
        %1278 = vmatpush.bf16.msra.mxu0 0
        %1279 = vmatpush.bf16.msra.mxu0 0
        %1280 = vmatpush.bf16.msra.mxu0 0
        %1281 = vmatpush.bf16.msra.mxu0 0
        %1282 = vmatpush.bf16.msra.mxu0 %v1270
        %1283 = vmatpush.bf16.msra.mxu0 %v1269
        %1284 = vmatmul.bf16.gmra.mxu0 %v1274
        %v1285 = vpop.f32.mrf.mxu0
        %v1286 = vadd.f32 %v1259, %v1285
        %v1287 = vpop.f32.mrf.mxu0
        %1288 = vdwg.mxu0
        %v1289 = vmax.f32 %v1286, 0.0
        %v1290 = vpack.c.bf16 %v1289, %v1289
        %v1291 = vperm.slane %v482, 3
        %v1300 = vunpack.c.l.b16 %v1249
        %v1301 = vunpack.c.l.b16 %v1250
        %v1302 = vunpack.c.l.b16 %v1251
        %v1303 = vunpack.c.l.b16 %v1252
        %v1304 = vunpack.c.l.b16 %v1253
        %v1305 = vunpack.c.l.b16 %v1254
        %v1306 = vunpack.c.l.b16 %v1255
        %v1307 = vunpack.c.l.b16 %v1256
        %v1308 = vpack.c.b16 %v1301, %v1300
        %v1309 = vpack.c.b16 %v1303, %v1302
        %v1310 = vpack.c.b16 %v1305, %v1304
        %v1311 = vpack.c.b16 %v1307, %v1306
        %vm1316 = vcmask 523264
        %v1318 = vsel %vm1316, %v1290, 0
        %1320 = vmatpush.bf16.msra.mxu0 0
        %1321 = vmatpush.bf16.msra.mxu0 0
        %1322 = vmatpush.bf16.msra.mxu0 0
        %1323 = vmatpush.bf16.msra.mxu0 0
        %1324 = vmatpush.bf16.msra.mxu0 %v1311
        %1325 = vmatpush.bf16.msra.mxu0 %v1310
        %1326 = vmatpush.bf16.msra.mxu0 %v1309
        %1327 = vmatpush.bf16.msra.mxu0 %v1308
        %1328 = vmatmul.bf16.gmra.mxu0 %v1318
        %v1329 = vpop.f32.mrf.mxu0
        %v1330 = vadd.f32 %v1291, %v1329
        %v1331 = vpop.f32.mrf.mxu0
        %1332 = vdwg.mxu0
        %v1333 = vadd.f32 %v1243, %v1330
        %v1334 = vsel %vm608, %v1333, 0.0
        %1335 = vadd.xlane.f32.xlu0 %v1334
        %v1336 = vpop.xlane.xlu0 %1335
        %v1337 = vmul.f32 %v1336, %v1220
        %v1338 = vsub.f32 %v1333, %v1337
        %v1339 = vmul.f32 %v1338, %v1338
        %v1340 = vsel %vm608, %v1339, 0.0
        %1341 = vadd.xlane.f32.xlu0 %v1340
        %v1342 = vpop.xlane.xlu0 %1341
        %v1343 = vmul.f32 %v1342, %v1220
        %v1344 = vadd.f32 %v1343, 1e-05
        %v1345 = vrsqrt.pop %v1344
        %v1346 = vmul.f32 %v1345, %v1344
        %v1347 = vmul.f32 %v1346, %v1345
        %v1348 = vmul.f32 0.5, %v1347
        %v1349 = vsub.f32 1.5, %v1348
        %v1350 = vmul.f32 %v1345, %v1349
        %vm1351 = vweird.f32 %v1344
        %vm1352 = vweird.f32 %v1345
        %vm1353 = vmor %vm1351, %vm1352
        %v1354 = vsel %vm1353, %v1345, %v1350
        %v1355 = vmul.f32 %v1338, %v1354
        %v1356 = vperm.slane %v482, 4
        %v1357 = vmul.f32 %v1355, %v1356
        %v1358 = vperm.slane %v482, 5
        %v1359 = vadd.f32 %v1357, %v1358
        %s1360 = scalar_lea.vmem %s4, 192
        %v1361 = vld [vmem:[%s1360] sm:$0xf]
        %v1362 = vld [vmem:[%s1360 + $0x4] sm:$0xf]
        %v1363 = vld [vmem:[%s1360 + $0x8] sm:$0xf]
        %v1364 = vld [vmem:[%s1360 + $0xc] sm:$0xf]
        %v1365 = vld [vmem:[%s1360 + $0x10] sm:$0xf]
        %v1366 = vld [vmem:[%s1360 + $0x14] sm:$0xf]
        %v1367 = vld [vmem:[%s1360 + $0x18] sm:$0xf]
        %v1368 = vld [vmem:[%s1360 + $0x1c] sm:$0xf]
        %v1369 = vld [vmem:[%s1360 + $0x20] sm:$0xf]
        %v1370 = vld [vmem:[%s1360 + $0x24] sm:$0xf]
        %v1371 = vld [vmem:[%s1360 + $0x28] sm:$0xf]
        %v1372 = vld [vmem:[%s1360 + $0x2c] sm:$0xf]
        %v1373 = vld [vmem:[%s1360 + $0x30] sm:$0xf]
        %v1374 = vld [vmem:[%s1360 + $0x34] sm:$0xf]
        %v1375 = vld [vmem:[%s1360 + $0x38] sm:$0xf]
        %v1376 = vld [vmem:[%s1360 + $0x3c] sm:$0xf]
        %v1377 = vld [vmem:[%s1360 + $0x40] sm:$0xf]
        %v1378 = vld [vmem:[%s1360 + $0x44] sm:$0xf]
        %v1379 = vld [vmem:[%s1360 + $0x48] sm:$0xf]
        %v1380 = vld [vmem:[%s1360 + $0x4c] sm:$0xf]
        %v1381 = vld [vmem:[%s1360 + $0x50] sm:$0xf]
        %v1382 = vld [vmem:[%s1360 + $0x54] sm:$0xf]
        %v1383 = vld [vmem:[%s1360 + $0x58] sm:$0xf]
        %v1384 = vld [vmem:[%s1360 + $0x5c] sm:$0xf]
        %v1385 = vld [vmem:[%s1360 + $0x60] sm:$0xf]
        %v1386 = vld [vmem:[%s1360 + $0x64] sm:$0xf]
        %v1387 = vld [vmem:[%s1360 + $0x68] sm:$0xf]
        %v1388 = vld [vmem:[%s1360 + $0x6c] sm:$0xf]
        %v1389 = vld [vmem:[%s1360 + $0x70] sm:$0xf]
        %v1390 = vld [vmem:[%s1360 + $0x74] sm:$0xf]
        %v1391 = vld [vmem:[%s1360 + $0x78] sm:$0xf]
        %v1392 = vld [vmem:[%s1360 + $0x7c] sm:$0xf]
        %v1393 = vld [vmem:[%s1360 + $0x80] sm:$0xf]
        %v1394 = vld [vmem:[%s1360 + $0x84] sm:$0xf]
        %v1395 = vld [vmem:[%s1360 + $0x88] sm:$0xf]
        %v1396 = vld [vmem:[%s1360 + $0x8c] sm:$0xf]
        %v1397 = vld [vmem:[%s1360 + $0x90] sm:$0xf]
        %v1398 = vld [vmem:[%s1360 + $0x94] sm:$0xf]
        %v1399 = vld [vmem:[%s1360 + $0x98] sm:$0xf]
        %v1400 = vld [vmem:[%s1360 + $0x9c] sm:$0xf]
        %v1401 = vld [vmem:[%s1360 + $0xa0] sm:$0xf]
        %v1402 = vld [vmem:[%s1360 + $0xa4] sm:$0xf]
        %v1403 = vld [vmem:[%s1360 + $0xa8] sm:$0xf]
        %v1404 = vld [vmem:[%s1360 + $0xac] sm:$0xf]
        %v1405 = vld [vmem:[%s1360 + $0xb0] sm:$0xf]
        %v1406 = vld [vmem:[%s1360 + $0xb4] sm:$0xf]
        %v1407 = vld [vmem:[%s1360 + $0xb8] sm:$0xf]
        %v1408 = vld [vmem:[%s1360 + $0xbc] sm:$0xf]
        %s1409 = scalar_lea.vmem %s5, 12
        %v1410 = vld [vmem:[%s1409] sm:$0x1]
        %v1411 = vld [vmem:[%s1409 + $0x1] sm:$0x1]
        %v1412 = vld [vmem:[%s1409 + $0x2] sm:$0x1]
        %v1413 = vld [vmem:[%s1409 + $0x3] sm:$0x1]
        %v1414 = vld [vmem:[%s1409 + $0x4] sm:$0x1]
        %v1415 = vld [vmem:[%s1409 + $0x5] sm:$0x1]
        %v1416 = vld [vmem:[%s1409 + $0x6] sm:$0x1]
        %v1417 = vld [vmem:[%s1409 + $0x7] sm:$0x1]
        %v1418 = vld [vmem:[%s1409 + $0x8] sm:$0x1]
        %v1419 = vld [vmem:[%s1409 + $0x9] sm:$0x1]
        %v1420 = vld [vmem:[%s1409 + $0xa] sm:$0x1]
        %v1421 = vld [vmem:[%s1409 + $0xb] sm:$0x1]
        %v1422 = vpack.c.bf16 %v1359, %v1359
        %v1435 = vperm.slane %v1410, 0
        %v1436 = vperm.slane %v1411, 0
        %v1437 = vperm.slane %v1412, 0
        %v1438 = vperm.slane %v1413, 0
        %v1439 = vperm.slane %v1414, 0
        %v1440 = vperm.slane %v1415, 0
        %v1441 = vperm.slane %v1416, 0
        %v1442 = vperm.slane %v1417, 0
        %v1443 = vperm.slane %v1418, 0
        %v1444 = vperm.slane %v1419, 0
        %v1445 = vperm.slane %v1420, 0
        %v1446 = vperm.slane %v1421, 0
        %v1463 = vunpack.c.l.b16 %v1361
        %v1464 = vunpack.c.l.b16 %v1362
        %v1465 = vunpack.c.l.b16 %v1363
        %v1466 = vunpack.c.l.b16 %v1364
        %v1467 = vpack.c.b16 %v1464, %v1463
        %v1468 = vpack.c.b16 %v1466, %v1465
        %v1472 = vsel %vm608, %v1422, 0
        %1474 = vmatpush.bf16.msra.mxu0 0
        %1475 = vmatpush.bf16.msra.mxu0 0
        %1476 = vmatpush.bf16.msra.mxu0 0
        %1477 = vmatpush.bf16.msra.mxu0 0
        %1478 = vmatpush.bf16.msra.mxu0 0
        %1479 = vmatpush.bf16.msra.mxu0 0
        %1480 = vmatpush.bf16.msra.mxu0 %v1468
        %1481 = vmatpush.bf16.msra.mxu0 %v1467
        %1482 = vmatmul.bf16.gmra.mxu0 %v1472
        %v1483 = vpop.f32.mrf.mxu0
        %v1484 = vadd.f32 %v1435, %v1483
        %v1485 = vpop.f32.mrf.mxu0
        %1486 = vdwg.mxu0
        %v1491 = vunpack.c.l.b16 %v1365
        %v1492 = vunpack.c.l.b16 %v1366
        %v1493 = vunpack.c.l.b16 %v1367
        %v1494 = vunpack.c.l.b16 %v1368
        %v1495 = vpack.c.b16 %v1492, %v1491
        %v1496 = vpack.c.b16 %v1494, %v1493
        %1499 = vmatpush.bf16.msra.mxu0 0
        %1500 = vmatpush.bf16.msra.mxu0 0
        %1501 = vmatpush.bf16.msra.mxu0 0
        %1502 = vmatpush.bf16.msra.mxu0 0
        %1503 = vmatpush.bf16.msra.mxu0 0
        %1504 = vmatpush.bf16.msra.mxu0 0
        %1505 = vmatpush.bf16.msra.mxu0 %v1496
        %1506 = vmatpush.bf16.msra.mxu0 %v1495
        %1507 = vmatmul.bf16.gmra.mxu0 %v1472
        %v1508 = vpop.f32.mrf.mxu0
        %v1509 = vadd.f32 %v1436, %v1508
        %v1510 = vpop.f32.mrf.mxu0
        %1511 = vdwg.mxu0
        %v1516 = vunpack.c.l.b16 %v1369
        %v1517 = vunpack.c.l.b16 %v1370
        %v1518 = vunpack.c.l.b16 %v1371
        %v1519 = vunpack.c.l.b16 %v1372
        %v1520 = vpack.c.b16 %v1517, %v1516
        %v1521 = vpack.c.b16 %v1519, %v1518
        %1524 = vmatpush.bf16.msra.mxu0 0
        %1525 = vmatpush.bf16.msra.mxu0 0
        %1526 = vmatpush.bf16.msra.mxu0 0
        %1527 = vmatpush.bf16.msra.mxu0 0
        %1528 = vmatpush.bf16.msra.mxu0 0
        %1529 = vmatpush.bf16.msra.mxu0 0
        %1530 = vmatpush.bf16.msra.mxu0 %v1521
        %1531 = vmatpush.bf16.msra.mxu0 %v1520
        %1532 = vmatmul.bf16.gmra.mxu0 %v1472
        %v1533 = vpop.f32.mrf.mxu0
        %v1534 = vadd.f32 %v1437, %v1533
        %v1535 = vpop.f32.mrf.mxu0
        %1536 = vdwg.mxu0
        %v1541 = vunpack.c.l.b16 %v1373
        %v1542 = vunpack.c.l.b16 %v1374
        %v1543 = vunpack.c.l.b16 %v1375
        %v1544 = vunpack.c.l.b16 %v1376
        %v1545 = vpack.c.b16 %v1542, %v1541
        %v1546 = vpack.c.b16 %v1544, %v1543
        %1549 = vmatpush.bf16.msra.mxu0 0
        %1550 = vmatpush.bf16.msra.mxu0 0
        %1551 = vmatpush.bf16.msra.mxu0 0
        %1552 = vmatpush.bf16.msra.mxu0 0
        %1553 = vmatpush.bf16.msra.mxu0 0
        %1554 = vmatpush.bf16.msra.mxu0 0
        %1555 = vmatpush.bf16.msra.mxu0 %v1546
        %1556 = vmatpush.bf16.msra.mxu0 %v1545
        %1557 = vmatmul.bf16.gmra.mxu0 %v1472
        %v1558 = vpop.f32.mrf.mxu0
        %v1559 = vadd.f32 %v1438, %v1558
        %v1560 = vpop.f32.mrf.mxu0
        %1561 = vdwg.mxu0
        %v1566 = vunpack.c.l.b16 %v1377
        %v1567 = vunpack.c.l.b16 %v1378
        %v1568 = vunpack.c.l.b16 %v1379
        %v1569 = vunpack.c.l.b16 %v1380
        %v1570 = vpack.c.b16 %v1567, %v1566
        %v1571 = vpack.c.b16 %v1569, %v1568
        %1574 = vmatpush.bf16.msra.mxu0 0
        %1575 = vmatpush.bf16.msra.mxu0 0
        %1576 = vmatpush.bf16.msra.mxu0 0
        %1577 = vmatpush.bf16.msra.mxu0 0
        %1578 = vmatpush.bf16.msra.mxu0 0
        %1579 = vmatpush.bf16.msra.mxu0 0
        %1580 = vmatpush.bf16.msra.mxu0 %v1571
        %1581 = vmatpush.bf16.msra.mxu0 %v1570
        %1582 = vmatmul.bf16.gmra.mxu0 %v1472
        %v1583 = vpop.f32.mrf.mxu0
        %v1584 = vadd.f32 %v1439, %v1583
        %v1585 = vpop.f32.mrf.mxu0
        %1586 = vdwg.mxu0
        %v1591 = vunpack.c.l.b16 %v1381
        %v1592 = vunpack.c.l.b16 %v1382
        %v1593 = vunpack.c.l.b16 %v1383
        %v1594 = vunpack.c.l.b16 %v1384
        %v1595 = vpack.c.b16 %v1592, %v1591
        %v1596 = vpack.c.b16 %v1594, %v1593
        %1599 = vmatpush.bf16.msra.mxu0 0
        %1600 = vmatpush.bf16.msra.mxu0 0
        %1601 = vmatpush.bf16.msra.mxu0 0
        %1602 = vmatpush.bf16.msra.mxu0 0
        %1603 = vmatpush.bf16.msra.mxu0 0
        %1604 = vmatpush.bf16.msra.mxu0 0
        %1605 = vmatpush.bf16.msra.mxu0 %v1596
        %1606 = vmatpush.bf16.msra.mxu0 %v1595
        %1607 = vmatmul.bf16.gmra.mxu0 %v1472
        %v1608 = vpop.f32.mrf.mxu0
        %v1609 = vadd.f32 %v1440, %v1608
        %v1610 = vpop.f32.mrf.mxu0
        %1611 = vdwg.mxu0
        %v1616 = vunpack.c.l.b16 %v1385
        %v1617 = vunpack.c.l.b16 %v1386
        %v1618 = vunpack.c.l.b16 %v1387
        %v1619 = vunpack.c.l.b16 %v1388
        %v1620 = vpack.c.b16 %v1617, %v1616
        %v1621 = vpack.c.b16 %v1619, %v1618
        %1624 = vmatpush.bf16.msra.mxu0 0
        %1625 = vmatpush.bf16.msra.mxu0 0
        %1626 = vmatpush.bf16.msra.mxu0 0
        %1627 = vmatpush.bf16.msra.mxu0 0
        %1628 = vmatpush.bf16.msra.mxu0 0
        %1629 = vmatpush.bf16.msra.mxu0 0
        %1630 = vmatpush.bf16.msra.mxu0 %v1621
        %1631 = vmatpush.bf16.msra.mxu0 %v1620
        %1632 = vmatmul.bf16.gmra.mxu0 %v1472
        %v1633 = vpop.f32.mrf.mxu0
        %v1634 = vadd.f32 %v1441, %v1633
        %v1635 = vpop.f32.mrf.mxu0
        %1636 = vdwg.mxu0
        %v1641 = vunpack.c.l.b16 %v1389
        %v1642 = vunpack.c.l.b16 %v1390
        %v1643 = vunpack.c.l.b16 %v1391
        %v1644 = vunpack.c.l.b16 %v1392
        %v1645 = vpack.c.b16 %v1642, %v1641
        %v1646 = vpack.c.b16 %v1644, %v1643
        %1649 = vmatpush.bf16.msra.mxu0 0
        %1650 = vmatpush.bf16.msra.mxu0 0
        %1651 = vmatpush.bf16.msra.mxu0 0
        %1652 = vmatpush.bf16.msra.mxu0 0
        %1653 = vmatpush.bf16.msra.mxu0 0
        %1654 = vmatpush.bf16.msra.mxu0 0
        %1655 = vmatpush.bf16.msra.mxu0 %v1646
        %1656 = vmatpush.bf16.msra.mxu0 %v1645
        %1657 = vmatmul.bf16.gmra.mxu0 %v1472
        %v1658 = vpop.f32.mrf.mxu0
        %v1659 = vadd.f32 %v1442, %v1658
        %v1660 = vpop.f32.mrf.mxu0
        %1661 = vdwg.mxu0
        %v1666 = vunpack.c.l.b16 %v1393
        %v1667 = vunpack.c.l.b16 %v1394
        %v1668 = vunpack.c.l.b16 %v1395
        %v1669 = vunpack.c.l.b16 %v1396
        %v1670 = vpack.c.b16 %v1667, %v1666
        %v1671 = vpack.c.b16 %v1669, %v1668
        %1674 = vmatpush.bf16.msra.mxu0 0
        %1675 = vmatpush.bf16.msra.mxu0 0
        %1676 = vmatpush.bf16.msra.mxu0 0
        %1677 = vmatpush.bf16.msra.mxu0 0
        %1678 = vmatpush.bf16.msra.mxu0 0
        %1679 = vmatpush.bf16.msra.mxu0 0
        %1680 = vmatpush.bf16.msra.mxu0 %v1671
        %1681 = vmatpush.bf16.msra.mxu0 %v1670
        %1682 = vmatmul.bf16.gmra.mxu0 %v1472
        %v1683 = vpop.f32.mrf.mxu0
        %v1684 = vadd.f32 %v1443, %v1683
        %v1685 = vpop.f32.mrf.mxu0
        %1686 = vdwg.mxu0
        %v1691 = vunpack.c.l.b16 %v1397
        %v1692 = vunpack.c.l.b16 %v1398
        %v1693 = vunpack.c.l.b16 %v1399
        %v1694 = vunpack.c.l.b16 %v1400
        %v1695 = vpack.c.b16 %v1692, %v1691
        %v1696 = vpack.c.b16 %v1694, %v1693
        %1699 = vmatpush.bf16.msra.mxu0 0
        %1700 = vmatpush.bf16.msra.mxu0 0
        %1701 = vmatpush.bf16.msra.mxu0 0
        %1702 = vmatpush.bf16.msra.mxu0 0
        %1703 = vmatpush.bf16.msra.mxu0 0
        %1704 = vmatpush.bf16.msra.mxu0 0
        %1705 = vmatpush.bf16.msra.mxu0 %v1696
        %1706 = vmatpush.bf16.msra.mxu0 %v1695
        %1707 = vmatmul.bf16.gmra.mxu0 %v1472
        %v1708 = vpop.f32.mrf.mxu0
        %v1709 = vadd.f32 %v1444, %v1708
        %v1710 = vpop.f32.mrf.mxu0
        %1711 = vdwg.mxu0
        %v1716 = vunpack.c.l.b16 %v1401
        %v1717 = vunpack.c.l.b16 %v1402
        %v1718 = vunpack.c.l.b16 %v1403
        %v1719 = vunpack.c.l.b16 %v1404
        %v1720 = vpack.c.b16 %v1717, %v1716
        %v1721 = vpack.c.b16 %v1719, %v1718
        %1724 = vmatpush.bf16.msra.mxu0 0
        %1725 = vmatpush.bf16.msra.mxu0 0
        %1726 = vmatpush.bf16.msra.mxu0 0
        %1727 = vmatpush.bf16.msra.mxu0 0
        %1728 = vmatpush.bf16.msra.mxu0 0
        %1729 = vmatpush.bf16.msra.mxu0 0
        %1730 = vmatpush.bf16.msra.mxu0 %v1721
        %1731 = vmatpush.bf16.msra.mxu0 %v1720
        %1732 = vmatmul.bf16.gmra.mxu0 %v1472
        %v1733 = vpop.f32.mrf.mxu0
        %v1734 = vadd.f32 %v1445, %v1733
        %v1735 = vpop.f32.mrf.mxu0
        %1736 = vdwg.mxu0
        %v1741 = vunpack.c.l.b16 %v1405
        %v1742 = vunpack.c.l.b16 %v1406
        %v1743 = vunpack.c.l.b16 %v1407
        %v1744 = vunpack.c.l.b16 %v1408
        %v1745 = vpack.c.b16 %v1742, %v1741
        %v1746 = vpack.c.b16 %v1744, %v1743
        %1749 = vmatpush.bf16.msra.mxu0 0
        %1750 = vmatpush.bf16.msra.mxu0 0
        %1751 = vmatpush.bf16.msra.mxu0 0
        %1752 = vmatpush.bf16.msra.mxu0 0
        %1753 = vmatpush.bf16.msra.mxu0 0
        %1754 = vmatpush.bf16.msra.mxu0 0
        %1755 = vmatpush.bf16.msra.mxu0 %v1746
        %1756 = vmatpush.bf16.msra.mxu0 %v1745
        %1757 = vmatmul.bf16.gmra.mxu0 %v1472
        %v1758 = vpop.f32.mrf.mxu0
        %v1759 = vadd.f32 %v1446, %v1758
        %v1760 = vpop.f32.mrf.mxu0
        %1761 = vdwg.mxu0
        %s1762 = scalar_lea.vmem %s6, 16
        %v1763 = vld [vmem:[%s1762] sm:$0xf]
        %v1764 = vld [vmem:[%s1762 + $0x4] sm:$0xf]
        %v1765 = vld [vmem:[%s1762 + $0x8] sm:$0xf]
        %v1766 = vld [vmem:[%s1762 + $0xc] sm:$0xf]
        %v1767 = vpack.c.bf16 %v1484, %v1484
        %v1768 = vpack.c.bf16 %v1509, %v1509
        %v1769 = vpack.c.bf16 %v1534, %v1534
        %v1770 = vpack.c.bf16 %v1559, %v1559
        %v1771 = vpack.c.bf16 %v1584, %v1584
        %v1772 = vpack.c.bf16 %v1609, %v1609
        %v1773 = vpack.c.bf16 %v1634, %v1634
        %v1774 = vpack.c.bf16 %v1659, %v1659
        %v1776 = vsel %vm915, %v1767, 0
        %v1779 = vsel %vm915, %v1771, 0
        %1781 = vmatpush.bf16.xpose.msra.mxu0 0
        %1782 = vmatpush.bf16.xpose.msra.mxu0 0
        %1783 = vmatpush.bf16.xpose.msra.mxu0 0
        %1784 = vmatpush.bf16.xpose.msra.mxu0 0
        %1785 = vmatpush.bf16.xpose.msra.mxu0 0
        %1786 = vmatpush.bf16.xpose.msra.mxu0 0
        %1787 = vmatpush.bf16.xpose.msra.mxu0 0
        %1788 = vmatpush.bf16.xpose.msra.mxu0 %v1779
        %1789 = vmatmul.bf16.gmra.mxu0 %v1776
        %v1790 = vpop.f32.mrf.mxu0
        %v1791 = vadd.f32 %v913, %v1790
        %v1792 = vpop.f32.mrf.mxu0
        %1793 = vdwg.mxu0
        %v1795 = vsel %vm915, %v1768, 0
        %v1798 = vsel %vm915, %v1772, 0
        %1800 = vmatpush.bf16.xpose.msra.mxu0 0
        %1801 = vmatpush.bf16.xpose.msra.mxu0 0
        %1802 = vmatpush.bf16.xpose.msra.mxu0 0
        %1803 = vmatpush.bf16.xpose.msra.mxu0 0
        %1804 = vmatpush.bf16.xpose.msra.mxu0 0
        %1805 = vmatpush.bf16.xpose.msra.mxu0 0
        %1806 = vmatpush.bf16.xpose.msra.mxu0 0
        %1807 = vmatpush.bf16.xpose.msra.mxu0 %v1798
        %1808 = vmatmul.bf16.gmra.mxu0 %v1795
        %v1809 = vpop.f32.mrf.mxu0
        %v1810 = vadd.f32 %v913, %v1809
        %v1811 = vpop.f32.mrf.mxu0
        %1812 = vdwg.mxu0
        %v1814 = vsel %vm915, %v1769, 0
        %v1817 = vsel %vm915, %v1773, 0
        %1819 = vmatpush.bf16.xpose.msra.mxu0 0
        %1820 = vmatpush.bf16.xpose.msra.mxu0 0
        %1821 = vmatpush.bf16.xpose.msra.mxu0 0
        %1822 = vmatpush.bf16.xpose.msra.mxu0 0
        %1823 = vmatpush.bf16.xpose.msra.mxu0 0
        %1824 = vmatpush.bf16.xpose.msra.mxu0 0
        %1825 = vmatpush.bf16.xpose.msra.mxu0 0
        %1826 = vmatpush.bf16.xpose.msra.mxu0 %v1817
        %1827 = vmatmul.bf16.gmra.mxu0 %v1814
        %v1828 = vpop.f32.mrf.mxu0
        %v1829 = vadd.f32 %v913, %v1828
        %v1830 = vpop.f32.mrf.mxu0
        %1831 = vdwg.mxu0
        %v1833 = vsel %vm915, %v1770, 0
        %v1836 = vsel %vm915, %v1774, 0
        %1838 = vmatpush.bf16.xpose.msra.mxu0 0
        %1839 = vmatpush.bf16.xpose.msra.mxu0 0
        %1840 = vmatpush.bf16.xpose.msra.mxu0 0
        %1841 = vmatpush.bf16.xpose.msra.mxu0 0
        %1842 = vmatpush.bf16.xpose.msra.mxu0 0
        %1843 = vmatpush.bf16.xpose.msra.mxu0 0
        %1844 = vmatpush.bf16.xpose.msra.mxu0 0
        %1845 = vmatpush.bf16.xpose.msra.mxu0 %v1836
        %1846 = vmatmul.bf16.gmra.mxu0 %v1833
        %v1847 = vpop.f32.mrf.mxu0
        %v1848 = vadd.f32 %v913, %v1847
        %v1849 = vpop.f32.mrf.mxu0
        %1850 = vdwg.mxu0
        %v1851 = vsel %vm915, %v1791, -inf
        %1852 = vmax.xlane.f32.xlu0 %v1851
        %v1853 = vpop.xlane.xlu0 %1852
        %v1854 = vsel %vm915, %v1810, -inf
        %1855 = vmax.xlane.f32.xlu0 %v1854
        %v1856 = vpop.xlane.xlu0 %1855
        %v1857 = vsel %vm915, %v1829, -inf
        %1858 = vmax.xlane.f32.xlu0 %v1857
        %v1859 = vpop.xlane.xlu0 %1858
        %v1860 = vsel %vm915, %v1848, -inf
        %1861 = vmax.xlane.f32.xlu0 %v1860
        %v1862 = vpop.xlane.xlu0 %1861
        %v1863 = vsub.f32 %v1791, %v1853
        %v1864 = vsub.f32 %v1810, %v1856
        %v1865 = vsub.f32 %v1829, %v1859
        %v1866 = vsub.f32 %v1848, %v1862
        %v1867 = vmul.f32 %v1863, 1.442695
        %v1868 = vpow.pop %v1867
        %v1869 = vmul.f32 %v1864, 1.442695
        %v1870 = vpow.pop %v1869
        %v1871 = vmul.f32 %v1865, 1.442695
        %v1872 = vpow.pop %v1871
        %v1873 = vmul.f32 %v1866, 1.442695
        %v1874 = vpow.pop %v1873
        %v1875 = vsel %vm915, %v1868, 0.0
        %1876 = vadd.xlane.f32.xlu0 %v1875
        %v1877 = vpop.xlane.xlu0 %1876
        %v1878 = vsel %vm915, %v1870, 0.0
        %1879 = vadd.xlane.f32.xlu0 %v1878
        %v1880 = vpop.xlane.xlu0 %1879
        %v1881 = vsel %vm915, %v1872, 0.0
        %1882 = vadd.xlane.f32.xlu0 %v1881
        %v1883 = vpop.xlane.xlu0 %1882
        %v1884 = vsel %vm915, %v1874, 0.0
        %1885 = vadd.xlane.f32.xlu0 %v1884
        %v1886 = vpop.xlane.xlu0 %1885
        %v1887 = vrcp.pop %v1877
        %v1888 = vrcp.pop %v1880
        %v1889 = vrcp.pop %v1883
        %v1890 = vrcp.pop %v1886
        %v1891 = vmul.f32 %v1868, %v1887
        %v1892 = vmul.f32 %v1870, %v1888
        %v1893 = vmul.f32 %v1872, %v1889
        %v1894 = vmul.f32 %v1874, %v1890
        %v1895 = vpack.c.bf16 %v1891, %v1891
        %v1896 = vpack.c.bf16 %v1892, %v1892
        %v1897 = vpack.c.bf16 %v1893, %v1893
        %v1898 = vpack.c.bf16 %v1894, %v1894
        %v1899 = vpack.c.bf16 %v1684, %v1684
        %v1900 = vpack.c.bf16 %v1709, %v1709
        %v1901 = vpack.c.bf16 %v1734, %v1734
        %v1902 = vpack.c.bf16 %v1759, %v1759
        %v1904 = vsel %vm915, %v1895, 0
        %v1907 = vsel %vm1047, %v1899, 0
        %1909 = vmatpush.bf16.msra.mxu0 0
        %1910 = vmatpush.bf16.msra.mxu0 0
        %1911 = vmatpush.bf16.msra.mxu0 0
        %1912 = vmatpush.bf16.msra.mxu0 0
        %1913 = vmatpush.bf16.msra.mxu0 0
        %1914 = vmatpush.bf16.msra.mxu0 0
        %1915 = vmatpush.bf16.msra.mxu0 0
        %1916 = vmatpush.bf16.msra.mxu0 %v1907
        %1917 = vmatmul.bf16.gmra.mxu0 %v1904
        %v1918 = vpop.f32.mrf.mxu0
        %v1919 = vadd.f32 0.0, %v1918
        %v1920 = vpop.f32.mrf.mxu0
        %1921 = vdwg.mxu0
        %v1923 = vsel %vm915, %v1896, 0
        %v1926 = vsel %vm1047, %v1900, 0
        %1928 = vmatpush.bf16.msra.mxu0 0
        %1929 = vmatpush.bf16.msra.mxu0 0
        %1930 = vmatpush.bf16.msra.mxu0 0
        %1931 = vmatpush.bf16.msra.mxu0 0
        %1932 = vmatpush.bf16.msra.mxu0 0
        %1933 = vmatpush.bf16.msra.mxu0 0
        %1934 = vmatpush.bf16.msra.mxu0 0
        %1935 = vmatpush.bf16.msra.mxu0 %v1926
        %1936 = vmatmul.bf16.gmra.mxu0 %v1923
        %v1937 = vpop.f32.mrf.mxu0
        %v1938 = vadd.f32 0.0, %v1937
        %v1939 = vpop.f32.mrf.mxu0
        %1940 = vdwg.mxu0
        %v1942 = vsel %vm915, %v1897, 0
        %v1945 = vsel %vm1047, %v1901, 0
        %1947 = vmatpush.bf16.msra.mxu0 0
        %1948 = vmatpush.bf16.msra.mxu0 0
        %1949 = vmatpush.bf16.msra.mxu0 0
        %1950 = vmatpush.bf16.msra.mxu0 0
        %1951 = vmatpush.bf16.msra.mxu0 0
        %1952 = vmatpush.bf16.msra.mxu0 0
        %1953 = vmatpush.bf16.msra.mxu0 0
        %1954 = vmatpush.bf16.msra.mxu0 %v1945
        %1955 = vmatmul.bf16.gmra.mxu0 %v1942
        %v1956 = vpop.f32.mrf.mxu0
        %v1957 = vadd.f32 0.0, %v1956
        %v1958 = vpop.f32.mrf.mxu0
        %1959 = vdwg.mxu0
        %v1961 = vsel %vm915, %v1898, 0
        %v1964 = vsel %vm1047, %v1902, 0
        %1966 = vmatpush.bf16.msra.mxu0 0
        %1967 = vmatpush.bf16.msra.mxu0 0
        %1968 = vmatpush.bf16.msra.mxu0 0
        %1969 = vmatpush.bf16.msra.mxu0 0
        %1970 = vmatpush.bf16.msra.mxu0 0
        %1971 = vmatpush.bf16.msra.mxu0 0
        %1972 = vmatpush.bf16.msra.mxu0 0
        %1973 = vmatpush.bf16.msra.mxu0 %v1964
        %1974 = vmatmul.bf16.gmra.mxu0 %v1961
        %v1975 = vpop.f32.mrf.mxu0
        %v1976 = vadd.f32 0.0, %v1975
        %v1977 = vpop.f32.mrf.mxu0
        %1978 = vdwg.mxu0
        %v1979 = vpack.c.bf16 %v1919, %v1919
        %v1980 = vpack.c.bf16 %v1938, %v1938
        %v1981 = vpack.c.bf16 %v1957, %v1957
        %v1982 = vpack.c.bf16 %v1976, %v1976
        %v1984 = vsel %vm915, %v1979, 0
        %v1987 = vsel %vm1047, %v1763, 0
        %1989 = vmatpush.bf16.msra.mxu0 0
        %1990 = vmatpush.bf16.msra.mxu0 0
        %1991 = vmatpush.bf16.msra.mxu0 0
        %1992 = vmatpush.bf16.msra.mxu0 0
        %1993 = vmatpush.bf16.msra.mxu0 0
        %1994 = vmatpush.bf16.msra.mxu0 0
        %1995 = vmatpush.bf16.msra.mxu0 0
        %1996 = vmatpush.bf16.msra.mxu0 %v1987
        %1997 = vmatmul.bf16.gmra.mxu0 %v1984
        %v1998 = vpop.f32.mrf.mxu0
        %v1999 = vadd.f32 0.0, %v1998
        %v2000 = vpop.f32.mrf.mxu0
        %2001 = vdwg.mxu0
        %v2003 = vsel %vm915, %v1980, 0
        %v2006 = vsel %vm1047, %v1764, 0
        %2008 = vmatpush.bf16.msra.mxu0 0
        %2009 = vmatpush.bf16.msra.mxu0 0
        %2010 = vmatpush.bf16.msra.mxu0 0
        %2011 = vmatpush.bf16.msra.mxu0 0
        %2012 = vmatpush.bf16.msra.mxu0 0
        %2013 = vmatpush.bf16.msra.mxu0 0
        %2014 = vmatpush.bf16.msra.mxu0 0
        %2015 = vmatpush.bf16.msra.mxu0 %v2006
        %2016 = vmatmul.bf16.gmra.mxu0 %v2003
        %v2017 = vpop.f32.mrf.mxu0
        %v2018 = vadd.f32 0.0, %v2017
        %v2019 = vpop.f32.mrf.mxu0
        %2020 = vdwg.mxu0
        %v2022 = vsel %vm915, %v1981, 0
        %v2025 = vsel %vm1047, %v1765, 0
        %2027 = vmatpush.bf16.msra.mxu0 0
        %2028 = vmatpush.bf16.msra.mxu0 0
        %2029 = vmatpush.bf16.msra.mxu0 0
        %2030 = vmatpush.bf16.msra.mxu0 0
        %2031 = vmatpush.bf16.msra.mxu0 0
        %2032 = vmatpush.bf16.msra.mxu0 0
        %2033 = vmatpush.bf16.msra.mxu0 0
        %2034 = vmatpush.bf16.msra.mxu0 %v2025
        %2035 = vmatmul.bf16.gmra.mxu0 %v2022
        %v2036 = vpop.f32.mrf.mxu0
        %v2037 = vadd.f32 0.0, %v2036
        %v2038 = vpop.f32.mrf.mxu0
        %2039 = vdwg.mxu0
        %v2041 = vsel %vm915, %v1982, 0
        %v2044 = vsel %vm1047, %v1766, 0
        %2046 = vmatpush.bf16.msra.mxu0 0
        %2047 = vmatpush.bf16.msra.mxu0 0
        %2048 = vmatpush.bf16.msra.mxu0 0
        %2049 = vmatpush.bf16.msra.mxu0 0
        %2050 = vmatpush.bf16.msra.mxu0 0
        %2051 = vmatpush.bf16.msra.mxu0 0
        %2052 = vmatpush.bf16.msra.mxu0 0
        %2053 = vmatpush.bf16.msra.mxu0 %v2044
        %2054 = vmatmul.bf16.gmra.mxu0 %v2041
        %v2055 = vpop.f32.mrf.mxu0
        %v2056 = vadd.f32 0.0, %v2055
        %v2057 = vpop.f32.mrf.mxu0
        %2058 = vdwg.mxu0
        %v2059 = vsel %vm608, %v1999, 0.0
        %v2060 = vsel %vm608, %v2018, 0.0
        %v2061 = vadd.f32 %v2059, %v2060
        %v2062 = vsel %vm608, %v2037, 0.0
        %v2063 = vadd.f32 %v2061, %v2062
        %v2064 = vsel %vm608, %v2056, 0.0
        %v2065 = vadd.f32 %v2063, %v2064
        %v2066 = vperm.slane %v482, 6
        %v2067 = vadd.f32 %v2065, %v2066
        %v2068 = vadd.f32 %v1359, %v2067
        %v2069 = vsel %vm608, %v2068, 0.0
        %2070 = vadd.xlane.f32.xlu0 %v2069
        %v2071 = vpop.xlane.xlu0 %2070
        %v2072 = vmul.f32 %v2071, %v1220
        %v2073 = vsub.f32 %v2068, %v2072
        %v2074 = vmul.f32 %v2073, %v2073
        %v2075 = vsel %vm608, %v2074, 0.0
        %2076 = vadd.xlane.f32.xlu0 %v2075
        %v2077 = vpop.xlane.xlu0 %2076
        %v2078 = vmul.f32 %v2077, %v1220
        %v2079 = vadd.f32 %v2078, 1e-05
        %v2080 = vrsqrt.pop %v2079
        %v2081 = vmul.f32 %v2080, %v2079
        %v2082 = vmul.f32 %v2081, %v2080
        %v2083 = vmul.f32 0.5, %v2082
        %v2084 = vsub.f32 1.5, %v2083
        %v2085 = vmul.f32 %v2080, %v2084
        %vm2086 = vweird.f32 %v2079
        %vm2087 = vweird.f32 %v2080
        %vm2088 = vmor %vm2086, %vm2087
        %v2089 = vsel %vm2088, %v2080, %v2085
        %v2090 = vmul.f32 %v2073, %v2089
        %v2091 = vperm.slane %v482, 7
        %v2092 = vmul.f32 %v2090, %v2091
        %v2093 = vperm.slane %v483, 0
        %v2094 = vadd.f32 %v2092, %v2093
        %s2095 = scalar_lea.vmem %s7, 16
        %v2096 = vld [vmem:[%s2095] sm:$0xf]
        %v2097 = vld [vmem:[%s2095 + $0x4] sm:$0xf]
        %v2098 = vld [vmem:[%s2095 + $0x8] sm:$0xf]
        %v2099 = vld [vmem:[%s2095 + $0xc] sm:$0xf]
        %s2100 = scalar_lea.vmem %s8, 1
        %v2101 = vld [vmem:[%s2100] sm:$0x1]
        %s2102 = scalar_lea.vmem %s9, 32
        %v2103 = vld [vmem:[%s2102] sm:$0xf]
        %v2104 = vld [vmem:[%s2102 + $0x4] sm:$0xf]
        %v2105 = vld [vmem:[%s2102 + $0x8] sm:$0xf]
        %v2106 = vld [vmem:[%s2102 + $0xc] sm:$0xf]
        %v2107 = vld [vmem:[%s2102 + $0x10] sm:$0xf]
        %v2108 = vld [vmem:[%s2102 + $0x14] sm:$0xf]
        %v2109 = vld [vmem:[%s2102 + $0x18] sm:$0xf]
        %v2110 = vld [vmem:[%s2102 + $0x1c] sm:$0xf]
        %v2111 = vpack.c.bf16 %v2094, %v2094
        %v2113 = vperm.slane %v2101, 0
        %v2119 = vunpack.c.l.b16 %v2096
        %v2120 = vunpack.c.l.b16 %v2097
        %v2121 = vunpack.c.l.b16 %v2098
        %v2122 = vunpack.c.l.b16 %v2099
        %v2123 = vpack.c.b16 %v2120, %v2119
        %v2124 = vpack.c.b16 %v2122, %v2121
        %v2128 = vsel %vm608, %v2111, 0
        %2130 = vmatpush.bf16.msra.mxu0 0
        %2131 = vmatpush.bf16.msra.mxu0 0
        %2132 = vmatpush.bf16.msra.mxu0 0
        %2133 = vmatpush.bf16.msra.mxu0 0
        %2134 = vmatpush.bf16.msra.mxu0 0
        %2135 = vmatpush.bf16.msra.mxu0 0
        %2136 = vmatpush.bf16.msra.mxu0 %v2124
        %2137 = vmatpush.bf16.msra.mxu0 %v2123
        %2138 = vmatmul.bf16.gmra.mxu0 %v2128
        %v2139 = vpop.f32.mrf.mxu0
        %v2140 = vadd.f32 %v2113, %v2139
        %v2141 = vpop.f32.mrf.mxu0
        %2142 = vdwg.mxu0
        %v2143 = vmax.f32 %v2140, 0.0
        %v2144 = vpack.c.bf16 %v2143, %v2143
        %v2145 = vperm.slane %v483, 1
        %v2154 = vunpack.c.l.b16 %v2103
        %v2155 = vunpack.c.l.b16 %v2104
        %v2156 = vunpack.c.l.b16 %v2105
        %v2157 = vunpack.c.l.b16 %v2106
        %v2158 = vunpack.c.l.b16 %v2107
        %v2159 = vunpack.c.l.b16 %v2108
        %v2160 = vunpack.c.l.b16 %v2109
        %v2161 = vunpack.c.l.b16 %v2110
        %v2162 = vpack.c.b16 %v2155, %v2154
        %v2163 = vpack.c.b16 %v2157, %v2156
        %v2164 = vpack.c.b16 %v2159, %v2158
        %v2165 = vpack.c.b16 %v2161, %v2160
        %v2171 = vsel %vm1316, %v2144, 0
        %2173 = vmatpush.bf16.msra.mxu0 0
        %2174 = vmatpush.bf16.msra.mxu0 0
        %2175 = vmatpush.bf16.msra.mxu0 0
        %2176 = vmatpush.bf16.msra.mxu0 0
        %2177 = vmatpush.bf16.msra.mxu0 %v2165
        %2178 = vmatpush.bf16.msra.mxu0 %v2164
        %2179 = vmatpush.bf16.msra.mxu0 %v2163
        %2180 = vmatpush.bf16.msra.mxu0 %v2162
        %2181 = vmatmul.bf16.gmra.mxu0 %v2171
        %v2182 = vpop.f32.mrf.mxu0
        %v2183 = vadd.f32 %v2145, %v2182
        %v2184 = vpop.f32.mrf.mxu0
        %2185 = vdwg.mxu0
        %v2186 = vadd.f32 %v2094, %v2183
        %v2187 = vsel %vm608, %v2186, 0.0
        %2188 = vadd.xlane.f32.xlu0 %v2187
        %v2189 = vpop.xlane.xlu0 %2188
        %v2190 = vmul.f32 %v2189, %v1220
        %v2191 = vsub.f32 %v2186, %v2190
        %v2192 = vmul.f32 %v2191, %v2191
        %v2193 = vsel %vm608, %v2192, 0.0
        %2194 = vadd.xlane.f32.xlu0 %v2193
        %v2195 = vpop.xlane.xlu0 %2194
        %v2196 = vmul.f32 %v2195, %v1220
        %v2197 = vadd.f32 %v2196, 1e-05
        %v2198 = vrsqrt.pop %v2197
        %v2199 = vmul.f32 %v2198, %v2197
        %v2200 = vmul.f32 %v2199, %v2198
        %v2201 = vmul.f32 0.5, %v2200
        %v2202 = vsub.f32 1.5, %v2201
        %v2203 = vmul.f32 %v2198, %v2202
        %vm2204 = vweird.f32 %v2197
        %vm2205 = vweird.f32 %v2198
        %vm2206 = vmor %vm2204, %vm2205
        %v2207 = vsel %vm2206, %v2198, %v2203
        %v2208 = vmul.f32 %v2191, %v2207
        %v2209 = vperm.slane %v483, 2
        %v2210 = vmul.f32 %v2208, %v2209
        %v2211 = vperm.slane %v483, 3
        %v2212 = vadd.f32 %v2210, %v2211
        %v2213 = vld [vmem:[%s474] sm:$0xff]
        %s2214 = scalar_lea.vmem %s4, 384
        %v2215 = vld [vmem:[%s2214] sm:$0xf]
        %v2216 = vld [vmem:[%s2214 + $0x4] sm:$0xf]
        %v2217 = vld [vmem:[%s2214 + $0x8] sm:$0xf]
        %v2218 = vld [vmem:[%s2214 + $0xc] sm:$0xf]
        %v2219 = vld [vmem:[%s2214 + $0x10] sm:$0xf]
        %v2220 = vld [vmem:[%s2214 + $0x14] sm:$0xf]
        %v2221 = vld [vmem:[%s2214 + $0x18] sm:$0xf]
        %v2222 = vld [vmem:[%s2214 + $0x1c] sm:$0xf]
        %v2223 = vld [vmem:[%s2214 + $0x20] sm:$0xf]
        %v2224 = vld [vmem:[%s2214 + $0x24] sm:$0xf]
        %v2225 = vld [vmem:[%s2214 + $0x28] sm:$0xf]
        %v2226 = vld [vmem:[%s2214 + $0x2c] sm:$0xf]
        %v2227 = vld [vmem:[%s2214 + $0x30] sm:$0xf]
        %v2228 = vld [vmem:[%s2214 + $0x34] sm:$0xf]
        %v2229 = vld [vmem:[%s2214 + $0x38] sm:$0xf]
        %v2230 = vld [vmem:[%s2214 + $0x3c] sm:$0xf]
        %v2231 = vld [vmem:[%s2214 + $0x40] sm:$0xf]
        %v2232 = vld [vmem:[%s2214 + $0x44] sm:$0xf]
        %v2233 = vld [vmem:[%s2214 + $0x48] sm:$0xf]
        %v2234 = vld [vmem:[%s2214 + $0x4c] sm:$0xf]
        %v2235 = vld [vmem:[%s2214 + $0x50] sm:$0xf]
        %v2236 = vld [vmem:[%s2214 + $0x54] sm:$0xf]
        %v2237 = vld [vmem:[%s2214 + $0x58] sm:$0xf]
        %v2238 = vld [vmem:[%s2214 + $0x5c] sm:$0xf]
        %v2239 = vld [vmem:[%s2214 + $0x60] sm:$0xf]
        %v2240 = vld [vmem:[%s2214 + $0x64] sm:$0xf]
        %v2241 = vld [vmem:[%s2214 + $0x68] sm:$0xf]
        %v2242 = vld [vmem:[%s2214 + $0x6c] sm:$0xf]
        %v2243 = vld [vmem:[%s2214 + $0x70] sm:$0xf]
        %v2244 = vld [vmem:[%s2214 + $0x74] sm:$0xf]
        %v2245 = vld [vmem:[%s2214 + $0x78] sm:$0xf]
        %v2246 = vld [vmem:[%s2214 + $0x7c] sm:$0xf]
        %v2247 = vld [vmem:[%s2214 + $0x80] sm:$0xf]
        %v2248 = vld [vmem:[%s2214 + $0x84] sm:$0xf]
        %v2249 = vld [vmem:[%s2214 + $0x88] sm:$0xf]
        %v2250 = vld [vmem:[%s2214 + $0x8c] sm:$0xf]
        %v2251 = vld [vmem:[%s2214 + $0x90] sm:$0xf]
        %v2252 = vld [vmem:[%s2214 + $0x94] sm:$0xf]
        %v2253 = vld [vmem:[%s2214 + $0x98] sm:$0xf]
        %v2254 = vld [vmem:[%s2214 + $0x9c] sm:$0xf]
        %v2255 = vld [vmem:[%s2214 + $0xa0] sm:$0xf]
        %v2256 = vld [vmem:[%s2214 + $0xa4] sm:$0xf]
        %v2257 = vld [vmem:[%s2214 + $0xa8] sm:$0xf]
        %v2258 = vld [vmem:[%s2214 + $0xac] sm:$0xf]
        %v2259 = vld [vmem:[%s2214 + $0xb0] sm:$0xf]
        %v2260 = vld [vmem:[%s2214 + $0xb4] sm:$0xf]
        %v2261 = vld [vmem:[%s2214 + $0xb8] sm:$0xf]
        %v2262 = vld [vmem:[%s2214 + $0xbc] sm:$0xf]
        %s2263 = scalar_lea.vmem %s5, 24
        %v2264 = vld [vmem:[%s2263] sm:$0x1]
        %v2265 = vld [vmem:[%s2263 + $0x1] sm:$0x1]
        %v2266 = vld [vmem:[%s2263 + $0x2] sm:$0x1]
        %v2267 = vld [vmem:[%s2263 + $0x3] sm:$0x1]
        %v2268 = vld [vmem:[%s2263 + $0x4] sm:$0x1]
        %v2269 = vld [vmem:[%s2263 + $0x5] sm:$0x1]
        %v2270 = vld [vmem:[%s2263 + $0x6] sm:$0x1]
        %v2271 = vld [vmem:[%s2263 + $0x7] sm:$0x1]
        %v2272 = vld [vmem:[%s2263 + $0x8] sm:$0x1]
        %v2273 = vld [vmem:[%s2263 + $0x9] sm:$0x1]
        %v2274 = vld [vmem:[%s2263 + $0xa] sm:$0x1]
        %v2275 = vld [vmem:[%s2263 + $0xb] sm:$0x1]
        %v2276 = vpack.c.bf16 %v2213, %v2213
        %v2289 = vperm.slane %v2264, 0
        %v2290 = vperm.slane %v2265, 0
        %v2291 = vperm.slane %v2266, 0
        %v2292 = vperm.slane %v2267, 0
        %v2293 = vperm.slane %v2268, 0
        %v2294 = vperm.slane %v2269, 0
        %v2295 = vperm.slane %v2270, 0
        %v2296 = vperm.slane %v2271, 0
        %v2297 = vperm.slane %v2272, 0
        %v2298 = vperm.slane %v2273, 0
        %v2299 = vperm.slane %v2274, 0
        %v2300 = vperm.slane %v2275, 0
        %v2317 = vunpack.c.l.b16 %v2215
        %v2318 = vunpack.c.l.b16 %v2216
        %v2319 = vunpack.c.l.b16 %v2217
        %v2320 = vunpack.c.l.b16 %v2218
        %v2321 = vpack.c.b16 %v2318, %v2317
        %v2322 = vpack.c.b16 %v2320, %v2319
        %v2326 = vsel %vm608, %v2276, 0
        %2328 = vmatpush.bf16.msra.mxu0 0
        %2329 = vmatpush.bf16.msra.mxu0 0
        %2330 = vmatpush.bf16.msra.mxu0 0
        %2331 = vmatpush.bf16.msra.mxu0 0
        %2332 = vmatpush.bf16.msra.mxu0 0
        %2333 = vmatpush.bf16.msra.mxu0 0
        %2334 = vmatpush.bf16.msra.mxu0 %v2322
        %2335 = vmatpush.bf16.msra.mxu0 %v2321
        %2336 = vmatmul.bf16.gmra.mxu0 %v2326
        %v2337 = vpop.f32.mrf.mxu0
        %v2338 = vadd.f32 %v2289, %v2337
        %v2339 = vpop.f32.mrf.mxu0
        %2340 = vdwg.mxu0
        %v2345 = vunpack.c.l.b16 %v2219
        %v2346 = vunpack.c.l.b16 %v2220
        %v2347 = vunpack.c.l.b16 %v2221
        %v2348 = vunpack.c.l.b16 %v2222
        %v2349 = vpack.c.b16 %v2346, %v2345
        %v2350 = vpack.c.b16 %v2348, %v2347
        %2353 = vmatpush.bf16.msra.mxu0 0
        %2354 = vmatpush.bf16.msra.mxu0 0
        %2355 = vmatpush.bf16.msra.mxu0 0
        %2356 = vmatpush.bf16.msra.mxu0 0
        %2357 = vmatpush.bf16.msra.mxu0 0
        %2358 = vmatpush.bf16.msra.mxu0 0
        %2359 = vmatpush.bf16.msra.mxu0 %v2350
        %2360 = vmatpush.bf16.msra.mxu0 %v2349
        %2361 = vmatmul.bf16.gmra.mxu0 %v2326
        %v2362 = vpop.f32.mrf.mxu0
        %v2363 = vadd.f32 %v2290, %v2362
        %v2364 = vpop.f32.mrf.mxu0
        %2365 = vdwg.mxu0
        %v2370 = vunpack.c.l.b16 %v2223
        %v2371 = vunpack.c.l.b16 %v2224
        %v2372 = vunpack.c.l.b16 %v2225
        %v2373 = vunpack.c.l.b16 %v2226
        %v2374 = vpack.c.b16 %v2371, %v2370
        %v2375 = vpack.c.b16 %v2373, %v2372
        %2378 = vmatpush.bf16.msra.mxu0 0
        %2379 = vmatpush.bf16.msra.mxu0 0
        %2380 = vmatpush.bf16.msra.mxu0 0
        %2381 = vmatpush.bf16.msra.mxu0 0
        %2382 = vmatpush.bf16.msra.mxu0 0
        %2383 = vmatpush.bf16.msra.mxu0 0
        %2384 = vmatpush.bf16.msra.mxu0 %v2375
        %2385 = vmatpush.bf16.msra.mxu0 %v2374
        %2386 = vmatmul.bf16.gmra.mxu0 %v2326
        %v2387 = vpop.f32.mrf.mxu0
        %v2388 = vadd.f32 %v2291, %v2387
        %v2389 = vpop.f32.mrf.mxu0
        %2390 = vdwg.mxu0
        %v2395 = vunpack.c.l.b16 %v2227
        %v2396 = vunpack.c.l.b16 %v2228
        %v2397 = vunpack.c.l.b16 %v2229
        %v2398 = vunpack.c.l.b16 %v2230
        %v2399 = vpack.c.b16 %v2396, %v2395
        %v2400 = vpack.c.b16 %v2398, %v2397
        %2403 = vmatpush.bf16.msra.mxu0 0
        %2404 = vmatpush.bf16.msra.mxu0 0
        %2405 = vmatpush.bf16.msra.mxu0 0
        %2406 = vmatpush.bf16.msra.mxu0 0
        %2407 = vmatpush.bf16.msra.mxu0 0
        %2408 = vmatpush.bf16.msra.mxu0 0
        %2409 = vmatpush.bf16.msra.mxu0 %v2400
        %2410 = vmatpush.bf16.msra.mxu0 %v2399
        %2411 = vmatmul.bf16.gmra.mxu0 %v2326
        %v2412 = vpop.f32.mrf.mxu0
        %v2413 = vadd.f32 %v2292, %v2412
        %v2414 = vpop.f32.mrf.mxu0
        %2415 = vdwg.mxu0
        %v2420 = vunpack.c.l.b16 %v2231
        %v2421 = vunpack.c.l.b16 %v2232
        %v2422 = vunpack.c.l.b16 %v2233
        %v2423 = vunpack.c.l.b16 %v2234
        %v2424 = vpack.c.b16 %v2421, %v2420
        %v2425 = vpack.c.b16 %v2423, %v2422
        %2428 = vmatpush.bf16.msra.mxu0 0
        %2429 = vmatpush.bf16.msra.mxu0 0
        %2430 = vmatpush.bf16.msra.mxu0 0
        %2431 = vmatpush.bf16.msra.mxu0 0
        %2432 = vmatpush.bf16.msra.mxu0 0
        %2433 = vmatpush.bf16.msra.mxu0 0
        %2434 = vmatpush.bf16.msra.mxu0 %v2425
        %2435 = vmatpush.bf16.msra.mxu0 %v2424
        %2436 = vmatmul.bf16.gmra.mxu0 %v2326
        %v2437 = vpop.f32.mrf.mxu0
        %v2438 = vadd.f32 %v2293, %v2437
        %v2439 = vpop.f32.mrf.mxu0
        %2440 = vdwg.mxu0
        %v2445 = vunpack.c.l.b16 %v2235
        %v2446 = vunpack.c.l.b16 %v2236
        %v2447 = vunpack.c.l.b16 %v2237
        %v2448 = vunpack.c.l.b16 %v2238
        %v2449 = vpack.c.b16 %v2446, %v2445
        %v2450 = vpack.c.b16 %v2448, %v2447
        %2453 = vmatpush.bf16.msra.mxu0 0
        %2454 = vmatpush.bf16.msra.mxu0 0
        %2455 = vmatpush.bf16.msra.mxu0 0
        %2456 = vmatpush.bf16.msra.mxu0 0
        %2457 = vmatpush.bf16.msra.mxu0 0
        %2458 = vmatpush.bf16.msra.mxu0 0
        %2459 = vmatpush.bf16.msra.mxu0 %v2450
        %2460 = vmatpush.bf16.msra.mxu0 %v2449
        %2461 = vmatmul.bf16.gmra.mxu0 %v2326
        %v2462 = vpop.f32.mrf.mxu0
        %v2463 = vadd.f32 %v2294, %v2462
        %v2464 = vpop.f32.mrf.mxu0
        %2465 = vdwg.mxu0
        %v2470 = vunpack.c.l.b16 %v2239
        %v2471 = vunpack.c.l.b16 %v2240
        %v2472 = vunpack.c.l.b16 %v2241
        %v2473 = vunpack.c.l.b16 %v2242
        %v2474 = vpack.c.b16 %v2471, %v2470
        %v2475 = vpack.c.b16 %v2473, %v2472
        %2478 = vmatpush.bf16.msra.mxu0 0
        %2479 = vmatpush.bf16.msra.mxu0 0
        %2480 = vmatpush.bf16.msra.mxu0 0
        %2481 = vmatpush.bf16.msra.mxu0 0
        %2482 = vmatpush.bf16.msra.mxu0 0
        %2483 = vmatpush.bf16.msra.mxu0 0
        %2484 = vmatpush.bf16.msra.mxu0 %v2475
        %2485 = vmatpush.bf16.msra.mxu0 %v2474
        %2486 = vmatmul.bf16.gmra.mxu0 %v2326
        %v2487 = vpop.f32.mrf.mxu0
        %v2488 = vadd.f32 %v2295, %v2487
        %v2489 = vpop.f32.mrf.mxu0
        %2490 = vdwg.mxu0
        %v2495 = vunpack.c.l.b16 %v2243
        %v2496 = vunpack.c.l.b16 %v2244
        %v2497 = vunpack.c.l.b16 %v2245
        %v2498 = vunpack.c.l.b16 %v2246
        %v2499 = vpack.c.b16 %v2496, %v2495
        %v2500 = vpack.c.b16 %v2498, %v2497
        %2503 = vmatpush.bf16.msra.mxu0 0
        %2504 = vmatpush.bf16.msra.mxu0 0
        %2505 = vmatpush.bf16.msra.mxu0 0
        %2506 = vmatpush.bf16.msra.mxu0 0
        %2507 = vmatpush.bf16.msra.mxu0 0
        %2508 = vmatpush.bf16.msra.mxu0 0
        %2509 = vmatpush.bf16.msra.mxu0 %v2500
        %2510 = vmatpush.bf16.msra.mxu0 %v2499
        %2511 = vmatmul.bf16.gmra.mxu0 %v2326
        %v2512 = vpop.f32.mrf.mxu0
        %v2513 = vadd.f32 %v2296, %v2512
        %v2514 = vpop.f32.mrf.mxu0
        %2515 = vdwg.mxu0
        %v2520 = vunpack.c.l.b16 %v2247
        %v2521 = vunpack.c.l.b16 %v2248
        %v2522 = vunpack.c.l.b16 %v2249
        %v2523 = vunpack.c.l.b16 %v2250
        %v2524 = vpack.c.b16 %v2521, %v2520
        %v2525 = vpack.c.b16 %v2523, %v2522
        %2528 = vmatpush.bf16.msra.mxu0 0
        %2529 = vmatpush.bf16.msra.mxu0 0
        %2530 = vmatpush.bf16.msra.mxu0 0
        %2531 = vmatpush.bf16.msra.mxu0 0
        %2532 = vmatpush.bf16.msra.mxu0 0
        %2533 = vmatpush.bf16.msra.mxu0 0
        %2534 = vmatpush.bf16.msra.mxu0 %v2525
        %2535 = vmatpush.bf16.msra.mxu0 %v2524
        %2536 = vmatmul.bf16.gmra.mxu0 %v2326
        %v2537 = vpop.f32.mrf.mxu0
        %v2538 = vadd.f32 %v2297, %v2537
        %v2539 = vpop.f32.mrf.mxu0
        %2540 = vdwg.mxu0
        %v2545 = vunpack.c.l.b16 %v2251
        %v2546 = vunpack.c.l.b16 %v2252
        %v2547 = vunpack.c.l.b16 %v2253
        %v2548 = vunpack.c.l.b16 %v2254
        %v2549 = vpack.c.b16 %v2546, %v2545
        %v2550 = vpack.c.b16 %v2548, %v2547
        %2553 = vmatpush.bf16.msra.mxu0 0
        %2554 = vmatpush.bf16.msra.mxu0 0
        %2555 = vmatpush.bf16.msra.mxu0 0
        %2556 = vmatpush.bf16.msra.mxu0 0
        %2557 = vmatpush.bf16.msra.mxu0 0
        %2558 = vmatpush.bf16.msra.mxu0 0
        %2559 = vmatpush.bf16.msra.mxu0 %v2550
        %2560 = vmatpush.bf16.msra.mxu0 %v2549
        %2561 = vmatmul.bf16.gmra.mxu0 %v2326
        %v2562 = vpop.f32.mrf.mxu0
        %v2563 = vadd.f32 %v2298, %v2562
        %v2564 = vpop.f32.mrf.mxu0
        %2565 = vdwg.mxu0
        %v2570 = vunpack.c.l.b16 %v2255
        %v2571 = vunpack.c.l.b16 %v2256
        %v2572 = vunpack.c.l.b16 %v2257
        %v2573 = vunpack.c.l.b16 %v2258
        %v2574 = vpack.c.b16 %v2571, %v2570
        %v2575 = vpack.c.b16 %v2573, %v2572
        %2578 = vmatpush.bf16.msra.mxu0 0
        %2579 = vmatpush.bf16.msra.mxu0 0
        %2580 = vmatpush.bf16.msra.mxu0 0
        %2581 = vmatpush.bf16.msra.mxu0 0
        %2582 = vmatpush.bf16.msra.mxu0 0
        %2583 = vmatpush.bf16.msra.mxu0 0
        %2584 = vmatpush.bf16.msra.mxu0 %v2575
        %2585 = vmatpush.bf16.msra.mxu0 %v2574
        %2586 = vmatmul.bf16.gmra.mxu0 %v2326
        %v2587 = vpop.f32.mrf.mxu0
        %v2588 = vadd.f32 %v2299, %v2587
        %v2589 = vpop.f32.mrf.mxu0
        %2590 = vdwg.mxu0
        %v2595 = vunpack.c.l.b16 %v2259
        %v2596 = vunpack.c.l.b16 %v2260
        %v2597 = vunpack.c.l.b16 %v2261
        %v2598 = vunpack.c.l.b16 %v2262
        %v2599 = vpack.c.b16 %v2596, %v2595
        %v2600 = vpack.c.b16 %v2598, %v2597
        %2603 = vmatpush.bf16.msra.mxu0 0
        %2604 = vmatpush.bf16.msra.mxu0 0
        %2605 = vmatpush.bf16.msra.mxu0 0
        %2606 = vmatpush.bf16.msra.mxu0 0
        %2607 = vmatpush.bf16.msra.mxu0 0
        %2608 = vmatpush.bf16.msra.mxu0 0
        %2609 = vmatpush.bf16.msra.mxu0 %v2600
        %2610 = vmatpush.bf16.msra.mxu0 %v2599
        %2611 = vmatmul.bf16.gmra.mxu0 %v2326
        %v2612 = vpop.f32.mrf.mxu0
        %v2613 = vadd.f32 %v2300, %v2612
        %v2614 = vpop.f32.mrf.mxu0
        %2615 = vdwg.mxu0
        %s2616 = scalar_lea.vmem %s6, 32
        %v2617 = vld [vmem:[%s2616] sm:$0xf]
        %v2618 = vld [vmem:[%s2616 + $0x4] sm:$0xf]
        %v2619 = vld [vmem:[%s2616 + $0x8] sm:$0xf]
        %v2620 = vld [vmem:[%s2616 + $0xc] sm:$0xf]
        %v2621 = vpack.c.bf16 %v2338, %v2338
        %v2622 = vpack.c.bf16 %v2363, %v2363
        %v2623 = vpack.c.bf16 %v2388, %v2388
        %v2624 = vpack.c.bf16 %v2413, %v2413
        %v2625 = vpack.c.bf16 %v2438, %v2438
        %v2626 = vpack.c.bf16 %v2463, %v2463
        %v2627 = vpack.c.bf16 %v2488, %v2488
        %v2628 = vpack.c.bf16 %v2513, %v2513
        %v2630 = vsel %vm915, %v2621, 0
        %v2633 = vsel %vm915, %v2625, 0
        %2635 = vmatpush.bf16.xpose.msra.mxu0 0
        %2636 = vmatpush.bf16.xpose.msra.mxu0 0
        %2637 = vmatpush.bf16.xpose.msra.mxu0 0
        %2638 = vmatpush.bf16.xpose.msra.mxu0 0
        %2639 = vmatpush.bf16.xpose.msra.mxu0 0
        %2640 = vmatpush.bf16.xpose.msra.mxu0 0
        %2641 = vmatpush.bf16.xpose.msra.mxu0 0
        %2642 = vmatpush.bf16.xpose.msra.mxu0 %v2633
        %2643 = vmatmul.bf16.gmra.mxu0 %v2630
        %v2644 = vpop.f32.mrf.mxu0
        %v2645 = vadd.f32 %v497, %v2644
        %v2646 = vpop.f32.mrf.mxu0
        %2647 = vdwg.mxu0
        %v2649 = vsel %vm915, %v2622, 0
        %v2652 = vsel %vm915, %v2626, 0
        %2654 = vmatpush.bf16.xpose.msra.mxu0 0
        %2655 = vmatpush.bf16.xpose.msra.mxu0 0
        %2656 = vmatpush.bf16.xpose.msra.mxu0 0
        %2657 = vmatpush.bf16.xpose.msra.mxu0 0
        %2658 = vmatpush.bf16.xpose.msra.mxu0 0
        %2659 = vmatpush.bf16.xpose.msra.mxu0 0
        %2660 = vmatpush.bf16.xpose.msra.mxu0 0
        %2661 = vmatpush.bf16.xpose.msra.mxu0 %v2652
        %2662 = vmatmul.bf16.gmra.mxu0 %v2649
        %v2663 = vpop.f32.mrf.mxu0
        %v2664 = vadd.f32 %v497, %v2663
        %v2665 = vpop.f32.mrf.mxu0
        %2666 = vdwg.mxu0
        %v2668 = vsel %vm915, %v2623, 0
        %v2671 = vsel %vm915, %v2627, 0
        %2673 = vmatpush.bf16.xpose.msra.mxu0 0
        %2674 = vmatpush.bf16.xpose.msra.mxu0 0
        %2675 = vmatpush.bf16.xpose.msra.mxu0 0
        %2676 = vmatpush.bf16.xpose.msra.mxu0 0
        %2677 = vmatpush.bf16.xpose.msra.mxu0 0
        %2678 = vmatpush.bf16.xpose.msra.mxu0 0
        %2679 = vmatpush.bf16.xpose.msra.mxu0 0
        %2680 = vmatpush.bf16.xpose.msra.mxu0 %v2671
        %2681 = vmatmul.bf16.gmra.mxu0 %v2668
        %v2682 = vpop.f32.mrf.mxu0
        %v2683 = vadd.f32 %v497, %v2682
        %v2684 = vpop.f32.mrf.mxu0
        %2685 = vdwg.mxu0
        %v2687 = vsel %vm915, %v2624, 0
        %v2690 = vsel %vm915, %v2628, 0
        %2692 = vmatpush.bf16.xpose.msra.mxu0 0
        %2693 = vmatpush.bf16.xpose.msra.mxu0 0
        %2694 = vmatpush.bf16.xpose.msra.mxu0 0
        %2695 = vmatpush.bf16.xpose.msra.mxu0 0
        %2696 = vmatpush.bf16.xpose.msra.mxu0 0
        %2697 = vmatpush.bf16.xpose.msra.mxu0 0
        %2698 = vmatpush.bf16.xpose.msra.mxu0 0
        %2699 = vmatpush.bf16.xpose.msra.mxu0 %v2690
        %2700 = vmatmul.bf16.gmra.mxu0 %v2687
        %v2701 = vpop.f32.mrf.mxu0
        %v2702 = vadd.f32 %v497, %v2701
        %v2703 = vpop.f32.mrf.mxu0
        %2704 = vdwg.mxu0
        %v2705 = vsel %vm915, %v2645, -inf
        %2706 = vmax.xlane.f32.xlu0 %v2705
        %v2707 = vpop.xlane.xlu0 %2706
        %v2708 = vsel %vm915, %v2664, -inf
        %2709 = vmax.xlane.f32.xlu0 %v2708
        %v2710 = vpop.xlane.xlu0 %2709
        %v2711 = vsel %vm915, %v2683, -inf
        %2712 = vmax.xlane.f32.xlu0 %v2711
        %v2713 = vpop.xlane.xlu0 %2712
        %v2714 = vsel %vm915, %v2702, -inf
        %2715 = vmax.xlane.f32.xlu0 %v2714
        %v2716 = vpop.xlane.xlu0 %2715
        %v2717 = vsub.f32 %v2645, %v2707
        %v2718 = vsub.f32 %v2664, %v2710
        %v2719 = vsub.f32 %v2683, %v2713
        %v2720 = vsub.f32 %v2702, %v2716
        %v2721 = vmul.f32 %v2717, 1.442695
        %v2722 = vpow.pop %v2721
        %v2723 = vmul.f32 %v2718, 1.442695
        %v2724 = vpow.pop %v2723
        %v2725 = vmul.f32 %v2719, 1.442695
        %v2726 = vpow.pop %v2725
        %v2727 = vmul.f32 %v2720, 1.442695
        %v2728 = vpow.pop %v2727
        %v2729 = vsel %vm915, %v2722, 0.0
        %2730 = vadd.xlane.f32.xlu0 %v2729
        %v2731 = vpop.xlane.xlu0 %2730
        %v2732 = vsel %vm915, %v2724, 0.0
        %2733 = vadd.xlane.f32.xlu0 %v2732
        %v2734 = vpop.xlane.xlu0 %2733
        %v2735 = vsel %vm915, %v2726, 0.0
        %2736 = vadd.xlane.f32.xlu0 %v2735
        %v2737 = vpop.xlane.xlu0 %2736
        %v2738 = vsel %vm915, %v2728, 0.0
        %2739 = vadd.xlane.f32.xlu0 %v2738
        %v2740 = vpop.xlane.xlu0 %2739
        %v2741 = vrcp.pop %v2731
        %v2742 = vrcp.pop %v2734
        %v2743 = vrcp.pop %v2737
        %v2744 = vrcp.pop %v2740
        %v2745 = vmul.f32 %v2722, %v2741
        %v2746 = vmul.f32 %v2724, %v2742
        %v2747 = vmul.f32 %v2726, %v2743
        %v2748 = vmul.f32 %v2728, %v2744
        %v2749 = vpack.c.bf16 %v2745, %v2745
        %v2750 = vpack.c.bf16 %v2746, %v2746
        %v2751 = vpack.c.bf16 %v2747, %v2747
        %v2752 = vpack.c.bf16 %v2748, %v2748
        %v2753 = vpack.c.bf16 %v2538, %v2538
        %v2754 = vpack.c.bf16 %v2563, %v2563
        %v2755 = vpack.c.bf16 %v2588, %v2588
        %v2756 = vpack.c.bf16 %v2613, %v2613
        %v2758 = vsel %vm915, %v2749, 0
        %v2761 = vsel %vm1047, %v2753, 0
        %2763 = vmatpush.bf16.msra.mxu0 0
        %2764 = vmatpush.bf16.msra.mxu0 0
        %2765 = vmatpush.bf16.msra.mxu0 0
        %2766 = vmatpush.bf16.msra.mxu0 0
        %2767 = vmatpush.bf16.msra.mxu0 0
        %2768 = vmatpush.bf16.msra.mxu0 0
        %2769 = vmatpush.bf16.msra.mxu0 0
        %2770 = vmatpush.bf16.msra.mxu0 %v2761
        %2771 = vmatmul.bf16.gmra.mxu0 %v2758
        %v2772 = vpop.f32.mrf.mxu0
        %v2773 = vadd.f32 0.0, %v2772
        %v2774 = vpop.f32.mrf.mxu0
        %2775 = vdwg.mxu0
        %v2777 = vsel %vm915, %v2750, 0
        %v2780 = vsel %vm1047, %v2754, 0
        %2782 = vmatpush.bf16.msra.mxu0 0
        %2783 = vmatpush.bf16.msra.mxu0 0
        %2784 = vmatpush.bf16.msra.mxu0 0
        %2785 = vmatpush.bf16.msra.mxu0 0
        %2786 = vmatpush.bf16.msra.mxu0 0
        %2787 = vmatpush.bf16.msra.mxu0 0
        %2788 = vmatpush.bf16.msra.mxu0 0
        %2789 = vmatpush.bf16.msra.mxu0 %v2780
        %2790 = vmatmul.bf16.gmra.mxu0 %v2777
        %v2791 = vpop.f32.mrf.mxu0
        %v2792 = vadd.f32 0.0, %v2791
        %v2793 = vpop.f32.mrf.mxu0
        %2794 = vdwg.mxu0
        %v2796 = vsel %vm915, %v2751, 0
        %v2799 = vsel %vm1047, %v2755, 0
        %2801 = vmatpush.bf16.msra.mxu0 0
        %2802 = vmatpush.bf16.msra.mxu0 0
        %2803 = vmatpush.bf16.msra.mxu0 0
        %2804 = vmatpush.bf16.msra.mxu0 0
        %2805 = vmatpush.bf16.msra.mxu0 0
        %2806 = vmatpush.bf16.msra.mxu0 0
        %2807 = vmatpush.bf16.msra.mxu0 0
        %2808 = vmatpush.bf16.msra.mxu0 %v2799
        %2809 = vmatmul.bf16.gmra.mxu0 %v2796
        %v2810 = vpop.f32.mrf.mxu0
        %v2811 = vadd.f32 0.0, %v2810
        %v2812 = vpop.f32.mrf.mxu0
        %2813 = vdwg.mxu0
        %v2815 = vsel %vm915, %v2752, 0
        %v2818 = vsel %vm1047, %v2756, 0
        %2820 = vmatpush.bf16.msra.mxu0 0
        %2821 = vmatpush.bf16.msra.mxu0 0
        %2822 = vmatpush.bf16.msra.mxu0 0
        %2823 = vmatpush.bf16.msra.mxu0 0
        %2824 = vmatpush.bf16.msra.mxu0 0
        %2825 = vmatpush.bf16.msra.mxu0 0
        %2826 = vmatpush.bf16.msra.mxu0 0
        %2827 = vmatpush.bf16.msra.mxu0 %v2818
        %2828 = vmatmul.bf16.gmra.mxu0 %v2815
        %v2829 = vpop.f32.mrf.mxu0
        %v2830 = vadd.f32 0.0, %v2829
        %v2831 = vpop.f32.mrf.mxu0
        %2832 = vdwg.mxu0
        %v2833 = vpack.c.bf16 %v2773, %v2773
        %v2834 = vpack.c.bf16 %v2792, %v2792
        %v2835 = vpack.c.bf16 %v2811, %v2811
        %v2836 = vpack.c.bf16 %v2830, %v2830
        %v2838 = vsel %vm915, %v2833, 0
        %v2841 = vsel %vm1047, %v2617, 0
        %2843 = vmatpush.bf16.msra.mxu0 0
        %2844 = vmatpush.bf16.msra.mxu0 0
        %2845 = vmatpush.bf16.msra.mxu0 0
        %2846 = vmatpush.bf16.msra.mxu0 0
        %2847 = vmatpush.bf16.msra.mxu0 0
        %2848 = vmatpush.bf16.msra.mxu0 0
        %2849 = vmatpush.bf16.msra.mxu0 0
        %2850 = vmatpush.bf16.msra.mxu0 %v2841
        %2851 = vmatmul.bf16.gmra.mxu0 %v2838
        %v2852 = vpop.f32.mrf.mxu0
        %v2853 = vadd.f32 0.0, %v2852
        %v2854 = vpop.f32.mrf.mxu0
        %2855 = vdwg.mxu0
        %v2857 = vsel %vm915, %v2834, 0
        %v2860 = vsel %vm1047, %v2618, 0
        %2862 = vmatpush.bf16.msra.mxu0 0
        %2863 = vmatpush.bf16.msra.mxu0 0
        %2864 = vmatpush.bf16.msra.mxu0 0
        %2865 = vmatpush.bf16.msra.mxu0 0
        %2866 = vmatpush.bf16.msra.mxu0 0
        %2867 = vmatpush.bf16.msra.mxu0 0
        %2868 = vmatpush.bf16.msra.mxu0 0
        %2869 = vmatpush.bf16.msra.mxu0 %v2860
        %2870 = vmatmul.bf16.gmra.mxu0 %v2857
        %v2871 = vpop.f32.mrf.mxu0
        %v2872 = vadd.f32 0.0, %v2871
        %v2873 = vpop.f32.mrf.mxu0
        %2874 = vdwg.mxu0
        %v2876 = vsel %vm915, %v2835, 0
        %v2879 = vsel %vm1047, %v2619, 0
        %2881 = vmatpush.bf16.msra.mxu0 0
        %2882 = vmatpush.bf16.msra.mxu0 0
        %2883 = vmatpush.bf16.msra.mxu0 0
        %2884 = vmatpush.bf16.msra.mxu0 0
        %2885 = vmatpush.bf16.msra.mxu0 0
        %2886 = vmatpush.bf16.msra.mxu0 0
        %2887 = vmatpush.bf16.msra.mxu0 0
        %2888 = vmatpush.bf16.msra.mxu0 %v2879
        %2889 = vmatmul.bf16.gmra.mxu0 %v2876
        %v2890 = vpop.f32.mrf.mxu0
        %v2891 = vadd.f32 0.0, %v2890
        %v2892 = vpop.f32.mrf.mxu0
        %2893 = vdwg.mxu0
        %v2895 = vsel %vm915, %v2836, 0
        %v2898 = vsel %vm1047, %v2620, 0
        %2900 = vmatpush.bf16.msra.mxu0 0
        %2901 = vmatpush.bf16.msra.mxu0 0
        %2902 = vmatpush.bf16.msra.mxu0 0
        %2903 = vmatpush.bf16.msra.mxu0 0
        %2904 = vmatpush.bf16.msra.mxu0 0
        %2905 = vmatpush.bf16.msra.mxu0 0
        %2906 = vmatpush.bf16.msra.mxu0 0
        %2907 = vmatpush.bf16.msra.mxu0 %v2898
        %2908 = vmatmul.bf16.gmra.mxu0 %v2895
        %v2909 = vpop.f32.mrf.mxu0
        %v2910 = vadd.f32 0.0, %v2909
        %v2911 = vpop.f32.mrf.mxu0
        %2912 = vdwg.mxu0
        %v2913 = vsel %vm608, %v2853, 0.0
        %v2914 = vsel %vm608, %v2872, 0.0
        %v2915 = vadd.f32 %v2913, %v2914
        %v2916 = vsel %vm608, %v2891, 0.0
        %v2917 = vadd.f32 %v2915, %v2916
        %v2918 = vsel %vm608, %v2910, 0.0
        %v2919 = vadd.f32 %v2917, %v2918
        %v2920 = vperm.slane %v483, 4
        %v2921 = vadd.f32 %v2919, %v2920
        %v2922 = vadd.f32 %v2213, %v2921
        %v2923 = vsel %vm608, %v2922, 0.0
        %2924 = vadd.xlane.f32.xlu0 %v2923
        %v2925 = vpop.xlane.xlu0 %2924
        %v2926 = vmul.f32 %v2925, %v1220
        %v2927 = vsub.f32 %v2922, %v2926
        %v2928 = vmul.f32 %v2927, %v2927
        %v2929 = vsel %vm608, %v2928, 0.0
        %2930 = vadd.xlane.f32.xlu0 %v2929
        %v2931 = vpop.xlane.xlu0 %2930
        %v2932 = vmul.f32 %v2931, %v1220
        %v2933 = vadd.f32 %v2932, 1e-05
        %v2934 = vrsqrt.pop %v2933
        %v2935 = vmul.f32 %v2934, %v2933
        %v2936 = vmul.f32 %v2935, %v2934
        %v2937 = vmul.f32 0.5, %v2936
        %v2938 = vsub.f32 1.5, %v2937
        %v2939 = vmul.f32 %v2934, %v2938
        %vm2940 = vweird.f32 %v2933
        %vm2941 = vweird.f32 %v2934
        %vm2942 = vmor %vm2940, %vm2941
        %v2943 = vsel %vm2942, %v2934, %v2939
        %v2944 = vmul.f32 %v2927, %v2943
        %v2945 = vperm.slane %v483, 5
        %v2946 = vmul.f32 %v2944, %v2945
        %v2947 = vperm.slane %v483, 6
        %v2948 = vadd.f32 %v2946, %v2947
        %s2949 = scalar_lea.vmem %s4, 768
        %v2950 = vld [vmem:[%s2949] sm:$0xf]
        %v2951 = vld [vmem:[%s2949 + $0x4] sm:$0xf]
        %v2952 = vld [vmem:[%s2949 + $0x8] sm:$0xf]
        %v2953 = vld [vmem:[%s2949 + $0xc] sm:$0xf]
        %v2954 = vld [vmem:[%s2949 + $0x10] sm:$0xf]
        %v2955 = vld [vmem:[%s2949 + $0x14] sm:$0xf]
        %v2956 = vld [vmem:[%s2949 + $0x18] sm:$0xf]
        %v2957 = vld [vmem:[%s2949 + $0x1c] sm:$0xf]
        %v2958 = vld [vmem:[%s2949 + $0x20] sm:$0xf]
        %v2959 = vld [vmem:[%s2949 + $0x24] sm:$0xf]
        %v2960 = vld [vmem:[%s2949 + $0x28] sm:$0xf]
        %v2961 = vld [vmem:[%s2949 + $0x2c] sm:$0xf]
        %v2962 = vld [vmem:[%s2949 + $0x30] sm:$0xf]
        %v2963 = vld [vmem:[%s2949 + $0x34] sm:$0xf]
        %v2964 = vld [vmem:[%s2949 + $0x38] sm:$0xf]
        %v2965 = vld [vmem:[%s2949 + $0x3c] sm:$0xf]
        %s2966 = scalar_lea.vmem %s5, 48
        %v2967 = vld [vmem:[%s2966] sm:$0x1]
        %v2968 = vld [vmem:[%s2966 + $0x1] sm:$0x1]
        %v2969 = vld [vmem:[%s2966 + $0x2] sm:$0x1]
        %v2970 = vld [vmem:[%s2966 + $0x3] sm:$0x1]
        %v2971 = vpack.c.bf16 %v2948, %v2948
        %v2976 = vperm.slane %v2967, 0
        %v2977 = vperm.slane %v2968, 0
        %v2978 = vperm.slane %v2969, 0
        %v2979 = vperm.slane %v2970, 0
        %v2988 = vunpack.c.l.b16 %v2950
        %v2989 = vunpack.c.l.b16 %v2951
        %v2990 = vunpack.c.l.b16 %v2952
        %v2991 = vunpack.c.l.b16 %v2953
        %v2992 = vpack.c.b16 %v2989, %v2988
        %v2993 = vpack.c.b16 %v2991, %v2990
        %v2997 = vsel %vm608, %v2971, 0
        %2999 = vmatpush.bf16.msra.mxu0 0
        %3000 = vmatpush.bf16.msra.mxu0 0
        %3001 = vmatpush.bf16.msra.mxu0 0
        %3002 = vmatpush.bf16.msra.mxu0 0
        %3003 = vmatpush.bf16.msra.mxu0 0
        %3004 = vmatpush.bf16.msra.mxu0 0
        %3005 = vmatpush.bf16.msra.mxu0 %v2993
        %3006 = vmatpush.bf16.msra.mxu0 %v2992
        %3007 = vmatmul.bf16.gmra.mxu0 %v2997
        %v3008 = vpop.f32.mrf.mxu0
        %v3009 = vadd.f32 %v2976, %v3008
        %v3010 = vpop.f32.mrf.mxu0
        %3011 = vdwg.mxu0
        %v3016 = vunpack.c.l.b16 %v2954
        %v3017 = vunpack.c.l.b16 %v2955
        %v3018 = vunpack.c.l.b16 %v2956
        %v3019 = vunpack.c.l.b16 %v2957
        %v3020 = vpack.c.b16 %v3017, %v3016
        %v3021 = vpack.c.b16 %v3019, %v3018
        %3024 = vmatpush.bf16.msra.mxu0 0
        %3025 = vmatpush.bf16.msra.mxu0 0
        %3026 = vmatpush.bf16.msra.mxu0 0
        %3027 = vmatpush.bf16.msra.mxu0 0
        %3028 = vmatpush.bf16.msra.mxu0 0
        %3029 = vmatpush.bf16.msra.mxu0 0
        %3030 = vmatpush.bf16.msra.mxu0 %v3021
        %3031 = vmatpush.bf16.msra.mxu0 %v3020
        %3032 = vmatmul.bf16.gmra.mxu0 %v2997
        %v3033 = vpop.f32.mrf.mxu0
        %v3034 = vadd.f32 %v2977, %v3033
        %v3035 = vpop.f32.mrf.mxu0
        %3036 = vdwg.mxu0
        %v3041 = vunpack.c.l.b16 %v2958
        %v3042 = vunpack.c.l.b16 %v2959
        %v3043 = vunpack.c.l.b16 %v2960
        %v3044 = vunpack.c.l.b16 %v2961
        %v3045 = vpack.c.b16 %v3042, %v3041
        %v3046 = vpack.c.b16 %v3044, %v3043
        %3049 = vmatpush.bf16.msra.mxu0 0
        %3050 = vmatpush.bf16.msra.mxu0 0
        %3051 = vmatpush.bf16.msra.mxu0 0
        %3052 = vmatpush.bf16.msra.mxu0 0
        %3053 = vmatpush.bf16.msra.mxu0 0
        %3054 = vmatpush.bf16.msra.mxu0 0
        %3055 = vmatpush.bf16.msra.mxu0 %v3046
        %3056 = vmatpush.bf16.msra.mxu0 %v3045
        %3057 = vmatmul.bf16.gmra.mxu0 %v2997
        %v3058 = vpop.f32.mrf.mxu0
        %v3059 = vadd.f32 %v2978, %v3058
        %v3060 = vpop.f32.mrf.mxu0
        %3061 = vdwg.mxu0
        %v3066 = vunpack.c.l.b16 %v2962
        %v3067 = vunpack.c.l.b16 %v2963
        %v3068 = vunpack.c.l.b16 %v2964
        %v3069 = vunpack.c.l.b16 %v2965
        %v3070 = vpack.c.b16 %v3067, %v3066
        %v3071 = vpack.c.b16 %v3069, %v3068
        %3074 = vmatpush.bf16.msra.mxu0 0
        %3075 = vmatpush.bf16.msra.mxu0 0
        %3076 = vmatpush.bf16.msra.mxu0 0
        %3077 = vmatpush.bf16.msra.mxu0 0
        %3078 = vmatpush.bf16.msra.mxu0 0
        %3079 = vmatpush.bf16.msra.mxu0 0
        %3080 = vmatpush.bf16.msra.mxu0 %v3071
        %3081 = vmatpush.bf16.msra.mxu0 %v3070
        %3082 = vmatmul.bf16.gmra.mxu0 %v2997
        %v3083 = vpop.f32.mrf.mxu0
        %v3084 = vadd.f32 %v2979, %v3083
        %v3085 = vpop.f32.mrf.mxu0
        %3086 = vdwg.mxu0
        %s3087 = scalar_lea.vmem %s4, 832
        %v3088 = vld [vmem:[%s3087] sm:$0xf]
        %v3089 = vld [vmem:[%s3087 + $0x4] sm:$0xf]
        %v3090 = vld [vmem:[%s3087 + $0x8] sm:$0xf]
        %v3091 = vld [vmem:[%s3087 + $0xc] sm:$0xf]
        %v3092 = vld [vmem:[%s3087 + $0x10] sm:$0xf]
        %v3093 = vld [vmem:[%s3087 + $0x14] sm:$0xf]
        %v3094 = vld [vmem:[%s3087 + $0x18] sm:$0xf]
        %v3095 = vld [vmem:[%s3087 + $0x1c] sm:$0xf]
        %v3096 = vld [vmem:[%s3087 + $0x20] sm:$0xf]
        %v3097 = vld [vmem:[%s3087 + $0x24] sm:$0xf]
        %v3098 = vld [vmem:[%s3087 + $0x28] sm:$0xf]
        %v3099 = vld [vmem:[%s3087 + $0x2c] sm:$0xf]
        %v3100 = vld [vmem:[%s3087 + $0x30] sm:$0xf]
        %v3101 = vld [vmem:[%s3087 + $0x34] sm:$0xf]
        %v3102 = vld [vmem:[%s3087 + $0x38] sm:$0xf]
        %v3103 = vld [vmem:[%s3087 + $0x3c] sm:$0xf]
        %v3104 = vld [vmem:[%s3087 + $0x40] sm:$0xf]
        %v3105 = vld [vmem:[%s3087 + $0x44] sm:$0xf]
        %v3106 = vld [vmem:[%s3087 + $0x48] sm:$0xf]
        %v3107 = vld [vmem:[%s3087 + $0x4c] sm:$0xf]
        %v3108 = vld [vmem:[%s3087 + $0x50] sm:$0xf]
        %v3109 = vld [vmem:[%s3087 + $0x54] sm:$0xf]
        %v3110 = vld [vmem:[%s3087 + $0x58] sm:$0xf]
        %v3111 = vld [vmem:[%s3087 + $0x5c] sm:$0xf]
        %v3112 = vld [vmem:[%s3087 + $0x60] sm:$0xf]
        %v3113 = vld [vmem:[%s3087 + $0x64] sm:$0xf]
        %v3114 = vld [vmem:[%s3087 + $0x68] sm:$0xf]
        %v3115 = vld [vmem:[%s3087 + $0x6c] sm:$0xf]
        %v3116 = vld [vmem:[%s3087 + $0x70] sm:$0xf]
        %v3117 = vld [vmem:[%s3087 + $0x74] sm:$0xf]
        %v3118 = vld [vmem:[%s3087 + $0x78] sm:$0xf]
        %v3119 = vld [vmem:[%s3087 + $0x7c] sm:$0xf]
        %s3120 = scalar_lea.vmem %s5, 52
        %v3121 = vld [vmem:[%s3120] sm:$0x1]
        %v3122 = vld [vmem:[%s3120 + $0x1] sm:$0x1]
        %v3123 = vld [vmem:[%s3120 + $0x2] sm:$0x1]
        %v3124 = vld [vmem:[%s3120 + $0x3] sm:$0x1]
        %v3125 = vld [vmem:[%s3120 + $0x4] sm:$0x1]
        %v3126 = vld [vmem:[%s3120 + $0x5] sm:$0x1]
        %v3127 = vld [vmem:[%s3120 + $0x6] sm:$0x1]
        %v3128 = vld [vmem:[%s3120 + $0x7] sm:$0x1]
        %v3129 = vpack.c.bf16 %v2212, %v2212
        %v3138 = vperm.slane %v3121, 0
        %v3139 = vperm.slane %v3122, 0
        %v3140 = vperm.slane %v3123, 0
        %v3141 = vperm.slane %v3124, 0
        %v3142 = vperm.slane %v3125, 0
        %v3143 = vperm.slane %v3126, 0
        %v3144 = vperm.slane %v3127, 0
        %v3145 = vperm.slane %v3128, 0
        %v3158 = vunpack.c.l.b16 %v3088
        %v3159 = vunpack.c.l.b16 %v3089
        %v3160 = vunpack.c.l.b16 %v3090
        %v3161 = vunpack.c.l.b16 %v3091
        %v3162 = vpack.c.b16 %v3159, %v3158
        %v3163 = vpack.c.b16 %v3161, %v3160
        %v3167 = vsel %vm608, %v3129, 0
        %3169 = vmatpush.bf16.msra.mxu0 0
        %3170 = vmatpush.bf16.msra.mxu0 0
        %3171 = vmatpush.bf16.msra.mxu0 0
        %3172 = vmatpush.bf16.msra.mxu0 0
        %3173 = vmatpush.bf16.msra.mxu0 0
        %3174 = vmatpush.bf16.msra.mxu0 0
        %3175 = vmatpush.bf16.msra.mxu0 %v3163
        %3176 = vmatpush.bf16.msra.mxu0 %v3162
        %3177 = vmatmul.bf16.gmra.mxu0 %v3167
        %v3178 = vpop.f32.mrf.mxu0
        %v3179 = vadd.f32 %v3138, %v3178
        %v3180 = vpop.f32.mrf.mxu0
        %3181 = vdwg.mxu0
        %v3186 = vunpack.c.l.b16 %v3092
        %v3187 = vunpack.c.l.b16 %v3093
        %v3188 = vunpack.c.l.b16 %v3094
        %v3189 = vunpack.c.l.b16 %v3095
        %v3190 = vpack.c.b16 %v3187, %v3186
        %v3191 = vpack.c.b16 %v3189, %v3188
        %3194 = vmatpush.bf16.msra.mxu0 0
        %3195 = vmatpush.bf16.msra.mxu0 0
        %3196 = vmatpush.bf16.msra.mxu0 0
        %3197 = vmatpush.bf16.msra.mxu0 0
        %3198 = vmatpush.bf16.msra.mxu0 0
        %3199 = vmatpush.bf16.msra.mxu0 0
        %3200 = vmatpush.bf16.msra.mxu0 %v3191
        %3201 = vmatpush.bf16.msra.mxu0 %v3190
        %3202 = vmatmul.bf16.gmra.mxu0 %v3167
        %v3203 = vpop.f32.mrf.mxu0
        %v3204 = vadd.f32 %v3139, %v3203
        %v3205 = vpop.f32.mrf.mxu0
        %3206 = vdwg.mxu0
        %v3211 = vunpack.c.l.b16 %v3096
        %v3212 = vunpack.c.l.b16 %v3097
        %v3213 = vunpack.c.l.b16 %v3098
        %v3214 = vunpack.c.l.b16 %v3099
        %v3215 = vpack.c.b16 %v3212, %v3211
        %v3216 = vpack.c.b16 %v3214, %v3213
        %3219 = vmatpush.bf16.msra.mxu0 0
        %3220 = vmatpush.bf16.msra.mxu0 0
        %3221 = vmatpush.bf16.msra.mxu0 0
        %3222 = vmatpush.bf16.msra.mxu0 0
        %3223 = vmatpush.bf16.msra.mxu0 0
        %3224 = vmatpush.bf16.msra.mxu0 0
        %3225 = vmatpush.bf16.msra.mxu0 %v3216
        %3226 = vmatpush.bf16.msra.mxu0 %v3215
        %3227 = vmatmul.bf16.gmra.mxu0 %v3167
        %v3228 = vpop.f32.mrf.mxu0
        %v3229 = vadd.f32 %v3140, %v3228
        %v3230 = vpop.f32.mrf.mxu0
        %3231 = vdwg.mxu0
        %v3236 = vunpack.c.l.b16 %v3100
        %v3237 = vunpack.c.l.b16 %v3101
        %v3238 = vunpack.c.l.b16 %v3102
        %v3239 = vunpack.c.l.b16 %v3103
        %v3240 = vpack.c.b16 %v3237, %v3236
        %v3241 = vpack.c.b16 %v3239, %v3238
        %3244 = vmatpush.bf16.msra.mxu0 0
        %3245 = vmatpush.bf16.msra.mxu0 0
        %3246 = vmatpush.bf16.msra.mxu0 0
        %3247 = vmatpush.bf16.msra.mxu0 0
        %3248 = vmatpush.bf16.msra.mxu0 0
        %3249 = vmatpush.bf16.msra.mxu0 0
        %3250 = vmatpush.bf16.msra.mxu0 %v3241
        %3251 = vmatpush.bf16.msra.mxu0 %v3240
        %3252 = vmatmul.bf16.gmra.mxu0 %v3167
        %v3253 = vpop.f32.mrf.mxu0
        %v3254 = vadd.f32 %v3141, %v3253
        %v3255 = vpop.f32.mrf.mxu0
        %3256 = vdwg.mxu0
        %v3261 = vunpack.c.l.b16 %v3104
        %v3262 = vunpack.c.l.b16 %v3105
        %v3263 = vunpack.c.l.b16 %v3106
        %v3264 = vunpack.c.l.b16 %v3107
        %v3265 = vpack.c.b16 %v3262, %v3261
        %v3266 = vpack.c.b16 %v3264, %v3263
        %3269 = vmatpush.bf16.msra.mxu0 0
        %3270 = vmatpush.bf16.msra.mxu0 0
        %3271 = vmatpush.bf16.msra.mxu0 0
        %3272 = vmatpush.bf16.msra.mxu0 0
        %3273 = vmatpush.bf16.msra.mxu0 0
        %3274 = vmatpush.bf16.msra.mxu0 0
        %3275 = vmatpush.bf16.msra.mxu0 %v3266
        %3276 = vmatpush.bf16.msra.mxu0 %v3265
        %3277 = vmatmul.bf16.gmra.mxu0 %v3167
        %v3278 = vpop.f32.mrf.mxu0
        %v3279 = vadd.f32 %v3142, %v3278
        %v3280 = vpop.f32.mrf.mxu0
        %3281 = vdwg.mxu0
        %v3286 = vunpack.c.l.b16 %v3108
        %v3287 = vunpack.c.l.b16 %v3109
        %v3288 = vunpack.c.l.b16 %v3110
        %v3289 = vunpack.c.l.b16 %v3111
        %v3290 = vpack.c.b16 %v3287, %v3286
        %v3291 = vpack.c.b16 %v3289, %v3288
        %3294 = vmatpush.bf16.msra.mxu0 0
        %3295 = vmatpush.bf16.msra.mxu0 0
        %3296 = vmatpush.bf16.msra.mxu0 0
        %3297 = vmatpush.bf16.msra.mxu0 0
        %3298 = vmatpush.bf16.msra.mxu0 0
        %3299 = vmatpush.bf16.msra.mxu0 0
        %3300 = vmatpush.bf16.msra.mxu0 %v3291
        %3301 = vmatpush.bf16.msra.mxu0 %v3290
        %3302 = vmatmul.bf16.gmra.mxu0 %v3167
        %v3303 = vpop.f32.mrf.mxu0
        %v3304 = vadd.f32 %v3143, %v3303
        %v3305 = vpop.f32.mrf.mxu0
        %3306 = vdwg.mxu0
        %v3311 = vunpack.c.l.b16 %v3112
        %v3312 = vunpack.c.l.b16 %v3113
        %v3313 = vunpack.c.l.b16 %v3114
        %v3314 = vunpack.c.l.b16 %v3115
        %v3315 = vpack.c.b16 %v3312, %v3311
        %v3316 = vpack.c.b16 %v3314, %v3313
        %3319 = vmatpush.bf16.msra.mxu0 0
        %3320 = vmatpush.bf16.msra.mxu0 0
        %3321 = vmatpush.bf16.msra.mxu0 0
        %3322 = vmatpush.bf16.msra.mxu0 0
        %3323 = vmatpush.bf16.msra.mxu0 0
        %3324 = vmatpush.bf16.msra.mxu0 0
        %3325 = vmatpush.bf16.msra.mxu0 %v3316
        %3326 = vmatpush.bf16.msra.mxu0 %v3315
        %3327 = vmatmul.bf16.gmra.mxu0 %v3167
        %v3328 = vpop.f32.mrf.mxu0
        %v3329 = vadd.f32 %v3144, %v3328
        %v3330 = vpop.f32.mrf.mxu0
        %3331 = vdwg.mxu0
        %v3336 = vunpack.c.l.b16 %v3116
        %v3337 = vunpack.c.l.b16 %v3117
        %v3338 = vunpack.c.l.b16 %v3118
        %v3339 = vunpack.c.l.b16 %v3119
        %v3340 = vpack.c.b16 %v3337, %v3336
        %v3341 = vpack.c.b16 %v3339, %v3338
        %3344 = vmatpush.bf16.msra.mxu0 0
        %3345 = vmatpush.bf16.msra.mxu0 0
        %3346 = vmatpush.bf16.msra.mxu0 0
        %3347 = vmatpush.bf16.msra.mxu0 0
        %3348 = vmatpush.bf16.msra.mxu0 0
        %3349 = vmatpush.bf16.msra.mxu0 0
        %3350 = vmatpush.bf16.msra.mxu0 %v3341
        %3351 = vmatpush.bf16.msra.mxu0 %v3340
        %3352 = vmatmul.bf16.gmra.mxu0 %v3167
        %v3353 = vpop.f32.mrf.mxu0
        %v3354 = vadd.f32 %v3145, %v3353
        %v3355 = vpop.f32.mrf.mxu0
        %3356 = vdwg.mxu0
        %s3357 = scalar_lea.vmem %s6, 64
        %v3358 = vld [vmem:[%s3357] sm:$0xf]
        %v3359 = vld [vmem:[%s3357 + $0x4] sm:$0xf]
        %v3360 = vld [vmem:[%s3357 + $0x8] sm:$0xf]
        %v3361 = vld [vmem:[%s3357 + $0xc] sm:$0xf]
        %v3362 = vpack.c.bf16 %v3009, %v3009
        %v3363 = vpack.c.bf16 %v3034, %v3034
        %v3364 = vpack.c.bf16 %v3059, %v3059
        %v3365 = vpack.c.bf16 %v3084, %v3084
        %v3366 = vpack.c.bf16 %v3179, %v3179
        %v3367 = vpack.c.bf16 %v3204, %v3204
        %v3368 = vpack.c.bf16 %v3229, %v3229
        %v3369 = vpack.c.bf16 %v3254, %v3254
        %v3371 = vsel %vm915, %v3362, 0
        %v3374 = vsel %vm915, %v3366, 0
        %3376 = vmatpush.bf16.xpose.msra.mxu0 0
        %3377 = vmatpush.bf16.xpose.msra.mxu0 0
        %3378 = vmatpush.bf16.xpose.msra.mxu0 0
        %3379 = vmatpush.bf16.xpose.msra.mxu0 0
        %3380 = vmatpush.bf16.xpose.msra.mxu0 0
        %3381 = vmatpush.bf16.xpose.msra.mxu0 0
        %3382 = vmatpush.bf16.xpose.msra.mxu0 0
        %3383 = vmatpush.bf16.xpose.msra.mxu0 %v3374
        %3384 = vmatmul.bf16.gmra.mxu0 %v3371
        %v3385 = vpop.f32.mrf.mxu0
        %v3386 = vadd.f32 %v913, %v3385
        %v3387 = vpop.f32.mrf.mxu0
        %3388 = vdwg.mxu0
        %v3390 = vsel %vm915, %v3363, 0
        %v3393 = vsel %vm915, %v3367, 0
        %3395 = vmatpush.bf16.xpose.msra.mxu0 0
        %3396 = vmatpush.bf16.xpose.msra.mxu0 0
        %3397 = vmatpush.bf16.xpose.msra.mxu0 0
        %3398 = vmatpush.bf16.xpose.msra.mxu0 0
        %3399 = vmatpush.bf16.xpose.msra.mxu0 0
        %3400 = vmatpush.bf16.xpose.msra.mxu0 0
        %3401 = vmatpush.bf16.xpose.msra.mxu0 0
        %3402 = vmatpush.bf16.xpose.msra.mxu0 %v3393
        %3403 = vmatmul.bf16.gmra.mxu0 %v3390
        %v3404 = vpop.f32.mrf.mxu0
        %v3405 = vadd.f32 %v913, %v3404
        %v3406 = vpop.f32.mrf.mxu0
        %3407 = vdwg.mxu0
        %v3409 = vsel %vm915, %v3364, 0
        %v3412 = vsel %vm915, %v3368, 0
        %3414 = vmatpush.bf16.xpose.msra.mxu0 0
        %3415 = vmatpush.bf16.xpose.msra.mxu0 0
        %3416 = vmatpush.bf16.xpose.msra.mxu0 0
        %3417 = vmatpush.bf16.xpose.msra.mxu0 0
        %3418 = vmatpush.bf16.xpose.msra.mxu0 0
        %3419 = vmatpush.bf16.xpose.msra.mxu0 0
        %3420 = vmatpush.bf16.xpose.msra.mxu0 0
        %3421 = vmatpush.bf16.xpose.msra.mxu0 %v3412
        %3422 = vmatmul.bf16.gmra.mxu0 %v3409
        %v3423 = vpop.f32.mrf.mxu0
        %v3424 = vadd.f32 %v913, %v3423
        %v3425 = vpop.f32.mrf.mxu0
        %3426 = vdwg.mxu0
        %v3428 = vsel %vm915, %v3365, 0
        %v3431 = vsel %vm915, %v3369, 0
        %3433 = vmatpush.bf16.xpose.msra.mxu0 0
        %3434 = vmatpush.bf16.xpose.msra.mxu0 0
        %3435 = vmatpush.bf16.xpose.msra.mxu0 0
        %3436 = vmatpush.bf16.xpose.msra.mxu0 0
        %3437 = vmatpush.bf16.xpose.msra.mxu0 0
        %3438 = vmatpush.bf16.xpose.msra.mxu0 0
        %3439 = vmatpush.bf16.xpose.msra.mxu0 0
        %3440 = vmatpush.bf16.xpose.msra.mxu0 %v3431
        %3441 = vmatmul.bf16.gmra.mxu0 %v3428
        %v3442 = vpop.f32.mrf.mxu0
        %v3443 = vadd.f32 %v913, %v3442
        %v3444 = vpop.f32.mrf.mxu0
        %3445 = vdwg.mxu0
        %v3446 = vsel %vm915, %v3386, -inf
        %3447 = vmax.xlane.f32.xlu0 %v3446
        %v3448 = vpop.xlane.xlu0 %3447
        %v3449 = vsel %vm915, %v3405, -inf
        %3450 = vmax.xlane.f32.xlu0 %v3449
        %v3451 = vpop.xlane.xlu0 %3450
        %v3452 = vsel %vm915, %v3424, -inf
        %3453 = vmax.xlane.f32.xlu0 %v3452
        %v3454 = vpop.xlane.xlu0 %3453
        %v3455 = vsel %vm915, %v3443, -inf
        %3456 = vmax.xlane.f32.xlu0 %v3455
        %v3457 = vpop.xlane.xlu0 %3456
        %v3458 = vsub.f32 %v3386, %v3448
        %v3459 = vsub.f32 %v3405, %v3451
        %v3460 = vsub.f32 %v3424, %v3454
        %v3461 = vsub.f32 %v3443, %v3457
        %v3462 = vmul.f32 %v3458, 1.442695
        %v3463 = vpow.pop %v3462
        %v3464 = vmul.f32 %v3459, 1.442695
        %v3465 = vpow.pop %v3464
        %v3466 = vmul.f32 %v3460, 1.442695
        %v3467 = vpow.pop %v3466
        %v3468 = vmul.f32 %v3461, 1.442695
        %v3469 = vpow.pop %v3468
        %v3470 = vsel %vm915, %v3463, 0.0
        %3471 = vadd.xlane.f32.xlu0 %v3470
        %v3472 = vpop.xlane.xlu0 %3471
        %v3473 = vsel %vm915, %v3465, 0.0
        %3474 = vadd.xlane.f32.xlu0 %v3473
        %v3475 = vpop.xlane.xlu0 %3474
        %v3476 = vsel %vm915, %v3467, 0.0
        %3477 = vadd.xlane.f32.xlu0 %v3476
        %v3478 = vpop.xlane.xlu0 %3477
        %v3479 = vsel %vm915, %v3469, 0.0
        %3480 = vadd.xlane.f32.xlu0 %v3479
        %v3481 = vpop.xlane.xlu0 %3480
        %v3482 = vrcp.pop %v3472
        %v3483 = vrcp.pop %v3475
        %v3484 = vrcp.pop %v3478
        %v3485 = vrcp.pop %v3481
        %v3486 = vmul.f32 %v3463, %v3482
        %v3487 = vmul.f32 %v3465, %v3483
        %v3488 = vmul.f32 %v3467, %v3484
        %v3489 = vmul.f32 %v3469, %v3485
        %v3490 = vpack.c.bf16 %v3486, %v3486
        %v3491 = vpack.c.bf16 %v3487, %v3487
        %v3492 = vpack.c.bf16 %v3488, %v3488
        %v3493 = vpack.c.bf16 %v3489, %v3489
        %v3494 = vpack.c.bf16 %v3279, %v3279
        %v3495 = vpack.c.bf16 %v3304, %v3304
        %v3496 = vpack.c.bf16 %v3329, %v3329
        %v3497 = vpack.c.bf16 %v3354, %v3354
        %v3499 = vsel %vm915, %v3490, 0
        %v3502 = vsel %vm1047, %v3494, 0
        %3504 = vmatpush.bf16.msra.mxu0 0
        %3505 = vmatpush.bf16.msra.mxu0 0
        %3506 = vmatpush.bf16.msra.mxu0 0
        %3507 = vmatpush.bf16.msra.mxu0 0
        %3508 = vmatpush.bf16.msra.mxu0 0
        %3509 = vmatpush.bf16.msra.mxu0 0
        %3510 = vmatpush.bf16.msra.mxu0 0
        %3511 = vmatpush.bf16.msra.mxu0 %v3502
        %3512 = vmatmul.bf16.gmra.mxu0 %v3499
        %v3513 = vpop.f32.mrf.mxu0
        %v3514 = vadd.f32 0.0, %v3513
        %v3515 = vpop.f32.mrf.mxu0
        %3516 = vdwg.mxu0
        %v3518 = vsel %vm915, %v3491, 0
        %v3521 = vsel %vm1047, %v3495, 0
        %3523 = vmatpush.bf16.msra.mxu0 0
        %3524 = vmatpush.bf16.msra.mxu0 0
        %3525 = vmatpush.bf16.msra.mxu0 0
        %3526 = vmatpush.bf16.msra.mxu0 0
        %3527 = vmatpush.bf16.msra.mxu0 0
        %3528 = vmatpush.bf16.msra.mxu0 0
        %3529 = vmatpush.bf16.msra.mxu0 0
        %3530 = vmatpush.bf16.msra.mxu0 %v3521
        %3531 = vmatmul.bf16.gmra.mxu0 %v3518
        %v3532 = vpop.f32.mrf.mxu0
        %v3533 = vadd.f32 0.0, %v3532
        %v3534 = vpop.f32.mrf.mxu0
        %3535 = vdwg.mxu0
        %v3537 = vsel %vm915, %v3492, 0
        %v3540 = vsel %vm1047, %v3496, 0
        %3542 = vmatpush.bf16.msra.mxu0 0
        %3543 = vmatpush.bf16.msra.mxu0 0
        %3544 = vmatpush.bf16.msra.mxu0 0
        %3545 = vmatpush.bf16.msra.mxu0 0
        %3546 = vmatpush.bf16.msra.mxu0 0
        %3547 = vmatpush.bf16.msra.mxu0 0
        %3548 = vmatpush.bf16.msra.mxu0 0
        %3549 = vmatpush.bf16.msra.mxu0 %v3540
        %3550 = vmatmul.bf16.gmra.mxu0 %v3537
        %v3551 = vpop.f32.mrf.mxu0
        %v3552 = vadd.f32 0.0, %v3551
        %v3553 = vpop.f32.mrf.mxu0
        %3554 = vdwg.mxu0
        %v3556 = vsel %vm915, %v3493, 0
        %v3559 = vsel %vm1047, %v3497, 0
        %3561 = vmatpush.bf16.msra.mxu0 0
        %3562 = vmatpush.bf16.msra.mxu0 0
        %3563 = vmatpush.bf16.msra.mxu0 0
        %3564 = vmatpush.bf16.msra.mxu0 0
        %3565 = vmatpush.bf16.msra.mxu0 0
        %3566 = vmatpush.bf16.msra.mxu0 0
        %3567 = vmatpush.bf16.msra.mxu0 0
        %3568 = vmatpush.bf16.msra.mxu0 %v3559
        %3569 = vmatmul.bf16.gmra.mxu0 %v3556
        %v3570 = vpop.f32.mrf.mxu0
        %v3571 = vadd.f32 0.0, %v3570
        %v3572 = vpop.f32.mrf.mxu0
        %3573 = vdwg.mxu0
        %v3574 = vpack.c.bf16 %v3514, %v3514
        %v3575 = vpack.c.bf16 %v3533, %v3533
        %v3576 = vpack.c.bf16 %v3552, %v3552
        %v3577 = vpack.c.bf16 %v3571, %v3571
        %v3579 = vsel %vm915, %v3574, 0
        %v3582 = vsel %vm1047, %v3358, 0
        %3584 = vmatpush.bf16.msra.mxu0 0
        %3585 = vmatpush.bf16.msra.mxu0 0
        %3586 = vmatpush.bf16.msra.mxu0 0
        %3587 = vmatpush.bf16.msra.mxu0 0
        %3588 = vmatpush.bf16.msra.mxu0 0
        %3589 = vmatpush.bf16.msra.mxu0 0
        %3590 = vmatpush.bf16.msra.mxu0 0
        %3591 = vmatpush.bf16.msra.mxu0 %v3582
        %3592 = vmatmul.bf16.gmra.mxu0 %v3579
        %v3593 = vpop.f32.mrf.mxu0
        %v3594 = vadd.f32 0.0, %v3593
        %v3595 = vpop.f32.mrf.mxu0
        %3596 = vdwg.mxu0
        %v3598 = vsel %vm915, %v3575, 0
        %v3601 = vsel %vm1047, %v3359, 0
        %3603 = vmatpush.bf16.msra.mxu0 0
        %3604 = vmatpush.bf16.msra.mxu0 0
        %3605 = vmatpush.bf16.msra.mxu0 0
        %3606 = vmatpush.bf16.msra.mxu0 0
        %3607 = vmatpush.bf16.msra.mxu0 0
        %3608 = vmatpush.bf16.msra.mxu0 0
        %3609 = vmatpush.bf16.msra.mxu0 0
        %3610 = vmatpush.bf16.msra.mxu0 %v3601
        %3611 = vmatmul.bf16.gmra.mxu0 %v3598
        %v3612 = vpop.f32.mrf.mxu0
        %v3613 = vadd.f32 0.0, %v3612
        %v3614 = vpop.f32.mrf.mxu0
        %3615 = vdwg.mxu0
        %v3617 = vsel %vm915, %v3576, 0
        %v3620 = vsel %vm1047, %v3360, 0
        %3622 = vmatpush.bf16.msra.mxu0 0
        %3623 = vmatpush.bf16.msra.mxu0 0
        %3624 = vmatpush.bf16.msra.mxu0 0
        %3625 = vmatpush.bf16.msra.mxu0 0
        %3626 = vmatpush.bf16.msra.mxu0 0
        %3627 = vmatpush.bf16.msra.mxu0 0
        %3628 = vmatpush.bf16.msra.mxu0 0
        %3629 = vmatpush.bf16.msra.mxu0 %v3620
        %3630 = vmatmul.bf16.gmra.mxu0 %v3617
        %v3631 = vpop.f32.mrf.mxu0
        %v3632 = vadd.f32 0.0, %v3631
        %v3633 = vpop.f32.mrf.mxu0
        %3634 = vdwg.mxu0
        %v3636 = vsel %vm915, %v3577, 0
        %v3639 = vsel %vm1047, %v3361, 0
        %3641 = vmatpush.bf16.msra.mxu0 0
        %3642 = vmatpush.bf16.msra.mxu0 0
        %3643 = vmatpush.bf16.msra.mxu0 0
        %3644 = vmatpush.bf16.msra.mxu0 0
        %3645 = vmatpush.bf16.msra.mxu0 0
        %3646 = vmatpush.bf16.msra.mxu0 0
        %3647 = vmatpush.bf16.msra.mxu0 0
        %3648 = vmatpush.bf16.msra.mxu0 %v3639
        %3649 = vmatmul.bf16.gmra.mxu0 %v3636
        %v3650 = vpop.f32.mrf.mxu0
        %v3651 = vadd.f32 0.0, %v3650
        %v3652 = vpop.f32.mrf.mxu0
        %3653 = vdwg.mxu0
        %v3654 = vsel %vm608, %v3594, 0.0
        %v3655 = vsel %vm608, %v3613, 0.0
        %v3656 = vadd.f32 %v3654, %v3655
        %v3657 = vsel %vm608, %v3632, 0.0
        %v3658 = vadd.f32 %v3656, %v3657
        %v3659 = vsel %vm608, %v3651, 0.0
        %v3660 = vadd.f32 %v3658, %v3659
        %v3661 = vperm.slane %v483, 7
        %v3662 = vadd.f32 %v3660, %v3661
        %v3663 = vadd.f32 %v2948, %v3662
        %v3664 = vsel %vm608, %v3663, 0.0
        %3665 = vadd.xlane.f32.xlu0 %v3664
        %v3666 = vpop.xlane.xlu0 %3665
        %v3667 = vmul.f32 %v3666, %v1220
        %v3668 = vsub.f32 %v3663, %v3667
        %v3669 = vmul.f32 %v3668, %v3668
        %v3670 = vsel %vm608, %v3669, 0.0
        %3671 = vadd.xlane.f32.xlu0 %v3670
        %v3672 = vpop.xlane.xlu0 %3671
        %v3673 = vmul.f32 %v3672, %v1220
        %v3674 = vadd.f32 %v3673, 1e-05
        %v3675 = vrsqrt.pop %v3674
        %v3676 = vmul.f32 %v3675, %v3674
        %v3677 = vmul.f32 %v3676, %v3675
        %v3678 = vmul.f32 0.5, %v3677
        %v3679 = vsub.f32 1.5, %v3678
        %v3680 = vmul.f32 %v3675, %v3679
        %vm3681 = vweird.f32 %v3674
        %vm3682 = vweird.f32 %v3675
        %vm3683 = vmor %vm3681, %vm3682
        %v3684 = vsel %vm3683, %v3675, %v3680
        %v3685 = vmul.f32 %v3668, %v3684
        %v3686 = vperm.slane %v484, 0
        %v3687 = vmul.f32 %v3685, %v3686
        %v3688 = vperm.slane %v484, 1
        %v3689 = vadd.f32 %v3687, %v3688
        %s3690 = scalar_lea.vmem %s7, 32
        %v3691 = vld [vmem:[%s3690] sm:$0xf]
        %v3692 = vld [vmem:[%s3690 + $0x4] sm:$0xf]
        %v3693 = vld [vmem:[%s3690 + $0x8] sm:$0xf]
        %v3694 = vld [vmem:[%s3690 + $0xc] sm:$0xf]
        %s3695 = scalar_lea.vmem %s8, 2
        %v3696 = vld [vmem:[%s3695] sm:$0x1]
        %s3697 = scalar_lea.vmem %s9, 64
        %v3698 = vld [vmem:[%s3697] sm:$0xf]
        %v3699 = vld [vmem:[%s3697 + $0x4] sm:$0xf]
        %v3700 = vld [vmem:[%s3697 + $0x8] sm:$0xf]
        %v3701 = vld [vmem:[%s3697 + $0xc] sm:$0xf]
        %v3702 = vld [vmem:[%s3697 + $0x10] sm:$0xf]
        %v3703 = vld [vmem:[%s3697 + $0x14] sm:$0xf]
        %v3704 = vld [vmem:[%s3697 + $0x18] sm:$0xf]
        %v3705 = vld [vmem:[%s3697 + $0x1c] sm:$0xf]
        %v3706 = vpack.c.bf16 %v3689, %v3689
        %v3708 = vperm.slane %v3696, 0
        %v3714 = vunpack.c.l.b16 %v3691
        %v3715 = vunpack.c.l.b16 %v3692
        %v3716 = vunpack.c.l.b16 %v3693
        %v3717 = vunpack.c.l.b16 %v3694
        %v3718 = vpack.c.b16 %v3715, %v3714
        %v3719 = vpack.c.b16 %v3717, %v3716
        %v3723 = vsel %vm608, %v3706, 0
        %3725 = vmatpush.bf16.msra.mxu0 0
        %3726 = vmatpush.bf16.msra.mxu0 0
        %3727 = vmatpush.bf16.msra.mxu0 0
        %3728 = vmatpush.bf16.msra.mxu0 0
        %3729 = vmatpush.bf16.msra.mxu0 0
        %3730 = vmatpush.bf16.msra.mxu0 0
        %3731 = vmatpush.bf16.msra.mxu0 %v3719
        %3732 = vmatpush.bf16.msra.mxu0 %v3718
        %3733 = vmatmul.bf16.gmra.mxu0 %v3723
        %v3734 = vpop.f32.mrf.mxu0
        %v3735 = vadd.f32 %v3708, %v3734
        %v3736 = vpop.f32.mrf.mxu0
        %3737 = vdwg.mxu0
        %v3738 = vmax.f32 %v3735, 0.0
        %v3739 = vpack.c.bf16 %v3738, %v3738
        %v3740 = vperm.slane %v484, 2
        %v3749 = vunpack.c.l.b16 %v3698
        %v3750 = vunpack.c.l.b16 %v3699
        %v3751 = vunpack.c.l.b16 %v3700
        %v3752 = vunpack.c.l.b16 %v3701
        %v3753 = vunpack.c.l.b16 %v3702
        %v3754 = vunpack.c.l.b16 %v3703
        %v3755 = vunpack.c.l.b16 %v3704
        %v3756 = vunpack.c.l.b16 %v3705
        %v3757 = vpack.c.b16 %v3750, %v3749
        %v3758 = vpack.c.b16 %v3752, %v3751
        %v3759 = vpack.c.b16 %v3754, %v3753
        %v3760 = vpack.c.b16 %v3756, %v3755
        %v3766 = vsel %vm1316, %v3739, 0
        %3768 = vmatpush.bf16.msra.mxu0 0
        %3769 = vmatpush.bf16.msra.mxu0 0
        %3770 = vmatpush.bf16.msra.mxu0 0
        %3771 = vmatpush.bf16.msra.mxu0 0
        %3772 = vmatpush.bf16.msra.mxu0 %v3760
        %3773 = vmatpush.bf16.msra.mxu0 %v3759
        %3774 = vmatpush.bf16.msra.mxu0 %v3758
        %3775 = vmatpush.bf16.msra.mxu0 %v3757
        %3776 = vmatmul.bf16.gmra.mxu0 %v3766
        %v3777 = vpop.f32.mrf.mxu0
        %v3778 = vadd.f32 %v3740, %v3777
        %v3779 = vpop.f32.mrf.mxu0
        %3780 = vdwg.mxu0
        %v3781 = vadd.f32 %v3689, %v3778
        %v3782 = vsel %vm608, %v3781, 0.0
        %3783 = vadd.xlane.f32.xlu0 %v3782
        %v3784 = vpop.xlane.xlu0 %3783
        %v3785 = vmul.f32 %v3784, %v1220
        %v3786 = vsub.f32 %v3781, %v3785
        %v3787 = vmul.f32 %v3786, %v3786
        %v3788 = vsel %vm608, %v3787, 0.0
        %3789 = vadd.xlane.f32.xlu0 %v3788
        %v3790 = vpop.xlane.xlu0 %3789
        %v3791 = vmul.f32 %v3790, %v1220
        %v3792 = vadd.f32 %v3791, 1e-05
        %v3793 = vrsqrt.pop %v3792
        %v3794 = vmul.f32 %v3793, %v3792
        %v3795 = vmul.f32 %v3794, %v3793
        %v3796 = vmul.f32 0.5, %v3795
        %v3797 = vsub.f32 1.5, %v3796
        %v3798 = vmul.f32 %v3793, %v3797
        %vm3799 = vweird.f32 %v3792
        %vm3800 = vweird.f32 %v3793
        %vm3801 = vmor %vm3799, %vm3800
        %v3802 = vsel %vm3801, %v3793, %v3798
        %v3803 = vmul.f32 %v3786, %v3802
        %v3804 = vperm.slane %v484, 3
        %v3805 = vmul.f32 %v3803, %v3804
        %v3806 = vperm.slane %v484, 4
        %v3807 = vadd.f32 %v3805, %v3806
        %s3808 = scalar_lea.vmem %s4, 576
        %v3809 = vld [vmem:[%s3808] sm:$0xf]
        %v3810 = vld [vmem:[%s3808 + $0x4] sm:$0xf]
        %v3811 = vld [vmem:[%s3808 + $0x8] sm:$0xf]
        %v3812 = vld [vmem:[%s3808 + $0xc] sm:$0xf]
        %v3813 = vld [vmem:[%s3808 + $0x10] sm:$0xf]
        %v3814 = vld [vmem:[%s3808 + $0x14] sm:$0xf]
        %v3815 = vld [vmem:[%s3808 + $0x18] sm:$0xf]
        %v3816 = vld [vmem:[%s3808 + $0x1c] sm:$0xf]
        %v3817 = vld [vmem:[%s3808 + $0x20] sm:$0xf]
        %v3818 = vld [vmem:[%s3808 + $0x24] sm:$0xf]
        %v3819 = vld [vmem:[%s3808 + $0x28] sm:$0xf]
        %v3820 = vld [vmem:[%s3808 + $0x2c] sm:$0xf]
        %v3821 = vld [vmem:[%s3808 + $0x30] sm:$0xf]
        %v3822 = vld [vmem:[%s3808 + $0x34] sm:$0xf]
        %v3823 = vld [vmem:[%s3808 + $0x38] sm:$0xf]
        %v3824 = vld [vmem:[%s3808 + $0x3c] sm:$0xf]
        %v3825 = vld [vmem:[%s3808 + $0x40] sm:$0xf]
        %v3826 = vld [vmem:[%s3808 + $0x44] sm:$0xf]
        %v3827 = vld [vmem:[%s3808 + $0x48] sm:$0xf]
        %v3828 = vld [vmem:[%s3808 + $0x4c] sm:$0xf]
        %v3829 = vld [vmem:[%s3808 + $0x50] sm:$0xf]
        %v3830 = vld [vmem:[%s3808 + $0x54] sm:$0xf]
        %v3831 = vld [vmem:[%s3808 + $0x58] sm:$0xf]
        %v3832 = vld [vmem:[%s3808 + $0x5c] sm:$0xf]
        %v3833 = vld [vmem:[%s3808 + $0x60] sm:$0xf]
        %v3834 = vld [vmem:[%s3808 + $0x64] sm:$0xf]
        %v3835 = vld [vmem:[%s3808 + $0x68] sm:$0xf]
        %v3836 = vld [vmem:[%s3808 + $0x6c] sm:$0xf]
        %v3837 = vld [vmem:[%s3808 + $0x70] sm:$0xf]
        %v3838 = vld [vmem:[%s3808 + $0x74] sm:$0xf]
        %v3839 = vld [vmem:[%s3808 + $0x78] sm:$0xf]
        %v3840 = vld [vmem:[%s3808 + $0x7c] sm:$0xf]
        %v3841 = vld [vmem:[%s3808 + $0x80] sm:$0xf]
        %v3842 = vld [vmem:[%s3808 + $0x84] sm:$0xf]
        %v3843 = vld [vmem:[%s3808 + $0x88] sm:$0xf]
        %v3844 = vld [vmem:[%s3808 + $0x8c] sm:$0xf]
        %v3845 = vld [vmem:[%s3808 + $0x90] sm:$0xf]
        %v3846 = vld [vmem:[%s3808 + $0x94] sm:$0xf]
        %v3847 = vld [vmem:[%s3808 + $0x98] sm:$0xf]
        %v3848 = vld [vmem:[%s3808 + $0x9c] sm:$0xf]
        %v3849 = vld [vmem:[%s3808 + $0xa0] sm:$0xf]
        %v3850 = vld [vmem:[%s3808 + $0xa4] sm:$0xf]
        %v3851 = vld [vmem:[%s3808 + $0xa8] sm:$0xf]
        %v3852 = vld [vmem:[%s3808 + $0xac] sm:$0xf]
        %v3853 = vld [vmem:[%s3808 + $0xb0] sm:$0xf]
        %v3854 = vld [vmem:[%s3808 + $0xb4] sm:$0xf]
        %v3855 = vld [vmem:[%s3808 + $0xb8] sm:$0xf]
        %v3856 = vld [vmem:[%s3808 + $0xbc] sm:$0xf]
        %s3857 = scalar_lea.vmem %s5, 36
        %v3858 = vld [vmem:[%s3857] sm:$0x1]
        %v3859 = vld [vmem:[%s3857 + $0x1] sm:$0x1]
        %v3860 = vld [vmem:[%s3857 + $0x2] sm:$0x1]
        %v3861 = vld [vmem:[%s3857 + $0x3] sm:$0x1]
        %v3862 = vld [vmem:[%s3857 + $0x4] sm:$0x1]
        %v3863 = vld [vmem:[%s3857 + $0x5] sm:$0x1]
        %v3864 = vld [vmem:[%s3857 + $0x6] sm:$0x1]
        %v3865 = vld [vmem:[%s3857 + $0x7] sm:$0x1]
        %v3866 = vld [vmem:[%s3857 + $0x8] sm:$0x1]
        %v3867 = vld [vmem:[%s3857 + $0x9] sm:$0x1]
        %v3868 = vld [vmem:[%s3857 + $0xa] sm:$0x1]
        %v3869 = vld [vmem:[%s3857 + $0xb] sm:$0x1]
        %v3870 = vpack.c.bf16 %v3807, %v3807
        %v3883 = vperm.slane %v3858, 0
        %v3884 = vperm.slane %v3859, 0
        %v3885 = vperm.slane %v3860, 0
        %v3886 = vperm.slane %v3861, 0
        %v3887 = vperm.slane %v3862, 0
        %v3888 = vperm.slane %v3863, 0
        %v3889 = vperm.slane %v3864, 0
        %v3890 = vperm.slane %v3865, 0
        %v3891 = vperm.slane %v3866, 0
        %v3892 = vperm.slane %v3867, 0
        %v3893 = vperm.slane %v3868, 0
        %v3894 = vperm.slane %v3869, 0
        %v3911 = vunpack.c.l.b16 %v3809
        %v3912 = vunpack.c.l.b16 %v3810
        %v3913 = vunpack.c.l.b16 %v3811
        %v3914 = vunpack.c.l.b16 %v3812
        %v3915 = vpack.c.b16 %v3912, %v3911
        %v3916 = vpack.c.b16 %v3914, %v3913
        %v3920 = vsel %vm608, %v3870, 0
        %3922 = vmatpush.bf16.msra.mxu0 0
        %3923 = vmatpush.bf16.msra.mxu0 0
        %3924 = vmatpush.bf16.msra.mxu0 0
        %3925 = vmatpush.bf16.msra.mxu0 0
        %3926 = vmatpush.bf16.msra.mxu0 0
        %3927 = vmatpush.bf16.msra.mxu0 0
        %3928 = vmatpush.bf16.msra.mxu0 %v3916
        %3929 = vmatpush.bf16.msra.mxu0 %v3915
        %3930 = vmatmul.bf16.gmra.mxu0 %v3920
        %v3931 = vpop.f32.mrf.mxu0
        %v3932 = vadd.f32 %v3883, %v3931
        %v3933 = vpop.f32.mrf.mxu0
        %3934 = vdwg.mxu0
        %v3939 = vunpack.c.l.b16 %v3813
        %v3940 = vunpack.c.l.b16 %v3814
        %v3941 = vunpack.c.l.b16 %v3815
        %v3942 = vunpack.c.l.b16 %v3816
        %v3943 = vpack.c.b16 %v3940, %v3939
        %v3944 = vpack.c.b16 %v3942, %v3941
        %3947 = vmatpush.bf16.msra.mxu0 0
        %3948 = vmatpush.bf16.msra.mxu0 0
        %3949 = vmatpush.bf16.msra.mxu0 0
        %3950 = vmatpush.bf16.msra.mxu0 0
        %3951 = vmatpush.bf16.msra.mxu0 0
        %3952 = vmatpush.bf16.msra.mxu0 0
        %3953 = vmatpush.bf16.msra.mxu0 %v3944
        %3954 = vmatpush.bf16.msra.mxu0 %v3943
        %3955 = vmatmul.bf16.gmra.mxu0 %v3920
        %v3956 = vpop.f32.mrf.mxu0
        %v3957 = vadd.f32 %v3884, %v3956
        %v3958 = vpop.f32.mrf.mxu0
        %3959 = vdwg.mxu0
        %v3964 = vunpack.c.l.b16 %v3817
        %v3965 = vunpack.c.l.b16 %v3818
        %v3966 = vunpack.c.l.b16 %v3819
        %v3967 = vunpack.c.l.b16 %v3820
        %v3968 = vpack.c.b16 %v3965, %v3964
        %v3969 = vpack.c.b16 %v3967, %v3966
        %3972 = vmatpush.bf16.msra.mxu0 0
        %3973 = vmatpush.bf16.msra.mxu0 0
        %3974 = vmatpush.bf16.msra.mxu0 0
        %3975 = vmatpush.bf16.msra.mxu0 0
        %3976 = vmatpush.bf16.msra.mxu0 0
        %3977 = vmatpush.bf16.msra.mxu0 0
        %3978 = vmatpush.bf16.msra.mxu0 %v3969
        %3979 = vmatpush.bf16.msra.mxu0 %v3968
        %3980 = vmatmul.bf16.gmra.mxu0 %v3920
        %v3981 = vpop.f32.mrf.mxu0
        %v3982 = vadd.f32 %v3885, %v3981
        %v3983 = vpop.f32.mrf.mxu0
        %3984 = vdwg.mxu0
        %v3989 = vunpack.c.l.b16 %v3821
        %v3990 = vunpack.c.l.b16 %v3822
        %v3991 = vunpack.c.l.b16 %v3823
        %v3992 = vunpack.c.l.b16 %v3824
        %v3993 = vpack.c.b16 %v3990, %v3989
        %v3994 = vpack.c.b16 %v3992, %v3991
        %3997 = vmatpush.bf16.msra.mxu0 0
        %3998 = vmatpush.bf16.msra.mxu0 0
        %3999 = vmatpush.bf16.msra.mxu0 0
        %4000 = vmatpush.bf16.msra.mxu0 0
        %4001 = vmatpush.bf16.msra.mxu0 0
        %4002 = vmatpush.bf16.msra.mxu0 0
        %4003 = vmatpush.bf16.msra.mxu0 %v3994
        %4004 = vmatpush.bf16.msra.mxu0 %v3993
        %4005 = vmatmul.bf16.gmra.mxu0 %v3920
        %v4006 = vpop.f32.mrf.mxu0
        %v4007 = vadd.f32 %v3886, %v4006
        %v4008 = vpop.f32.mrf.mxu0
        %4009 = vdwg.mxu0
        %v4014 = vunpack.c.l.b16 %v3825
        %v4015 = vunpack.c.l.b16 %v3826
        %v4016 = vunpack.c.l.b16 %v3827
        %v4017 = vunpack.c.l.b16 %v3828
        %v4018 = vpack.c.b16 %v4015, %v4014
        %v4019 = vpack.c.b16 %v4017, %v4016
        %4022 = vmatpush.bf16.msra.mxu0 0
        %4023 = vmatpush.bf16.msra.mxu0 0
        %4024 = vmatpush.bf16.msra.mxu0 0
        %4025 = vmatpush.bf16.msra.mxu0 0
        %4026 = vmatpush.bf16.msra.mxu0 0
        %4027 = vmatpush.bf16.msra.mxu0 0
        %4028 = vmatpush.bf16.msra.mxu0 %v4019
        %4029 = vmatpush.bf16.msra.mxu0 %v4018
        %4030 = vmatmul.bf16.gmra.mxu0 %v3920
        %v4031 = vpop.f32.mrf.mxu0
        %v4032 = vadd.f32 %v3887, %v4031
        %v4033 = vpop.f32.mrf.mxu0
        %4034 = vdwg.mxu0
        %v4039 = vunpack.c.l.b16 %v3829
        %v4040 = vunpack.c.l.b16 %v3830
        %v4041 = vunpack.c.l.b16 %v3831
        %v4042 = vunpack.c.l.b16 %v3832
        %v4043 = vpack.c.b16 %v4040, %v4039
        %v4044 = vpack.c.b16 %v4042, %v4041
        %4047 = vmatpush.bf16.msra.mxu0 0
        %4048 = vmatpush.bf16.msra.mxu0 0
        %4049 = vmatpush.bf16.msra.mxu0 0
        %4050 = vmatpush.bf16.msra.mxu0 0
        %4051 = vmatpush.bf16.msra.mxu0 0
        %4052 = vmatpush.bf16.msra.mxu0 0
        %4053 = vmatpush.bf16.msra.mxu0 %v4044
        %4054 = vmatpush.bf16.msra.mxu0 %v4043
        %4055 = vmatmul.bf16.gmra.mxu0 %v3920
        %v4056 = vpop.f32.mrf.mxu0
        %v4057 = vadd.f32 %v3888, %v4056
        %v4058 = vpop.f32.mrf.mxu0
        %4059 = vdwg.mxu0
        %v4064 = vunpack.c.l.b16 %v3833
        %v4065 = vunpack.c.l.b16 %v3834
        %v4066 = vunpack.c.l.b16 %v3835
        %v4067 = vunpack.c.l.b16 %v3836
        %v4068 = vpack.c.b16 %v4065, %v4064
        %v4069 = vpack.c.b16 %v4067, %v4066
        %4072 = vmatpush.bf16.msra.mxu0 0
        %4073 = vmatpush.bf16.msra.mxu0 0
        %4074 = vmatpush.bf16.msra.mxu0 0
        %4075 = vmatpush.bf16.msra.mxu0 0
        %4076 = vmatpush.bf16.msra.mxu0 0
        %4077 = vmatpush.bf16.msra.mxu0 0
        %4078 = vmatpush.bf16.msra.mxu0 %v4069
        %4079 = vmatpush.bf16.msra.mxu0 %v4068
        %4080 = vmatmul.bf16.gmra.mxu0 %v3920
        %v4081 = vpop.f32.mrf.mxu0
        %v4082 = vadd.f32 %v3889, %v4081
        %v4083 = vpop.f32.mrf.mxu0
        %4084 = vdwg.mxu0
        %v4089 = vunpack.c.l.b16 %v3837
        %v4090 = vunpack.c.l.b16 %v3838
        %v4091 = vunpack.c.l.b16 %v3839
        %v4092 = vunpack.c.l.b16 %v3840
        %v4093 = vpack.c.b16 %v4090, %v4089
        %v4094 = vpack.c.b16 %v4092, %v4091
        %4097 = vmatpush.bf16.msra.mxu0 0
        %4098 = vmatpush.bf16.msra.mxu0 0
        %4099 = vmatpush.bf16.msra.mxu0 0
        %4100 = vmatpush.bf16.msra.mxu0 0
        %4101 = vmatpush.bf16.msra.mxu0 0
        %4102 = vmatpush.bf16.msra.mxu0 0
        %4103 = vmatpush.bf16.msra.mxu0 %v4094
        %4104 = vmatpush.bf16.msra.mxu0 %v4093
        %4105 = vmatmul.bf16.gmra.mxu0 %v3920
        %v4106 = vpop.f32.mrf.mxu0
        %v4107 = vadd.f32 %v3890, %v4106
        %v4108 = vpop.f32.mrf.mxu0
        %4109 = vdwg.mxu0
        %v4114 = vunpack.c.l.b16 %v3841
        %v4115 = vunpack.c.l.b16 %v3842
        %v4116 = vunpack.c.l.b16 %v3843
        %v4117 = vunpack.c.l.b16 %v3844
        %v4118 = vpack.c.b16 %v4115, %v4114
        %v4119 = vpack.c.b16 %v4117, %v4116
        %4122 = vmatpush.bf16.msra.mxu0 0
        %4123 = vmatpush.bf16.msra.mxu0 0
        %4124 = vmatpush.bf16.msra.mxu0 0
        %4125 = vmatpush.bf16.msra.mxu0 0
        %4126 = vmatpush.bf16.msra.mxu0 0
        %4127 = vmatpush.bf16.msra.mxu0 0
        %4128 = vmatpush.bf16.msra.mxu0 %v4119
        %4129 = vmatpush.bf16.msra.mxu0 %v4118
        %4130 = vmatmul.bf16.gmra.mxu0 %v3920
        %v4131 = vpop.f32.mrf.mxu0
        %v4132 = vadd.f32 %v3891, %v4131
        %v4133 = vpop.f32.mrf.mxu0
        %4134 = vdwg.mxu0
        %v4139 = vunpack.c.l.b16 %v3845
        %v4140 = vunpack.c.l.b16 %v3846
        %v4141 = vunpack.c.l.b16 %v3847
        %v4142 = vunpack.c.l.b16 %v3848
        %v4143 = vpack.c.b16 %v4140, %v4139
        %v4144 = vpack.c.b16 %v4142, %v4141
        %4147 = vmatpush.bf16.msra.mxu0 0
        %4148 = vmatpush.bf16.msra.mxu0 0
        %4149 = vmatpush.bf16.msra.mxu0 0
        %4150 = vmatpush.bf16.msra.mxu0 0
        %4151 = vmatpush.bf16.msra.mxu0 0
        %4152 = vmatpush.bf16.msra.mxu0 0
        %4153 = vmatpush.bf16.msra.mxu0 %v4144
        %4154 = vmatpush.bf16.msra.mxu0 %v4143
        %4155 = vmatmul.bf16.gmra.mxu0 %v3920
        %v4156 = vpop.f32.mrf.mxu0
        %v4157 = vadd.f32 %v3892, %v4156
        %v4158 = vpop.f32.mrf.mxu0
        %4159 = vdwg.mxu0
        %v4164 = vunpack.c.l.b16 %v3849
        %v4165 = vunpack.c.l.b16 %v3850
        %v4166 = vunpack.c.l.b16 %v3851
        %v4167 = vunpack.c.l.b16 %v3852
        %v4168 = vpack.c.b16 %v4165, %v4164
        %v4169 = vpack.c.b16 %v4167, %v4166
        %4172 = vmatpush.bf16.msra.mxu0 0
        %4173 = vmatpush.bf16.msra.mxu0 0
        %4174 = vmatpush.bf16.msra.mxu0 0
        %4175 = vmatpush.bf16.msra.mxu0 0
        %4176 = vmatpush.bf16.msra.mxu0 0
        %4177 = vmatpush.bf16.msra.mxu0 0
        %4178 = vmatpush.bf16.msra.mxu0 %v4169
        %4179 = vmatpush.bf16.msra.mxu0 %v4168
        %4180 = vmatmul.bf16.gmra.mxu0 %v3920
        %v4181 = vpop.f32.mrf.mxu0
        %v4182 = vadd.f32 %v3893, %v4181
        %v4183 = vpop.f32.mrf.mxu0
        %4184 = vdwg.mxu0
        %v4189 = vunpack.c.l.b16 %v3853
        %v4190 = vunpack.c.l.b16 %v3854
        %v4191 = vunpack.c.l.b16 %v3855
        %v4192 = vunpack.c.l.b16 %v3856
        %v4193 = vpack.c.b16 %v4190, %v4189
        %v4194 = vpack.c.b16 %v4192, %v4191
        %4197 = vmatpush.bf16.msra.mxu0 0
        %4198 = vmatpush.bf16.msra.mxu0 0
        %4199 = vmatpush.bf16.msra.mxu0 0
        %4200 = vmatpush.bf16.msra.mxu0 0
        %4201 = vmatpush.bf16.msra.mxu0 0
        %4202 = vmatpush.bf16.msra.mxu0 0
        %4203 = vmatpush.bf16.msra.mxu0 %v4194
        %4204 = vmatpush.bf16.msra.mxu0 %v4193
        %4205 = vmatmul.bf16.gmra.mxu0 %v3920
        %v4206 = vpop.f32.mrf.mxu0
        %v4207 = vadd.f32 %v3894, %v4206
        %v4208 = vpop.f32.mrf.mxu0
        %4209 = vdwg.mxu0
        %s4210 = scalar_lea.vmem %s6, 48
        %v4211 = vld [vmem:[%s4210] sm:$0xf]
        %v4212 = vld [vmem:[%s4210 + $0x4] sm:$0xf]
        %v4213 = vld [vmem:[%s4210 + $0x8] sm:$0xf]
        %v4214 = vld [vmem:[%s4210 + $0xc] sm:$0xf]
        %v4215 = vpack.c.bf16 %v3932, %v3932
        %v4216 = vpack.c.bf16 %v3957, %v3957
        %v4217 = vpack.c.bf16 %v3982, %v3982
        %v4218 = vpack.c.bf16 %v4007, %v4007
        %v4219 = vpack.c.bf16 %v4032, %v4032
        %v4220 = vpack.c.bf16 %v4057, %v4057
        %v4221 = vpack.c.bf16 %v4082, %v4082
        %v4222 = vpack.c.bf16 %v4107, %v4107
        %v4224 = vsel %vm915, %v4215, 0
        %v4227 = vsel %vm915, %v4219, 0
        %4229 = vmatpush.bf16.xpose.msra.mxu0 0
        %4230 = vmatpush.bf16.xpose.msra.mxu0 0
        %4231 = vmatpush.bf16.xpose.msra.mxu0 0
        %4232 = vmatpush.bf16.xpose.msra.mxu0 0
        %4233 = vmatpush.bf16.xpose.msra.mxu0 0
        %4234 = vmatpush.bf16.xpose.msra.mxu0 0
        %4235 = vmatpush.bf16.xpose.msra.mxu0 0
        %4236 = vmatpush.bf16.xpose.msra.mxu0 %v4227
        %4237 = vmatmul.bf16.gmra.mxu0 %v4224
        %v4238 = vpop.f32.mrf.mxu0
        %v4239 = vadd.f32 %v497, %v4238
        %v4240 = vpop.f32.mrf.mxu0
        %4241 = vdwg.mxu0
        %v4243 = vsel %vm915, %v4216, 0
        %v4246 = vsel %vm915, %v4220, 0
        %4248 = vmatpush.bf16.xpose.msra.mxu0 0
        %4249 = vmatpush.bf16.xpose.msra.mxu0 0
        %4250 = vmatpush.bf16.xpose.msra.mxu0 0
        %4251 = vmatpush.bf16.xpose.msra.mxu0 0
        %4252 = vmatpush.bf16.xpose.msra.mxu0 0
        %4253 = vmatpush.bf16.xpose.msra.mxu0 0
        %4254 = vmatpush.bf16.xpose.msra.mxu0 0
        %4255 = vmatpush.bf16.xpose.msra.mxu0 %v4246
        %4256 = vmatmul.bf16.gmra.mxu0 %v4243
        %v4257 = vpop.f32.mrf.mxu0
        %v4258 = vadd.f32 %v497, %v4257
        %v4259 = vpop.f32.mrf.mxu0
        %4260 = vdwg.mxu0
        %v4262 = vsel %vm915, %v4217, 0
        %v4265 = vsel %vm915, %v4221, 0
        %4267 = vmatpush.bf16.xpose.msra.mxu0 0
        %4268 = vmatpush.bf16.xpose.msra.mxu0 0
        %4269 = vmatpush.bf16.xpose.msra.mxu0 0
        %4270 = vmatpush.bf16.xpose.msra.mxu0 0
        %4271 = vmatpush.bf16.xpose.msra.mxu0 0
        %4272 = vmatpush.bf16.xpose.msra.mxu0 0
        %4273 = vmatpush.bf16.xpose.msra.mxu0 0
        %4274 = vmatpush.bf16.xpose.msra.mxu0 %v4265
        %4275 = vmatmul.bf16.gmra.mxu0 %v4262
        %v4276 = vpop.f32.mrf.mxu0
        %v4277 = vadd.f32 %v497, %v4276
        %v4278 = vpop.f32.mrf.mxu0
        %4279 = vdwg.mxu0
        %v4281 = vsel %vm915, %v4218, 0
        %v4284 = vsel %vm915, %v4222, 0
        %4286 = vmatpush.bf16.xpose.msra.mxu0 0
        %4287 = vmatpush.bf16.xpose.msra.mxu0 0
        %4288 = vmatpush.bf16.xpose.msra.mxu0 0
        %4289 = vmatpush.bf16.xpose.msra.mxu0 0
        %4290 = vmatpush.bf16.xpose.msra.mxu0 0
        %4291 = vmatpush.bf16.xpose.msra.mxu0 0
        %4292 = vmatpush.bf16.xpose.msra.mxu0 0
        %4293 = vmatpush.bf16.xpose.msra.mxu0 %v4284
        %4294 = vmatmul.bf16.gmra.mxu0 %v4281
        %v4295 = vpop.f32.mrf.mxu0
        %v4296 = vadd.f32 %v497, %v4295
        %v4297 = vpop.f32.mrf.mxu0
        %4298 = vdwg.mxu0
        %v4299 = vsel %vm915, %v4239, -inf
        %4300 = vmax.xlane.f32.xlu0 %v4299
        %v4301 = vpop.xlane.xlu0 %4300
        %v4302 = vsel %vm915, %v4258, -inf
        %4303 = vmax.xlane.f32.xlu0 %v4302
        %v4304 = vpop.xlane.xlu0 %4303
        %v4305 = vsel %vm915, %v4277, -inf
        %4306 = vmax.xlane.f32.xlu0 %v4305
        %v4307 = vpop.xlane.xlu0 %4306
        %v4308 = vsel %vm915, %v4296, -inf
        %4309 = vmax.xlane.f32.xlu0 %v4308
        %v4310 = vpop.xlane.xlu0 %4309
        %v4311 = vsub.f32 %v4239, %v4301
        %v4312 = vsub.f32 %v4258, %v4304
        %v4313 = vsub.f32 %v4277, %v4307
        %v4314 = vsub.f32 %v4296, %v4310
        %v4315 = vmul.f32 %v4311, 1.442695
        %v4316 = vpow.pop %v4315
        %v4317 = vmul.f32 %v4312, 1.442695
        %v4318 = vpow.pop %v4317
        %v4319 = vmul.f32 %v4313, 1.442695
        %v4320 = vpow.pop %v4319
        %v4321 = vmul.f32 %v4314, 1.442695
        %v4322 = vpow.pop %v4321
        %v4323 = vsel %vm915, %v4316, 0.0
        %4324 = vadd.xlane.f32.xlu0 %v4323
        %v4325 = vpop.xlane.xlu0 %4324
        %v4326 = vsel %vm915, %v4318, 0.0
        %4327 = vadd.xlane.f32.xlu0 %v4326
        %v4328 = vpop.xlane.xlu0 %4327
        %v4329 = vsel %vm915, %v4320, 0.0
        %4330 = vadd.xlane.f32.xlu0 %v4329
        %v4331 = vpop.xlane.xlu0 %4330
        %v4332 = vsel %vm915, %v4322, 0.0
        %4333 = vadd.xlane.f32.xlu0 %v4332
        %v4334 = vpop.xlane.xlu0 %4333
        %v4335 = vrcp.pop %v4325
        %v4336 = vrcp.pop %v4328
        %v4337 = vrcp.pop %v4331
        %v4338 = vrcp.pop %v4334
        %v4339 = vmul.f32 %v4316, %v4335
        %v4340 = vmul.f32 %v4318, %v4336
        %v4341 = vmul.f32 %v4320, %v4337
        %v4342 = vmul.f32 %v4322, %v4338
        %v4343 = vpack.c.bf16 %v4339, %v4339
        %v4344 = vpack.c.bf16 %v4340, %v4340
        %v4345 = vpack.c.bf16 %v4341, %v4341
        %v4346 = vpack.c.bf16 %v4342, %v4342
        %v4347 = vpack.c.bf16 %v4132, %v4132
        %v4348 = vpack.c.bf16 %v4157, %v4157
        %v4349 = vpack.c.bf16 %v4182, %v4182
        %v4350 = vpack.c.bf16 %v4207, %v4207
        %v4352 = vsel %vm915, %v4343, 0
        %v4355 = vsel %vm1047, %v4347, 0
        %4357 = vmatpush.bf16.msra.mxu0 0
        %4358 = vmatpush.bf16.msra.mxu0 0
        %4359 = vmatpush.bf16.msra.mxu0 0
        %4360 = vmatpush.bf16.msra.mxu0 0
        %4361 = vmatpush.bf16.msra.mxu0 0
        %4362 = vmatpush.bf16.msra.mxu0 0
        %4363 = vmatpush.bf16.msra.mxu0 0
        %4364 = vmatpush.bf16.msra.mxu0 %v4355
        %4365 = vmatmul.bf16.gmra.mxu0 %v4352
        %v4366 = vpop.f32.mrf.mxu0
        %v4367 = vadd.f32 0.0, %v4366
        %v4368 = vpop.f32.mrf.mxu0
        %4369 = vdwg.mxu0
        %v4371 = vsel %vm915, %v4344, 0
        %v4374 = vsel %vm1047, %v4348, 0
        %4376 = vmatpush.bf16.msra.mxu0 0
        %4377 = vmatpush.bf16.msra.mxu0 0
        %4378 = vmatpush.bf16.msra.mxu0 0
        %4379 = vmatpush.bf16.msra.mxu0 0
        %4380 = vmatpush.bf16.msra.mxu0 0
        %4381 = vmatpush.bf16.msra.mxu0 0
        %4382 = vmatpush.bf16.msra.mxu0 0
        %4383 = vmatpush.bf16.msra.mxu0 %v4374
        %4384 = vmatmul.bf16.gmra.mxu0 %v4371
        %v4385 = vpop.f32.mrf.mxu0
        %v4386 = vadd.f32 0.0, %v4385
        %v4387 = vpop.f32.mrf.mxu0
        %4388 = vdwg.mxu0
        %v4390 = vsel %vm915, %v4345, 0
        %v4393 = vsel %vm1047, %v4349, 0
        %4395 = vmatpush.bf16.msra.mxu0 0
        %4396 = vmatpush.bf16.msra.mxu0 0
        %4397 = vmatpush.bf16.msra.mxu0 0
        %4398 = vmatpush.bf16.msra.mxu0 0
        %4399 = vmatpush.bf16.msra.mxu0 0
        %4400 = vmatpush.bf16.msra.mxu0 0
        %4401 = vmatpush.bf16.msra.mxu0 0
        %4402 = vmatpush.bf16.msra.mxu0 %v4393
        %4403 = vmatmul.bf16.gmra.mxu0 %v4390
        %v4404 = vpop.f32.mrf.mxu0
        %v4405 = vadd.f32 0.0, %v4404
        %v4406 = vpop.f32.mrf.mxu0
        %4407 = vdwg.mxu0
        %v4409 = vsel %vm915, %v4346, 0
        %v4412 = vsel %vm1047, %v4350, 0
        %4414 = vmatpush.bf16.msra.mxu0 0
        %4415 = vmatpush.bf16.msra.mxu0 0
        %4416 = vmatpush.bf16.msra.mxu0 0
        %4417 = vmatpush.bf16.msra.mxu0 0
        %4418 = vmatpush.bf16.msra.mxu0 0
        %4419 = vmatpush.bf16.msra.mxu0 0
        %4420 = vmatpush.bf16.msra.mxu0 0
        %4421 = vmatpush.bf16.msra.mxu0 %v4412
        %4422 = vmatmul.bf16.gmra.mxu0 %v4409
        %v4423 = vpop.f32.mrf.mxu0
        %v4424 = vadd.f32 0.0, %v4423
        %v4425 = vpop.f32.mrf.mxu0
        %4426 = vdwg.mxu0
        %v4427 = vpack.c.bf16 %v4367, %v4367
        %v4428 = vpack.c.bf16 %v4386, %v4386
        %v4429 = vpack.c.bf16 %v4405, %v4405
        %v4430 = vpack.c.bf16 %v4424, %v4424
        %v4432 = vsel %vm915, %v4427, 0
        %v4435 = vsel %vm1047, %v4211, 0
        %4437 = vmatpush.bf16.msra.mxu0 0
        %4438 = vmatpush.bf16.msra.mxu0 0
        %4439 = vmatpush.bf16.msra.mxu0 0
        %4440 = vmatpush.bf16.msra.mxu0 0
        %4441 = vmatpush.bf16.msra.mxu0 0
        %4442 = vmatpush.bf16.msra.mxu0 0
        %4443 = vmatpush.bf16.msra.mxu0 0
        %4444 = vmatpush.bf16.msra.mxu0 %v4435
        %4445 = vmatmul.bf16.gmra.mxu0 %v4432
        %v4446 = vpop.f32.mrf.mxu0
        %v4447 = vadd.f32 0.0, %v4446
        %v4448 = vpop.f32.mrf.mxu0
        %4449 = vdwg.mxu0
        %v4451 = vsel %vm915, %v4428, 0
        %v4454 = vsel %vm1047, %v4212, 0
        %4456 = vmatpush.bf16.msra.mxu0 0
        %4457 = vmatpush.bf16.msra.mxu0 0
        %4458 = vmatpush.bf16.msra.mxu0 0
        %4459 = vmatpush.bf16.msra.mxu0 0
        %4460 = vmatpush.bf16.msra.mxu0 0
        %4461 = vmatpush.bf16.msra.mxu0 0
        %4462 = vmatpush.bf16.msra.mxu0 0
        %4463 = vmatpush.bf16.msra.mxu0 %v4454
        %4464 = vmatmul.bf16.gmra.mxu0 %v4451
        %v4465 = vpop.f32.mrf.mxu0
        %v4466 = vadd.f32 0.0, %v4465
        %v4467 = vpop.f32.mrf.mxu0
        %4468 = vdwg.mxu0
        %v4470 = vsel %vm915, %v4429, 0
        %v4473 = vsel %vm1047, %v4213, 0
        %4475 = vmatpush.bf16.msra.mxu0 0
        %4476 = vmatpush.bf16.msra.mxu0 0
        %4477 = vmatpush.bf16.msra.mxu0 0
        %4478 = vmatpush.bf16.msra.mxu0 0
        %4479 = vmatpush.bf16.msra.mxu0 0
        %4480 = vmatpush.bf16.msra.mxu0 0
        %4481 = vmatpush.bf16.msra.mxu0 0
        %4482 = vmatpush.bf16.msra.mxu0 %v4473
        %4483 = vmatmul.bf16.gmra.mxu0 %v4470
        %v4484 = vpop.f32.mrf.mxu0
        %v4485 = vadd.f32 0.0, %v4484
        %v4486 = vpop.f32.mrf.mxu0
        %4487 = vdwg.mxu0
        %v4489 = vsel %vm915, %v4430, 0
        %v4492 = vsel %vm1047, %v4214, 0
        %4494 = vmatpush.bf16.msra.mxu0 0
        %4495 = vmatpush.bf16.msra.mxu0 0
        %4496 = vmatpush.bf16.msra.mxu0 0
        %4497 = vmatpush.bf16.msra.mxu0 0
        %4498 = vmatpush.bf16.msra.mxu0 0
        %4499 = vmatpush.bf16.msra.mxu0 0
        %4500 = vmatpush.bf16.msra.mxu0 0
        %4501 = vmatpush.bf16.msra.mxu0 %v4492
        %4502 = vmatmul.bf16.gmra.mxu0 %v4489
        %v4503 = vpop.f32.mrf.mxu0
        %v4504 = vadd.f32 0.0, %v4503
        %v4505 = vpop.f32.mrf.mxu0
        %4506 = vdwg.mxu0
        %v4507 = vsel %vm608, %v4447, 0.0
        %v4508 = vsel %vm608, %v4466, 0.0
        %v4509 = vadd.f32 %v4507, %v4508
        %v4510 = vsel %vm608, %v4485, 0.0
        %v4511 = vadd.f32 %v4509, %v4510
        %v4512 = vsel %vm608, %v4504, 0.0
        %v4513 = vadd.f32 %v4511, %v4512
        %v4514 = vperm.slane %v484, 5
        %v4515 = vadd.f32 %v4513, %v4514
        %v4516 = vadd.f32 %v3807, %v4515
        %v4517 = vsel %vm608, %v4516, 0.0
        %4518 = vadd.xlane.f32.xlu0 %v4517
        %v4519 = vpop.xlane.xlu0 %4518
        %v4520 = vmul.f32 %v4519, %v1220
        %v4521 = vsub.f32 %v4516, %v4520
        %v4522 = vmul.f32 %v4521, %v4521
        %v4523 = vsel %vm608, %v4522, 0.0
        %4524 = vadd.xlane.f32.xlu0 %v4523
        %v4525 = vpop.xlane.xlu0 %4524
        %v4526 = vmul.f32 %v4525, %v1220
        %v4527 = vadd.f32 %v4526, 1e-05
        %v4528 = vrsqrt.pop %v4527
        %v4529 = vmul.f32 %v4528, %v4527
        %v4530 = vmul.f32 %v4529, %v4528
        %v4531 = vmul.f32 0.5, %v4530
        %v4532 = vsub.f32 1.5, %v4531
        %v4533 = vmul.f32 %v4528, %v4532
        %vm4534 = vweird.f32 %v4527
        %vm4535 = vweird.f32 %v4528
        %vm4536 = vmor %vm4534, %vm4535
        %v4537 = vsel %vm4536, %v4528, %v4533
        %v4538 = vmul.f32 %v4521, %v4537
        %v4539 = vperm.slane %v484, 6
        %v4540 = vmul.f32 %v4538, %v4539
        %v4541 = vperm.slane %v484, 7
        %v4542 = vadd.f32 %v4540, %v4541
        %s4543 = scalar_lea.vmem %s4, 960
        %v4544 = vld [vmem:[%s4543] sm:$0xf]
        %v4545 = vld [vmem:[%s4543 + $0x4] sm:$0xf]
        %v4546 = vld [vmem:[%s4543 + $0x8] sm:$0xf]
        %v4547 = vld [vmem:[%s4543 + $0xc] sm:$0xf]
        %v4548 = vld [vmem:[%s4543 + $0x10] sm:$0xf]
        %v4549 = vld [vmem:[%s4543 + $0x14] sm:$0xf]
        %v4550 = vld [vmem:[%s4543 + $0x18] sm:$0xf]
        %v4551 = vld [vmem:[%s4543 + $0x1c] sm:$0xf]
        %v4552 = vld [vmem:[%s4543 + $0x20] sm:$0xf]
        %v4553 = vld [vmem:[%s4543 + $0x24] sm:$0xf]
        %v4554 = vld [vmem:[%s4543 + $0x28] sm:$0xf]
        %v4555 = vld [vmem:[%s4543 + $0x2c] sm:$0xf]
        %v4556 = vld [vmem:[%s4543 + $0x30] sm:$0xf]
        %v4557 = vld [vmem:[%s4543 + $0x34] sm:$0xf]
        %v4558 = vld [vmem:[%s4543 + $0x38] sm:$0xf]
        %v4559 = vld [vmem:[%s4543 + $0x3c] sm:$0xf]
        %s4560 = scalar_lea.vmem %s5, 60
        %v4561 = vld [vmem:[%s4560] sm:$0x1]
        %v4562 = vld [vmem:[%s4560 + $0x1] sm:$0x1]
        %v4563 = vld [vmem:[%s4560 + $0x2] sm:$0x1]
        %v4564 = vld [vmem:[%s4560 + $0x3] sm:$0x1]
        %v4565 = vpack.c.bf16 %v4542, %v4542
        %v4570 = vperm.slane %v4561, 0
        %v4571 = vperm.slane %v4562, 0
        %v4572 = vperm.slane %v4563, 0
        %v4573 = vperm.slane %v4564, 0
        %v4582 = vunpack.c.l.b16 %v4544
        %v4583 = vunpack.c.l.b16 %v4545
        %v4584 = vunpack.c.l.b16 %v4546
        %v4585 = vunpack.c.l.b16 %v4547
        %v4586 = vpack.c.b16 %v4583, %v4582
        %v4587 = vpack.c.b16 %v4585, %v4584
        %v4591 = vsel %vm608, %v4565, 0
        %4593 = vmatpush.bf16.msra.mxu0 0
        %4594 = vmatpush.bf16.msra.mxu0 0
        %4595 = vmatpush.bf16.msra.mxu0 0
        %4596 = vmatpush.bf16.msra.mxu0 0
        %4597 = vmatpush.bf16.msra.mxu0 0
        %4598 = vmatpush.bf16.msra.mxu0 0
        %4599 = vmatpush.bf16.msra.mxu0 %v4587
        %4600 = vmatpush.bf16.msra.mxu0 %v4586
        %4601 = vmatmul.bf16.gmra.mxu0 %v4591
        %v4602 = vpop.f32.mrf.mxu0
        %v4603 = vadd.f32 %v4570, %v4602
        %v4604 = vpop.f32.mrf.mxu0
        %4605 = vdwg.mxu0
        %v4610 = vunpack.c.l.b16 %v4548
        %v4611 = vunpack.c.l.b16 %v4549
        %v4612 = vunpack.c.l.b16 %v4550
        %v4613 = vunpack.c.l.b16 %v4551
        %v4614 = vpack.c.b16 %v4611, %v4610
        %v4615 = vpack.c.b16 %v4613, %v4612
        %4618 = vmatpush.bf16.msra.mxu0 0
        %4619 = vmatpush.bf16.msra.mxu0 0
        %4620 = vmatpush.bf16.msra.mxu0 0
        %4621 = vmatpush.bf16.msra.mxu0 0
        %4622 = vmatpush.bf16.msra.mxu0 0
        %4623 = vmatpush.bf16.msra.mxu0 0
        %4624 = vmatpush.bf16.msra.mxu0 %v4615
        %4625 = vmatpush.bf16.msra.mxu0 %v4614
        %4626 = vmatmul.bf16.gmra.mxu0 %v4591
        %v4627 = vpop.f32.mrf.mxu0
        %v4628 = vadd.f32 %v4571, %v4627
        %v4629 = vpop.f32.mrf.mxu0
        %4630 = vdwg.mxu0
        %v4635 = vunpack.c.l.b16 %v4552
        %v4636 = vunpack.c.l.b16 %v4553
        %v4637 = vunpack.c.l.b16 %v4554
        %v4638 = vunpack.c.l.b16 %v4555
        %v4639 = vpack.c.b16 %v4636, %v4635
        %v4640 = vpack.c.b16 %v4638, %v4637
        %4643 = vmatpush.bf16.msra.mxu0 0
        %4644 = vmatpush.bf16.msra.mxu0 0
        %4645 = vmatpush.bf16.msra.mxu0 0
        %4646 = vmatpush.bf16.msra.mxu0 0
        %4647 = vmatpush.bf16.msra.mxu0 0
        %4648 = vmatpush.bf16.msra.mxu0 0
        %4649 = vmatpush.bf16.msra.mxu0 %v4640
        %4650 = vmatpush.bf16.msra.mxu0 %v4639
        %4651 = vmatmul.bf16.gmra.mxu0 %v4591
        %v4652 = vpop.f32.mrf.mxu0
        %v4653 = vadd.f32 %v4572, %v4652
        %v4654 = vpop.f32.mrf.mxu0
        %4655 = vdwg.mxu0
        %v4660 = vunpack.c.l.b16 %v4556
        %v4661 = vunpack.c.l.b16 %v4557
        %v4662 = vunpack.c.l.b16 %v4558
        %v4663 = vunpack.c.l.b16 %v4559
        %v4664 = vpack.c.b16 %v4661, %v4660
        %v4665 = vpack.c.b16 %v4663, %v4662
        %4668 = vmatpush.bf16.msra.mxu0 0
        %4669 = vmatpush.bf16.msra.mxu0 0
        %4670 = vmatpush.bf16.msra.mxu0 0
        %4671 = vmatpush.bf16.msra.mxu0 0
        %4672 = vmatpush.bf16.msra.mxu0 0
        %4673 = vmatpush.bf16.msra.mxu0 0
        %4674 = vmatpush.bf16.msra.mxu0 %v4665
        %4675 = vmatpush.bf16.msra.mxu0 %v4664
        %4676 = vmatmul.bf16.gmra.mxu0 %v4591
        %v4677 = vpop.f32.mrf.mxu0
        %v4678 = vadd.f32 %v4573, %v4677
        %v4679 = vpop.f32.mrf.mxu0
        %4680 = vdwg.mxu0
        %s4681 = scalar_lea.vmem %s4, 1024
        %v4682 = vld [vmem:[%s4681] sm:$0xf]
        %v4683 = vld [vmem:[%s4681 + $0x4] sm:$0xf]
        %v4684 = vld [vmem:[%s4681 + $0x8] sm:$0xf]
        %v4685 = vld [vmem:[%s4681 + $0xc] sm:$0xf]
        %v4686 = vld [vmem:[%s4681 + $0x10] sm:$0xf]
        %v4687 = vld [vmem:[%s4681 + $0x14] sm:$0xf]
        %v4688 = vld [vmem:[%s4681 + $0x18] sm:$0xf]
        %v4689 = vld [vmem:[%s4681 + $0x1c] sm:$0xf]
        %v4690 = vld [vmem:[%s4681 + $0x20] sm:$0xf]
        %v4691 = vld [vmem:[%s4681 + $0x24] sm:$0xf]
        %v4692 = vld [vmem:[%s4681 + $0x28] sm:$0xf]
        %v4693 = vld [vmem:[%s4681 + $0x2c] sm:$0xf]
        %v4694 = vld [vmem:[%s4681 + $0x30] sm:$0xf]
        %v4695 = vld [vmem:[%s4681 + $0x34] sm:$0xf]
        %v4696 = vld [vmem:[%s4681 + $0x38] sm:$0xf]
        %v4697 = vld [vmem:[%s4681 + $0x3c] sm:$0xf]
        %v4698 = vld [vmem:[%s4681 + $0x40] sm:$0xf]
        %v4699 = vld [vmem:[%s4681 + $0x44] sm:$0xf]
        %v4700 = vld [vmem:[%s4681 + $0x48] sm:$0xf]
        %v4701 = vld [vmem:[%s4681 + $0x4c] sm:$0xf]
        %v4702 = vld [vmem:[%s4681 + $0x50] sm:$0xf]
        %v4703 = vld [vmem:[%s4681 + $0x54] sm:$0xf]
        %v4704 = vld [vmem:[%s4681 + $0x58] sm:$0xf]
        %v4705 = vld [vmem:[%s4681 + $0x5c] sm:$0xf]
        %v4706 = vld [vmem:[%s4681 + $0x60] sm:$0xf]
        %v4707 = vld [vmem:[%s4681 + $0x64] sm:$0xf]
        %v4708 = vld [vmem:[%s4681 + $0x68] sm:$0xf]
        %v4709 = vld [vmem:[%s4681 + $0x6c] sm:$0xf]
        %v4710 = vld [vmem:[%s4681 + $0x70] sm:$0xf]
        %v4711 = vld [vmem:[%s4681 + $0x74] sm:$0xf]
        %v4712 = vld [vmem:[%s4681 + $0x78] sm:$0xf]
        %v4713 = vld [vmem:[%s4681 + $0x7c] sm:$0xf]
        %s4714 = scalar_lea.vmem %s5, 64
        %v4715 = vld [vmem:[%s4714] sm:$0x1]
        %v4716 = vld [vmem:[%s4714 + $0x1] sm:$0x1]
        %v4717 = vld [vmem:[%s4714 + $0x2] sm:$0x1]
        %v4718 = vld [vmem:[%s4714 + $0x3] sm:$0x1]
        %v4719 = vld [vmem:[%s4714 + $0x4] sm:$0x1]
        %v4720 = vld [vmem:[%s4714 + $0x5] sm:$0x1]
        %v4721 = vld [vmem:[%s4714 + $0x6] sm:$0x1]
        %v4722 = vld [vmem:[%s4714 + $0x7] sm:$0x1]
        %v4731 = vperm.slane %v4715, 0
        %v4732 = vperm.slane %v4716, 0
        %v4733 = vperm.slane %v4717, 0
        %v4734 = vperm.slane %v4718, 0
        %v4735 = vperm.slane %v4719, 0
        %v4736 = vperm.slane %v4720, 0
        %v4737 = vperm.slane %v4721, 0
        %v4738 = vperm.slane %v4722, 0
        %v4751 = vunpack.c.l.b16 %v4682
        %v4752 = vunpack.c.l.b16 %v4683
        %v4753 = vunpack.c.l.b16 %v4684
        %v4754 = vunpack.c.l.b16 %v4685
        %v4755 = vpack.c.b16 %v4752, %v4751
        %v4756 = vpack.c.b16 %v4754, %v4753
        %4759 = vmatpush.bf16.msra.mxu0 0
        %4760 = vmatpush.bf16.msra.mxu0 0
        %4761 = vmatpush.bf16.msra.mxu0 0
        %4762 = vmatpush.bf16.msra.mxu0 0
        %4763 = vmatpush.bf16.msra.mxu0 0
        %4764 = vmatpush.bf16.msra.mxu0 0
        %4765 = vmatpush.bf16.msra.mxu0 %v4756
        %4766 = vmatpush.bf16.msra.mxu0 %v4755
        %4767 = vmatmul.bf16.gmra.mxu0 %v3167
        %v4768 = vpop.f32.mrf.mxu0
        %v4769 = vadd.f32 %v4731, %v4768
        %v4770 = vpop.f32.mrf.mxu0
        %4771 = vdwg.mxu0
        %v4776 = vunpack.c.l.b16 %v4686
        %v4777 = vunpack.c.l.b16 %v4687
        %v4778 = vunpack.c.l.b16 %v4688
        %v4779 = vunpack.c.l.b16 %v4689
        %v4780 = vpack.c.b16 %v4777, %v4776
        %v4781 = vpack.c.b16 %v4779, %v4778
        %4784 = vmatpush.bf16.msra.mxu0 0
        %4785 = vmatpush.bf16.msra.mxu0 0
        %4786 = vmatpush.bf16.msra.mxu0 0
        %4787 = vmatpush.bf16.msra.mxu0 0
        %4788 = vmatpush.bf16.msra.mxu0 0
        %4789 = vmatpush.bf16.msra.mxu0 0
        %4790 = vmatpush.bf16.msra.mxu0 %v4781
        %4791 = vmatpush.bf16.msra.mxu0 %v4780
        %4792 = vmatmul.bf16.gmra.mxu0 %v3167
        %v4793 = vpop.f32.mrf.mxu0
        %v4794 = vadd.f32 %v4732, %v4793
        %v4795 = vpop.f32.mrf.mxu0
        %4796 = vdwg.mxu0
        %v4801 = vunpack.c.l.b16 %v4690
        %v4802 = vunpack.c.l.b16 %v4691
        %v4803 = vunpack.c.l.b16 %v4692
        %v4804 = vunpack.c.l.b16 %v4693
        %v4805 = vpack.c.b16 %v4802, %v4801
        %v4806 = vpack.c.b16 %v4804, %v4803
        %4809 = vmatpush.bf16.msra.mxu0 0
        %4810 = vmatpush.bf16.msra.mxu0 0
        %4811 = vmatpush.bf16.msra.mxu0 0
        %4812 = vmatpush.bf16.msra.mxu0 0
        %4813 = vmatpush.bf16.msra.mxu0 0
        %4814 = vmatpush.bf16.msra.mxu0 0
        %4815 = vmatpush.bf16.msra.mxu0 %v4806
        %4816 = vmatpush.bf16.msra.mxu0 %v4805
        %4817 = vmatmul.bf16.gmra.mxu0 %v3167
        %v4818 = vpop.f32.mrf.mxu0
        %v4819 = vadd.f32 %v4733, %v4818
        %v4820 = vpop.f32.mrf.mxu0
        %4821 = vdwg.mxu0
        %v4826 = vunpack.c.l.b16 %v4694
        %v4827 = vunpack.c.l.b16 %v4695
        %v4828 = vunpack.c.l.b16 %v4696
        %v4829 = vunpack.c.l.b16 %v4697
        %v4830 = vpack.c.b16 %v4827, %v4826
        %v4831 = vpack.c.b16 %v4829, %v4828
        %4834 = vmatpush.bf16.msra.mxu0 0
        %4835 = vmatpush.bf16.msra.mxu0 0
        %4836 = vmatpush.bf16.msra.mxu0 0
        %4837 = vmatpush.bf16.msra.mxu0 0
        %4838 = vmatpush.bf16.msra.mxu0 0
        %4839 = vmatpush.bf16.msra.mxu0 0
        %4840 = vmatpush.bf16.msra.mxu0 %v4831
        %4841 = vmatpush.bf16.msra.mxu0 %v4830
        %4842 = vmatmul.bf16.gmra.mxu0 %v3167
        %v4843 = vpop.f32.mrf.mxu0
        %v4844 = vadd.f32 %v4734, %v4843
        %v4845 = vpop.f32.mrf.mxu0
        %4846 = vdwg.mxu0
        %v4851 = vunpack.c.l.b16 %v4698
        %v4852 = vunpack.c.l.b16 %v4699
        %v4853 = vunpack.c.l.b16 %v4700
        %v4854 = vunpack.c.l.b16 %v4701
        %v4855 = vpack.c.b16 %v4852, %v4851
        %v4856 = vpack.c.b16 %v4854, %v4853
        %4859 = vmatpush.bf16.msra.mxu0 0
        %4860 = vmatpush.bf16.msra.mxu0 0
        %4861 = vmatpush.bf16.msra.mxu0 0
        %4862 = vmatpush.bf16.msra.mxu0 0
        %4863 = vmatpush.bf16.msra.mxu0 0
        %4864 = vmatpush.bf16.msra.mxu0 0
        %4865 = vmatpush.bf16.msra.mxu0 %v4856
        %4866 = vmatpush.bf16.msra.mxu0 %v4855
        %4867 = vmatmul.bf16.gmra.mxu0 %v3167
        %v4868 = vpop.f32.mrf.mxu0
        %v4869 = vadd.f32 %v4735, %v4868
        %v4870 = vpop.f32.mrf.mxu0
        %4871 = vdwg.mxu0
        %v4876 = vunpack.c.l.b16 %v4702
        %v4877 = vunpack.c.l.b16 %v4703
        %v4878 = vunpack.c.l.b16 %v4704
        %v4879 = vunpack.c.l.b16 %v4705
        %v4880 = vpack.c.b16 %v4877, %v4876
        %v4881 = vpack.c.b16 %v4879, %v4878
        %4884 = vmatpush.bf16.msra.mxu0 0
        %4885 = vmatpush.bf16.msra.mxu0 0
        %4886 = vmatpush.bf16.msra.mxu0 0
        %4887 = vmatpush.bf16.msra.mxu0 0
        %4888 = vmatpush.bf16.msra.mxu0 0
        %4889 = vmatpush.bf16.msra.mxu0 0
        %4890 = vmatpush.bf16.msra.mxu0 %v4881
        %4891 = vmatpush.bf16.msra.mxu0 %v4880
        %4892 = vmatmul.bf16.gmra.mxu0 %v3167
        %v4893 = vpop.f32.mrf.mxu0
        %v4894 = vadd.f32 %v4736, %v4893
        %v4895 = vpop.f32.mrf.mxu0
        %4896 = vdwg.mxu0
        %v4901 = vunpack.c.l.b16 %v4706
        %v4902 = vunpack.c.l.b16 %v4707
        %v4903 = vunpack.c.l.b16 %v4708
        %v4904 = vunpack.c.l.b16 %v4709
        %v4905 = vpack.c.b16 %v4902, %v4901
        %v4906 = vpack.c.b16 %v4904, %v4903
        %4909 = vmatpush.bf16.msra.mxu0 0
        %4910 = vmatpush.bf16.msra.mxu0 0
        %4911 = vmatpush.bf16.msra.mxu0 0
        %4912 = vmatpush.bf16.msra.mxu0 0
        %4913 = vmatpush.bf16.msra.mxu0 0
        %4914 = vmatpush.bf16.msra.mxu0 0
        %4915 = vmatpush.bf16.msra.mxu0 %v4906
        %4916 = vmatpush.bf16.msra.mxu0 %v4905
        %4917 = vmatmul.bf16.gmra.mxu0 %v3167
        %v4918 = vpop.f32.mrf.mxu0
        %v4919 = vadd.f32 %v4737, %v4918
        %v4920 = vpop.f32.mrf.mxu0
        %4921 = vdwg.mxu0
        %v4926 = vunpack.c.l.b16 %v4710
        %v4927 = vunpack.c.l.b16 %v4711
        %v4928 = vunpack.c.l.b16 %v4712
        %v4929 = vunpack.c.l.b16 %v4713
        %v4930 = vpack.c.b16 %v4927, %v4926
        %v4931 = vpack.c.b16 %v4929, %v4928
        %4934 = vmatpush.bf16.msra.mxu0 0
        %4935 = vmatpush.bf16.msra.mxu0 0
        %4936 = vmatpush.bf16.msra.mxu0 0
        %4937 = vmatpush.bf16.msra.mxu0 0
        %4938 = vmatpush.bf16.msra.mxu0 0
        %4939 = vmatpush.bf16.msra.mxu0 0
        %4940 = vmatpush.bf16.msra.mxu0 %v4931
        %4941 = vmatpush.bf16.msra.mxu0 %v4930
        %4942 = vmatmul.bf16.gmra.mxu0 %v3167
        %v4943 = vpop.f32.mrf.mxu0
        %v4944 = vadd.f32 %v4738, %v4943
        %v4945 = vpop.f32.mrf.mxu0
        %4946 = vdwg.mxu0
        %s4947 = scalar_lea.vmem %s6, 80
        %v4948 = vld [vmem:[%s4947] sm:$0xf]
        %v4949 = vld [vmem:[%s4947 + $0x4] sm:$0xf]
        %v4950 = vld [vmem:[%s4947 + $0x8] sm:$0xf]
        %v4951 = vld [vmem:[%s4947 + $0xc] sm:$0xf]
        %v4952 = vpack.c.bf16 %v4603, %v4603
        %v4953 = vpack.c.bf16 %v4628, %v4628
        %v4954 = vpack.c.bf16 %v4653, %v4653
        %v4955 = vpack.c.bf16 %v4678, %v4678
        %v4956 = vpack.c.bf16 %v4769, %v4769
        %v4957 = vpack.c.bf16 %v4794, %v4794
        %v4958 = vpack.c.bf16 %v4819, %v4819
        %v4959 = vpack.c.bf16 %v4844, %v4844
        %v4961 = vsel %vm915, %v4952, 0
        %v4964 = vsel %vm915, %v4956, 0
        %4966 = vmatpush.bf16.xpose.msra.mxu0 0
        %4967 = vmatpush.bf16.xpose.msra.mxu0 0
        %4968 = vmatpush.bf16.xpose.msra.mxu0 0
        %4969 = vmatpush.bf16.xpose.msra.mxu0 0
        %4970 = vmatpush.bf16.xpose.msra.mxu0 0
        %4971 = vmatpush.bf16.xpose.msra.mxu0 0
        %4972 = vmatpush.bf16.xpose.msra.mxu0 0
        %4973 = vmatpush.bf16.xpose.msra.mxu0 %v4964
        %4974 = vmatmul.bf16.gmra.mxu0 %v4961
        %v4975 = vpop.f32.mrf.mxu0
        %v4976 = vadd.f32 %v913, %v4975
        %v4977 = vpop.f32.mrf.mxu0
        %4978 = vdwg.mxu0
        %v4980 = vsel %vm915, %v4953, 0
        %v4983 = vsel %vm915, %v4957, 0
        %4985 = vmatpush.bf16.xpose.msra.mxu0 0
        %4986 = vmatpush.bf16.xpose.msra.mxu0 0
        %4987 = vmatpush.bf16.xpose.msra.mxu0 0
        %4988 = vmatpush.bf16.xpose.msra.mxu0 0
        %4989 = vmatpush.bf16.xpose.msra.mxu0 0
        %4990 = vmatpush.bf16.xpose.msra.mxu0 0
        %4991 = vmatpush.bf16.xpose.msra.mxu0 0
        %4992 = vmatpush.bf16.xpose.msra.mxu0 %v4983
        %4993 = vmatmul.bf16.gmra.mxu0 %v4980
        %v4994 = vpop.f32.mrf.mxu0
        %v4995 = vadd.f32 %v913, %v4994
        %v4996 = vpop.f32.mrf.mxu0
        %4997 = vdwg.mxu0
        %v4999 = vsel %vm915, %v4954, 0
        %v5002 = vsel %vm915, %v4958, 0
        %5004 = vmatpush.bf16.xpose.msra.mxu0 0
        %5005 = vmatpush.bf16.xpose.msra.mxu0 0
        %5006 = vmatpush.bf16.xpose.msra.mxu0 0
        %5007 = vmatpush.bf16.xpose.msra.mxu0 0
        %5008 = vmatpush.bf16.xpose.msra.mxu0 0
        %5009 = vmatpush.bf16.xpose.msra.mxu0 0
        %5010 = vmatpush.bf16.xpose.msra.mxu0 0
        %5011 = vmatpush.bf16.xpose.msra.mxu0 %v5002
        %5012 = vmatmul.bf16.gmra.mxu0 %v4999
        %v5013 = vpop.f32.mrf.mxu0
        %v5014 = vadd.f32 %v913, %v5013
        %v5015 = vpop.f32.mrf.mxu0
        %5016 = vdwg.mxu0
        %v5018 = vsel %vm915, %v4955, 0
        %v5021 = vsel %vm915, %v4959, 0
        %5023 = vmatpush.bf16.xpose.msra.mxu0 0
        %5024 = vmatpush.bf16.xpose.msra.mxu0 0
        %5025 = vmatpush.bf16.xpose.msra.mxu0 0
        %5026 = vmatpush.bf16.xpose.msra.mxu0 0
        %5027 = vmatpush.bf16.xpose.msra.mxu0 0
        %5028 = vmatpush.bf16.xpose.msra.mxu0 0
        %5029 = vmatpush.bf16.xpose.msra.mxu0 0
        %5030 = vmatpush.bf16.xpose.msra.mxu0 %v5021
        %5031 = vmatmul.bf16.gmra.mxu0 %v5018
        %v5032 = vpop.f32.mrf.mxu0
        %v5033 = vadd.f32 %v913, %v5032
        %v5034 = vpop.f32.mrf.mxu0
        %5035 = vdwg.mxu0
        %v5036 = vsel %vm915, %v4976, -inf
        %5037 = vmax.xlane.f32.xlu0 %v5036
        %v5038 = vpop.xlane.xlu0 %5037
        %v5039 = vsel %vm915, %v4995, -inf
        %5040 = vmax.xlane.f32.xlu0 %v5039
        %v5041 = vpop.xlane.xlu0 %5040
        %v5042 = vsel %vm915, %v5014, -inf
        %5043 = vmax.xlane.f32.xlu0 %v5042
        %v5044 = vpop.xlane.xlu0 %5043
        %v5045 = vsel %vm915, %v5033, -inf
        %5046 = vmax.xlane.f32.xlu0 %v5045
        %v5047 = vpop.xlane.xlu0 %5046
        %v5048 = vsub.f32 %v4976, %v5038
        %v5049 = vsub.f32 %v4995, %v5041
        %v5050 = vsub.f32 %v5014, %v5044
        %v5051 = vsub.f32 %v5033, %v5047
        %v5052 = vmul.f32 %v5048, 1.442695
        %v5053 = vpow.pop %v5052
        %v5054 = vmul.f32 %v5049, 1.442695
        %v5055 = vpow.pop %v5054
        %v5056 = vmul.f32 %v5050, 1.442695
        %v5057 = vpow.pop %v5056
        %v5058 = vmul.f32 %v5051, 1.442695
        %v5059 = vpow.pop %v5058
        %v5060 = vsel %vm915, %v5053, 0.0
        %5061 = vadd.xlane.f32.xlu0 %v5060
        %v5062 = vpop.xlane.xlu0 %5061
        %v5063 = vsel %vm915, %v5055, 0.0
        %5064 = vadd.xlane.f32.xlu0 %v5063
        %v5065 = vpop.xlane.xlu0 %5064
        %v5066 = vsel %vm915, %v5057, 0.0
        %5067 = vadd.xlane.f32.xlu0 %v5066
        %v5068 = vpop.xlane.xlu0 %5067
        %v5069 = vsel %vm915, %v5059, 0.0
        %5070 = vadd.xlane.f32.xlu0 %v5069
        %v5071 = vpop.xlane.xlu0 %5070
        %v5072 = vrcp.pop %v5062
        %v5073 = vrcp.pop %v5065
        %v5074 = vrcp.pop %v5068
        %v5075 = vrcp.pop %v5071
        %v5076 = vmul.f32 %v5053, %v5072
        %v5077 = vmul.f32 %v5055, %v5073
        %v5078 = vmul.f32 %v5057, %v5074
        %v5079 = vmul.f32 %v5059, %v5075
        %v5080 = vpack.c.bf16 %v5076, %v5076
        %v5081 = vpack.c.bf16 %v5077, %v5077
        %v5082 = vpack.c.bf16 %v5078, %v5078
        %v5083 = vpack.c.bf16 %v5079, %v5079
        %v5084 = vpack.c.bf16 %v4869, %v4869
        %v5085 = vpack.c.bf16 %v4894, %v4894
        %v5086 = vpack.c.bf16 %v4919, %v4919
        %v5087 = vpack.c.bf16 %v4944, %v4944
        %v5089 = vsel %vm915, %v5080, 0
        %v5092 = vsel %vm1047, %v5084, 0
        %5094 = vmatpush.bf16.msra.mxu0 0
        %5095 = vmatpush.bf16.msra.mxu0 0
        %5096 = vmatpush.bf16.msra.mxu0 0
        %5097 = vmatpush.bf16.msra.mxu0 0
        %5098 = vmatpush.bf16.msra.mxu0 0
        %5099 = vmatpush.bf16.msra.mxu0 0
        %5100 = vmatpush.bf16.msra.mxu0 0
        %5101 = vmatpush.bf16.msra.mxu0 %v5092
        %5102 = vmatmul.bf16.gmra.mxu0 %v5089
        %v5103 = vpop.f32.mrf.mxu0
        %v5104 = vadd.f32 0.0, %v5103
        %v5105 = vpop.f32.mrf.mxu0
        %5106 = vdwg.mxu0
        %v5108 = vsel %vm915, %v5081, 0
        %v5111 = vsel %vm1047, %v5085, 0
        %5113 = vmatpush.bf16.msra.mxu0 0
        %5114 = vmatpush.bf16.msra.mxu0 0
        %5115 = vmatpush.bf16.msra.mxu0 0
        %5116 = vmatpush.bf16.msra.mxu0 0
        %5117 = vmatpush.bf16.msra.mxu0 0
        %5118 = vmatpush.bf16.msra.mxu0 0
        %5119 = vmatpush.bf16.msra.mxu0 0
        %5120 = vmatpush.bf16.msra.mxu0 %v5111
        %5121 = vmatmul.bf16.gmra.mxu0 %v5108
        %v5122 = vpop.f32.mrf.mxu0
        %v5123 = vadd.f32 0.0, %v5122
        %v5124 = vpop.f32.mrf.mxu0
        %5125 = vdwg.mxu0
        %v5127 = vsel %vm915, %v5082, 0
        %v5130 = vsel %vm1047, %v5086, 0
        %5132 = vmatpush.bf16.msra.mxu0 0
        %5133 = vmatpush.bf16.msra.mxu0 0
        %5134 = vmatpush.bf16.msra.mxu0 0
        %5135 = vmatpush.bf16.msra.mxu0 0
        %5136 = vmatpush.bf16.msra.mxu0 0
        %5137 = vmatpush.bf16.msra.mxu0 0
        %5138 = vmatpush.bf16.msra.mxu0 0
        %5139 = vmatpush.bf16.msra.mxu0 %v5130
        %5140 = vmatmul.bf16.gmra.mxu0 %v5127
        %v5141 = vpop.f32.mrf.mxu0
        %v5142 = vadd.f32 0.0, %v5141
        %v5143 = vpop.f32.mrf.mxu0
        %5144 = vdwg.mxu0
        %v5146 = vsel %vm915, %v5083, 0
        %v5149 = vsel %vm1047, %v5087, 0
        %5151 = vmatpush.bf16.msra.mxu0 0
        %5152 = vmatpush.bf16.msra.mxu0 0
        %5153 = vmatpush.bf16.msra.mxu0 0
        %5154 = vmatpush.bf16.msra.mxu0 0
        %5155 = vmatpush.bf16.msra.mxu0 0
        %5156 = vmatpush.bf16.msra.mxu0 0
        %5157 = vmatpush.bf16.msra.mxu0 0
        %5158 = vmatpush.bf16.msra.mxu0 %v5149
        %5159 = vmatmul.bf16.gmra.mxu0 %v5146
        %v5160 = vpop.f32.mrf.mxu0
        %v5161 = vadd.f32 0.0, %v5160
        %v5162 = vpop.f32.mrf.mxu0
        %5163 = vdwg.mxu0
        %v5164 = vpack.c.bf16 %v5104, %v5104
        %v5165 = vpack.c.bf16 %v5123, %v5123
        %v5166 = vpack.c.bf16 %v5142, %v5142
        %v5167 = vpack.c.bf16 %v5161, %v5161
        %v5169 = vsel %vm915, %v5164, 0
        %v5172 = vsel %vm1047, %v4948, 0
        %5174 = vmatpush.bf16.msra.mxu0 0
        %5175 = vmatpush.bf16.msra.mxu0 0
        %5176 = vmatpush.bf16.msra.mxu0 0
        %5177 = vmatpush.bf16.msra.mxu0 0
        %5178 = vmatpush.bf16.msra.mxu0 0
        %5179 = vmatpush.bf16.msra.mxu0 0
        %5180 = vmatpush.bf16.msra.mxu0 0
        %5181 = vmatpush.bf16.msra.mxu0 %v5172
        %5182 = vmatmul.bf16.gmra.mxu0 %v5169
        %v5183 = vpop.f32.mrf.mxu0
        %v5184 = vadd.f32 0.0, %v5183
        %v5185 = vpop.f32.mrf.mxu0
        %5186 = vdwg.mxu0
        %v5188 = vsel %vm915, %v5165, 0
        %v5191 = vsel %vm1047, %v4949, 0
        %5193 = vmatpush.bf16.msra.mxu0 0
        %5194 = vmatpush.bf16.msra.mxu0 0
        %5195 = vmatpush.bf16.msra.mxu0 0
        %5196 = vmatpush.bf16.msra.mxu0 0
        %5197 = vmatpush.bf16.msra.mxu0 0
        %5198 = vmatpush.bf16.msra.mxu0 0
        %5199 = vmatpush.bf16.msra.mxu0 0
        %5200 = vmatpush.bf16.msra.mxu0 %v5191
        %5201 = vmatmul.bf16.gmra.mxu0 %v5188
        %v5202 = vpop.f32.mrf.mxu0
        %v5203 = vadd.f32 0.0, %v5202
        %v5204 = vpop.f32.mrf.mxu0
        %5205 = vdwg.mxu0
        %v5207 = vsel %vm915, %v5166, 0
        %v5210 = vsel %vm1047, %v4950, 0
        %5212 = vmatpush.bf16.msra.mxu0 0
        %5213 = vmatpush.bf16.msra.mxu0 0
        %5214 = vmatpush.bf16.msra.mxu0 0
        %5215 = vmatpush.bf16.msra.mxu0 0
        %5216 = vmatpush.bf16.msra.mxu0 0
        %5217 = vmatpush.bf16.msra.mxu0 0
        %5218 = vmatpush.bf16.msra.mxu0 0
        %5219 = vmatpush.bf16.msra.mxu0 %v5210
        %5220 = vmatmul.bf16.gmra.mxu0 %v5207
        %v5221 = vpop.f32.mrf.mxu0
        %v5222 = vadd.f32 0.0, %v5221
        %v5223 = vpop.f32.mrf.mxu0
        %5224 = vdwg.mxu0
        %v5226 = vsel %vm915, %v5167, 0
        %v5229 = vsel %vm1047, %v4951, 0
        %5231 = vmatpush.bf16.msra.mxu0 0
        %5232 = vmatpush.bf16.msra.mxu0 0
        %5233 = vmatpush.bf16.msra.mxu0 0
        %5234 = vmatpush.bf16.msra.mxu0 0
        %5235 = vmatpush.bf16.msra.mxu0 0
        %5236 = vmatpush.bf16.msra.mxu0 0
        %5237 = vmatpush.bf16.msra.mxu0 0
        %5238 = vmatpush.bf16.msra.mxu0 %v5229
        %5239 = vmatmul.bf16.gmra.mxu0 %v5226
        %v5240 = vpop.f32.mrf.mxu0
        %v5241 = vadd.f32 0.0, %v5240
        %v5242 = vpop.f32.mrf.mxu0
        %5243 = vdwg.mxu0
        %v5244 = vsel %vm608, %v5184, 0.0
        %v5245 = vsel %vm608, %v5203, 0.0
        %v5246 = vadd.f32 %v5244, %v5245
        %v5247 = vsel %vm608, %v5222, 0.0
        %v5248 = vadd.f32 %v5246, %v5247
        %v5249 = vsel %vm608, %v5241, 0.0
        %v5250 = vadd.f32 %v5248, %v5249
        %v5251 = vperm.slane %v485, 0
        %v5252 = vadd.f32 %v5250, %v5251
        %v5253 = vadd.f32 %v4542, %v5252
        %v5254 = vsel %vm608, %v5253, 0.0
        %5255 = vadd.xlane.f32.xlu0 %v5254
        %v5256 = vpop.xlane.xlu0 %5255
        %v5257 = vmul.f32 %v5256, %v1220
        %v5258 = vsub.f32 %v5253, %v5257
        %v5259 = vmul.f32 %v5258, %v5258
        %v5260 = vsel %vm608, %v5259, 0.0
        %5261 = vadd.xlane.f32.xlu0 %v5260
        %v5262 = vpop.xlane.xlu0 %5261
        %v5263 = vmul.f32 %v5262, %v1220
        %v5264 = vadd.f32 %v5263, 1e-05
        %v5265 = vrsqrt.pop %v5264
        %v5266 = vmul.f32 %v5265, %v5264
        %v5267 = vmul.f32 %v5266, %v5265
        %v5268 = vmul.f32 0.5, %v5267
        %v5269 = vsub.f32 1.5, %v5268
        %v5270 = vmul.f32 %v5265, %v5269
        %vm5271 = vweird.f32 %v5264
        %vm5272 = vweird.f32 %v5265
        %vm5273 = vmor %vm5271, %vm5272
        %v5274 = vsel %vm5273, %v5265, %v5270
        %v5275 = vmul.f32 %v5258, %v5274
        %v5276 = vperm.slane %v485, 1
        %v5277 = vmul.f32 %v5275, %v5276
        %v5278 = vperm.slane %v485, 2
        %v5279 = vadd.f32 %v5277, %v5278
        %s5280 = scalar_lea.vmem %s7, 48
        %v5281 = vld [vmem:[%s5280] sm:$0xf]
        %v5282 = vld [vmem:[%s5280 + $0x4] sm:$0xf]
        %v5283 = vld [vmem:[%s5280 + $0x8] sm:$0xf]
        %v5284 = vld [vmem:[%s5280 + $0xc] sm:$0xf]
        %s5285 = scalar_lea.vmem %s8, 3
        %v5286 = vld [vmem:[%s5285] sm:$0x1]
        %s5287 = scalar_lea.vmem %s9, 96
        %v5288 = vld [vmem:[%s5287] sm:$0xf]
        %v5289 = vld [vmem:[%s5287 + $0x4] sm:$0xf]
        %v5290 = vld [vmem:[%s5287 + $0x8] sm:$0xf]
        %v5291 = vld [vmem:[%s5287 + $0xc] sm:$0xf]
        %v5292 = vld [vmem:[%s5287 + $0x10] sm:$0xf]
        %v5293 = vld [vmem:[%s5287 + $0x14] sm:$0xf]
        %v5294 = vld [vmem:[%s5287 + $0x18] sm:$0xf]
        %v5295 = vld [vmem:[%s5287 + $0x1c] sm:$0xf]
        %v5296 = vpack.c.bf16 %v5279, %v5279
        %v5298 = vperm.slane %v5286, 0
        %v5304 = vunpack.c.l.b16 %v5281
        %v5305 = vunpack.c.l.b16 %v5282
        %v5306 = vunpack.c.l.b16 %v5283
        %v5307 = vunpack.c.l.b16 %v5284
        %v5308 = vpack.c.b16 %v5305, %v5304
        %v5309 = vpack.c.b16 %v5307, %v5306
        %v5313 = vsel %vm608, %v5296, 0
        %5315 = vmatpush.bf16.msra.mxu0 0
        %5316 = vmatpush.bf16.msra.mxu0 0
        %5317 = vmatpush.bf16.msra.mxu0 0
        %5318 = vmatpush.bf16.msra.mxu0 0
        %5319 = vmatpush.bf16.msra.mxu0 0
        %5320 = vmatpush.bf16.msra.mxu0 0
        %5321 = vmatpush.bf16.msra.mxu0 %v5309
        %5322 = vmatpush.bf16.msra.mxu0 %v5308
        %5323 = vmatmul.bf16.gmra.mxu0 %v5313
        %v5324 = vpop.f32.mrf.mxu0
        %v5325 = vadd.f32 %v5298, %v5324
        %v5326 = vpop.f32.mrf.mxu0
        %5327 = vdwg.mxu0
        %v5328 = vmax.f32 %v5325, 0.0
        %v5329 = vpack.c.bf16 %v5328, %v5328
        %v5330 = vperm.slane %v485, 3
        %v5339 = vunpack.c.l.b16 %v5288
        %v5340 = vunpack.c.l.b16 %v5289
        %v5341 = vunpack.c.l.b16 %v5290
        %v5342 = vunpack.c.l.b16 %v5291
        %v5343 = vunpack.c.l.b16 %v5292
        %v5344 = vunpack.c.l.b16 %v5293
        %v5345 = vunpack.c.l.b16 %v5294
        %v5346 = vunpack.c.l.b16 %v5295
        %v5347 = vpack.c.b16 %v5340, %v5339
        %v5348 = vpack.c.b16 %v5342, %v5341
        %v5349 = vpack.c.b16 %v5344, %v5343
        %v5350 = vpack.c.b16 %v5346, %v5345
        %v5356 = vsel %vm1316, %v5329, 0
        %5358 = vmatpush.bf16.msra.mxu0 0
        %5359 = vmatpush.bf16.msra.mxu0 0
        %5360 = vmatpush.bf16.msra.mxu0 0
        %5361 = vmatpush.bf16.msra.mxu0 0
        %5362 = vmatpush.bf16.msra.mxu0 %v5350
        %5363 = vmatpush.bf16.msra.mxu0 %v5349
        %5364 = vmatpush.bf16.msra.mxu0 %v5348
        %5365 = vmatpush.bf16.msra.mxu0 %v5347
        %5366 = vmatmul.bf16.gmra.mxu0 %v5356
        %v5367 = vpop.f32.mrf.mxu0
        %v5368 = vadd.f32 %v5330, %v5367
        %v5369 = vpop.f32.mrf.mxu0
        %5370 = vdwg.mxu0
        %v5371 = vadd.f32 %v5279, %v5368
        %v5372 = vsel %vm608, %v5371, 0.0
        %5373 = vadd.xlane.f32.xlu0 %v5372
        %v5374 = vpop.xlane.xlu0 %5373
        %v5375 = vmul.f32 %v5374, %v1220
        %v5376 = vsub.f32 %v5371, %v5375
        %v5377 = vmul.f32 %v5376, %v5376
        %v5378 = vsel %vm608, %v5377, 0.0
        %5379 = vadd.xlane.f32.xlu0 %v5378
        %v5380 = vpop.xlane.xlu0 %5379
        %v5381 = vmul.f32 %v5380, %v1220
        %v5382 = vadd.f32 %v5381, 1e-05
        %v5383 = vrsqrt.pop %v5382
        %v5384 = vmul.f32 %v5383, %v5382
        %v5385 = vmul.f32 %v5384, %v5383
        %v5386 = vmul.f32 0.5, %v5385
        %v5387 = vsub.f32 1.5, %v5386
        %v5388 = vmul.f32 %v5383, %v5387
        %vm5389 = vweird.f32 %v5382
        %vm5390 = vweird.f32 %v5383
        %vm5391 = vmor %vm5389, %vm5390
        %v5392 = vsel %vm5391, %v5383, %v5388
        %v5393 = vmul.f32 %v5376, %v5392
        %v5394 = vperm.slane %v485, 4
        %v5395 = vmul.f32 %v5393, %v5394
        %v5396 = vperm.slane %v485, 5
        %v5397 = vadd.f32 %v5395, %v5396
        %v5398 = vpack.c.bf16 %v5397, %v5397
        %v5399 = vld [vmem:[%s11] sm:$0xf]
        %v5400 = vld [vmem:[%s11 + $0x4] sm:$0xf]
        %v5401 = vld [vmem:[%s11 + $0x8] sm:$0xf]
        %v5402 = vld [vmem:[%s11 + $0xc] sm:$0xf]
        %v5403 = vld [vmem:[%s12] sm:$0x1]
        %v5405 = vperm.slane %v5403, 0
        %v5411 = vunpack.c.l.b16 %v5399
        %v5412 = vunpack.c.l.b16 %v5400
        %v5413 = vunpack.c.l.b16 %v5401
        %v5414 = vunpack.c.l.b16 %v5402
        %v5415 = vpack.c.b16 %v5412, %v5411
        %v5416 = vpack.c.b16 %v5414, %v5413
        %v5420 = vsel %vm608, %v5398, 0
        %5422 = vmatpush.bf16.msra.mxu0 0
        %5423 = vmatpush.bf16.msra.mxu0 0
        %5424 = vmatpush.bf16.msra.mxu0 0
        %5425 = vmatpush.bf16.msra.mxu0 0
        %5426 = vmatpush.bf16.msra.mxu0 0
        %5427 = vmatpush.bf16.msra.mxu0 0
        %5428 = vmatpush.bf16.msra.mxu0 %v5416
        %5429 = vmatpush.bf16.msra.mxu0 %v5415
        %5430 = vmatmul.bf16.gmra.mxu0 %v5420
        %v5431 = vpop.f32.mrf.mxu0
        %v5432 = vadd.f32 %v5405, %v5431
        %v5433 = vpop.f32.mrf.mxu0
        %5434 = vdwg.mxu0
        %5435 = vst [vmem:[%s466] sm:$0xff] %v5432
        %s5436 = sand.u32 %s328, 1
        %s5437 = scalar_lea.sflag [#allocation3], %s5436
        %s5438 = sand.u32 %s328, 1
        %s5439 = smul.addr %s5438, 8
        %s5440 = scalar_lea.vmem [#allocation2], %s5439
        // Predicated region
        $region73: #{transformer_forward.1} parent=71 // pred_check
          %p5441 = pneg %p338
        $region74: #{transformer_forward.1} parent=71 // pred_check_branch
          %5443 = sbr.rel (%p5441) target = $region76
        $region75: #{transformer_forward.1} parent=71 // pred_region
          %5445 = vsyncadd %s5437, 0
          %s5446 = smul.addr %s27, 8
          %s5447 = scalar_lea.hbm %s13, %s5446
          %s5449 = sshll.u32 %s5440, 4
          %s5450 = int_to_ptr.vmem [resolvable:$true] %s5449
          %s5451 = sshll.u32 %s5447, 4
          %s5452 = int_to_ptr.hbm [resolvable:$true] %s5451
          %5454 = dma.vmem_to_hbm [thread:$0]  %s5450, 128, %s5452, %s5437
        $region76: #{transformer_forward.1} parent=71 // pred_fallthru
          _
      $region72: #{transformer_forward.1} parent=5 // pred_fallthru
        _
      %p5455 = scmp.le.s32.totalorder 2, %s22
      // Predicated region
      $region77: #{transformer_forward.1} parent=5 // pred_check
        %p5456 = pneg %p5455
      $region78: #{transformer_forward.1} parent=5 // pred_check_branch
        %5458 = sbr.rel (%p5456) target = $region80
      $region79: #{transformer_forward.1} parent=5 // pred_region
        %s5459 = ssub.s32 %s22, 2
        // Predicated region
        $region81: #{transformer_forward.1} parent=79 // pred_check
          %p5460 = pneg %p344
        $region82: #{transformer_forward.1} parent=79 // pred_check_branch
          %5462 = sbr.rel (%p5460) target = $region84
        $region83: #{transformer_forward.1} parent=79 // pred_region
          %s5463 = sand.u32 %s329, 1
          %s5464 = scalar_lea.sflag [#allocation3], %s5463
          %s5465 = sand.u32 %s329, 1
          %s5466 = smul.addr %s5465, 8
          %s5467 = scalar_lea.vmem [#allocation2], %s5466
          %5469 = dma.done %s5464, 128
        $region84: #{transformer_forward.1} parent=79 // pred_fallthru
          _
      $region80: #{transformer_forward.1} parent=5 // pred_fallthru
        _
    $region6: #{transformer_forward.1} parent=1 // loop_footer
      %s26 = sadd.s32 1, %s22
    $region7: #{transformer_forward.1} parent=1 // loop_footer_branch
      %21 = sbr.rel target = $region3
    $region8: #{transformer_forward.1} parent=1 // loop_exit
      _
    %5470 = vsyncpa [#allocation3], 1
    %s5471 = scalar_lea.sflag [#allocation3], 1
    %5472 = vsyncpa %s5471, 1

</llo_original>
